<compile_context>
chip_gen: v7x
topology: tpu7x:2x2x1
jax: 0.10.0
libtpu: 0.0.40
codegen_flags: <defaults>
</compile_context>

<pallas_src>
import functools

import jax
import jax.numpy as jnp
import numpy as np
from jax.experimental import pallas as pl
from jax.experimental.pallas import tpu as pltpu

FEAT_DIM = 1792      # EfficientNet-B4 feature width
HIDDEN = 512
NUM_CLASSES = 2
OUT_PAD = 128        # lane-dense padded output width (first 2 lanes are real)


# ----------------------------------------------------------------------------
# Fused forward kernel: one batch tile per grid step, weights VMEM-resident
# ----------------------------------------------------------------------------
def _deepfake_fwd_kernel(xs_ref, w1_ref, b1_ref, w2_ref, b2_ref, o_ref):
    f32 = jnp.float32

    # h = relu(fused @ W1_stack + b_fold)   (backbone fold + concat'd rows)
    h = jnp.dot(xs_ref[...], w1_ref[...], preferred_element_type=f32)
    h = jnp.maximum(h + b1_ref[...], 0.0)
    # Dropout(0.3) is identity in eval mode.

    # out (padded to 128 lanes for a dense store); bf16 x bf16 -> f32 on MXU.
    o_ref[...] = (jnp.dot(h.astype(jnp.bfloat16), w2_ref[...],
                          preferred_element_type=f32)
                  + b2_ref[...]).astype(o_ref.dtype)


# ----------------------------------------------------------------------------
# Params
# ----------------------------------------------------------------------------
def init_params(key, spatial):
    img_flat = 3 * spatial * spatial
    ss = spatial * spatial
    fused_dim_model = FEAT_DIM + ss + ss + img_flat   # torch fc input width
    k1, k2, k3, k4, k5, k6 = jax.random.split(key, 6)

    # Master f32 weights (what the torch module would hold).
    w_feat = (jax.random.normal(k1, (img_flat, FEAT_DIM), jnp.float32)
              / np.sqrt(img_flat))
    b_feat = jax.random.normal(k4, (1, FEAT_DIM), jnp.float32) * 0.1
    w1 = (jax.random.normal(k2, (fused_dim_model, HIDDEN), jnp.float32)
          / np.sqrt(fused_dim_model))
    b1 = jax.random.normal(k5, (1, HIDDEN), jnp.float32) * 0.1
    w2 = (jax.random.normal(k3, (HIDDEN, NUM_CLASSES), jnp.float32)
          / np.sqrt(HIDDEN))
    b2 = jax.random.normal(k6, (1, NUM_CLASSES), jnp.float32) * 0.1

    # Algebraic fold (exact, f32):
    #   (img @ W_feat + b_feat) @ W1_x == img @ (W_feat @ W1_x) + b_feat @ W1_x
    # TODO(synk): remove this fold if the real (nonlinear) EfficientNet-B4
    #   backbone is ever implemented.
    w1_x = w1[:FEAT_DIM]
    w1_dct = w1[FEAT_DIM:FEAT_DIM + ss]
    w1_noise = w1[FEAT_DIM + ss:FEAT_DIM + 2 * ss]
    w1_comp = w1[FEAT_DIM + 2 * ss:]
    w_fold = w_feat @ w1_x                     # (img_flat, 512)
    b_fold = b_feat @ w1_x + b1                # (1, 512)

    # Single stacked layer-1 weight; row order [img | dct | noise | comp]
    # matches the wrapper's fused-activation concat order.
    w1_stack = jnp.concatenate([w_fold, w1_dct, w1_noise, w1_comp], axis=0)

    return {
        "w1": w1_stack.astype(jnp.bfloat16),   # (2*img_flat + 2*ss, 512)
        "b1": b_fold,                          # f32 (1, 512)
        "w2": jnp.zeros((HIDDEN, OUT_PAD), jnp.float32)
              .at[:, :NUM_CLASSES].set(w2).astype(jnp.bfloat16),
        "b2": jnp.zeros((1, OUT_PAD), jnp.float32)
              .at[:, :NUM_CLASSES].set(b2),    # f32 (tiny; keeps bias exact)
    }


# ----------------------------------------------------------------------------
# Wrapper
# ----------------------------------------------------------------------------
def _round_up(x, m):
    return ((x + m - 1) // m) * m


@jax.jit
def deepfake_forward(params, img, dct, noise, comp):
    B = img.shape[0]

    # Flatten + pre-cast + single fused activation (order matches w1 rows).
    fused = jnp.concatenate(
        [img.reshape(B, -1), dct.reshape(B, -1),
         noise.reshape(B, -1), comp.reshape(B, -1)], axis=1
    ).astype(jnp.bfloat16)
    K = fused.shape[1]

    # Batch tile: >=16 rows (bf16 sublane packing), up to 256 (MXU rows on
    # v6e/v7x); pad batch to a multiple of the tile.
    TB = min(256, _round_up(B, 16))
    B_pad = _round_up(B, TB)
    if B_pad != B:
        fused = jnp.pad(fused, ((0, B_pad - B), (0, 0)))
    grid = (B_pad // TB,)

    cost = pl.CostEstimate(
        flops=2 * B_pad * K * HIDDEN + 2 * B_pad * HIDDEN * OUT_PAD,
        transcendentals=0,
        bytes_accessed=(K * HIDDEN * 2            # w1 (bf16)
                        + HIDDEN * OUT_PAD * 2    # w2 (bf16)
                        + (HIDDEN + OUT_PAD) * 4  # biases
                        + B_pad * K * 2           # fused activations
                        + B_pad * OUT_PAD * 4))   # padded output

    out_pad = pl.pallas_call(
        _deepfake_fwd_kernel,
        out_shape=jax.ShapeDtypeStruct((B_pad, OUT_PAD), jnp.float32),
        grid_spec=pltpu.PrefetchScalarGridSpec(
            num_scalar_prefetch=0,
            grid=grid,
            in_specs=[
                # activations: streamed (double-buffered) per batch tile
                pl.BlockSpec((TB, K), lambda i: (i, 0)),
                # weights / biases: constant index_map -> VMEM-resident
                pl.BlockSpec((K, HIDDEN), lambda i: (0, 0)),
                pl.BlockSpec((1, HIDDEN), lambda i: (0, 0)),
                pl.BlockSpec((HIDDEN, OUT_PAD), lambda i: (0, 0)),
                pl.BlockSpec((1, OUT_PAD), lambda i: (0, 0)),
            ],
            out_specs=pl.BlockSpec((TB, OUT_PAD), lambda i: (i, 0)),
        ),
        compiler_params=pltpu.CompilerParams(
            dimension_semantics=("parallel",),       # megacore-shard batch tiles
            vmem_limit_bytes=32 * 1024 * 1024,       # ~5 MB used; safe on 64 MiB v7x
        ),
        cost_estimate=cost,
    )(fused, params["w1"], params["b1"], params["w2"], params["b2"])

    return out_pad[:B, :NUM_CLASSES]


# ----------------------------------------------------------------------------
# Pure-JAX reference (same folded bf16 weights / bf16 activations, f32 math)
# ----------------------------------------------------------------------------
def _reference_forward(params, img, dct, noise, comp):
    B = img.shape[0]
    fused = jnp.concatenate(
        [img.reshape(B, -1), dct.reshape(B, -1),
         noise.reshape(B, -1), comp.reshape(B, -1)], axis=1
    ).astype(jnp.bfloat16).astype(jnp.float32)
    h = jnp.maximum(fused @ params["w1"].astype(jnp.float32) + params["b1"], 0.0)
    h = h.astype(jnp.bfloat16).astype(jnp.float32)
    out = h @ params["w2"].astype(jnp.float32) + params["b2"]
    return out[:, :NUM_CLASSES]


if __name__ == "__main__":
    B, S = 2, 16  # small shapes consistent with the module structure
    key = jax.random.PRNGKey(0)
    kp, ki, kd, kn, kc = jax.random.split(key, 5)

    params = init_params(kp, S)
    img = jax.random.normal(ki, (B, 3, S, S), jnp.float32)
    dct = jax.random.normal(kd, (B, S, S), jnp.float32)
    noise = jax.random.normal(kn, (B, S, S), jnp.float32)
    comp = jax.random.normal(kc, (B, 3, S, S), jnp.float32)

    out = jax.block_until_ready(deepfake_forward(params, img, dct, noise, comp))
    assert out.shape == (B, NUM_CLASSES)

    ref = _reference_forward(params, img, dct, noise, comp)
    np.testing.assert_allclose(np.asarray(out), np.asarray(ref),
                               rtol=2e-2, atol=2e-2)
    print("KERNEL_OK")
</pallas_src>

<mosaic_0001>
module attributes {stable_mosaic.version = 11 : i64} {
  func.func @_deepfake_fwd_kernel(%arg0: i32, %arg1: memref<16x2048xbf16, #tpu.memory_space<vmem>>, %arg2: memref<2048x512xbf16, #tpu.memory_space<vmem>>, %arg3: memref<1x512xf32, #tpu.memory_space<vmem>>, %arg4: memref<512x128xbf16, #tpu.memory_space<vmem>>, %arg5: memref<1x128xf32, #tpu.memory_space<vmem>>, %arg6: memref<16x128xf32, #tpu.memory_space<vmem>>) attributes {dimension_semantics = [#tpu.dimension_semantics<parallel>], iteration_bounds = array<i64: 1>, scalar_prefetch = 0 : i64, scratch_operands = 0 : i64, tpu.core_type = #tpu.core_type<tc>, window_params = [{transform_indices = @transform_0, window_bounds = array<i64: 16, 2048>}, {pipeline_mode = #tpu.pipeline_mode<synchronous>, transform_indices = @transform_1, window_bounds = array<i64: 2048, 512>}, {pipeline_mode = #tpu.pipeline_mode<synchronous>, transform_indices = @transform_2, window_bounds = array<i64: 1, 512>}, {pipeline_mode = #tpu.pipeline_mode<synchronous>, transform_indices = @transform_3, window_bounds = array<i64: 512, 128>}, {pipeline_mode = #tpu.pipeline_mode<synchronous>, transform_indices = @transform_4, window_bounds = array<i64: 1, 128>}, {transform_indices = @transform_5, window_bounds = array<i64: 16, 128>}]} {
    %c0 = arith.constant 0 : index
    %c0_0 = arith.constant 0 : index
    %0 = vector.load %arg1[%c0, %c0_0] : memref<16x2048xbf16, #tpu.memory_space<vmem>>, vector<16x2048xbf16>
    %c0_1 = arith.constant 0 : index
    %c0_2 = arith.constant 0 : index
    %1 = vector.load %arg2[%c0_1, %c0_2] : memref<2048x512xbf16, #tpu.memory_space<vmem>>, vector<2048x512xbf16>
    %cst = arith.constant dense<0.000000e+00> : vector<16x512xf32>
    %2 = tpu.matmul %0, %1, %cst {dimension_numbers = #tpu.dot_dimension_numbers<[1], [0], [0], [1], [0, 0, 1, 1], [], []>} : vector<16x2048xbf16>, vector<2048x512xbf16>, vector<16x512xf32> -> vector<16x512xf32>
    %c0_3 = arith.constant 0 : index
    %c0_4 = arith.constant 0 : index
    %3 = vector.load %arg3[%c0_3, %c0_4] : memref<1x512xf32, #tpu.memory_space<vmem>>, vector<1x512xf32>
    %4 = vector.broadcast %3 : vector<1x512xf32> to vector<16x512xf32>
    %5 = arith.addf %2, %4 : vector<16x512xf32>
    %cst_5 = arith.constant 0.000000e+00 : f32
    %6 = vector.broadcast %cst_5 : f32 to vector<16x512xf32>
    %7 = arith.maximumf %5, %6 : vector<16x512xf32>
    %8 = arith.truncf %7 : vector<16x512xf32> to vector<16x512xbf16>
    %c0_6 = arith.constant 0 : index
    %c0_7 = arith.constant 0 : index
    %9 = vector.load %arg4[%c0_6, %c0_7] : memref<512x128xbf16, #tpu.memory_space<vmem>>, vector<512x128xbf16>
    %cst_8 = arith.constant dense<0.000000e+00> : vector<16x128xf32>
    %10 = tpu.matmul %8, %9, %cst_8 {dimension_numbers = #tpu.dot_dimension_numbers<[1], [0], [0], [1], [0, 0, 1, 1], [], []>} : vector<16x512xbf16>, vector<512x128xbf16>, vector<16x128xf32> -> vector<16x128xf32>
    %c0_9 = arith.constant 0 : index
    %c0_10 = arith.constant 0 : index
    %11 = vector.load %arg5[%c0_9, %c0_10] : memref<1x128xf32, #tpu.memory_space<vmem>>, vector<1x128xf32>
    %12 = vector.broadcast %11 : vector<1x128xf32> to vector<16x128xf32>
    %13 = arith.addf %10, %12 : vector<16x128xf32>
    %c0_11 = arith.constant 0 : index
    %c0_12 = arith.constant 0 : index
    %14 = vector.load %arg6[%c0_11, %c0_12] : memref<16x128xf32, #tpu.memory_space<vmem>>, vector<16x128xf32>
    tpu.vector_store %arg6[%c0_11, %c0_12], %13 {strides = array<i32>} : memref<16x128xf32, #tpu.memory_space<vmem>>, vector<16x128xf32>,
    return
  }
  func.func @transform_0(%arg0: i32) -> (i32, i32) {
    %c0_i32 = arith.constant 0 : i32
    %c0_i32_0 = arith.constant 0 : i32
    return %arg0, %c0_i32 : i32, i32
  }
  func.func @transform_1(%arg0: i32) -> (i32, i32) {
    %c0_i32 = arith.constant 0 : i32
    %c0_i32_0 = arith.constant 0 : i32
    %c0_i32_1 = arith.constant 0 : i32
    return %c0_i32, %c0_i32_0 : i32, i32
  }
  func.func @transform_2(%arg0: i32) -> (i32, i32) {
    %c0_i32 = arith.constant 0 : i32
    %c0_i32_0 = arith.constant 0 : i32
    %c0_i32_1 = arith.constant 0 : i32
    return %c0_i32, %c0_i32_0 : i32, i32
  }
  func.func @transform_3(%arg0: i32) -> (i32, i32) {
    %c0_i32 = arith.constant 0 : i32
    %c0_i32_0 = arith.constant 0 : i32
    %c0_i32_1 = arith.constant 0 : i32
    return %c0_i32, %c0_i32_0 : i32, i32
  }
  func.func @transform_4(%arg0: i32) -> (i32, i32) {
    %c0_i32 = arith.constant 0 : i32
    %c0_i32_0 = arith.constant 0 : i32
    %c0_i32_1 = arith.constant 0 : i32
    return %c0_i32, %c0_i32_0 : i32, i32
  }
  func.func @transform_5(%arg0: i32) -> (i32, i32) {
    %c0_i32 = arith.constant 0 : i32
    %c0_i32_0 = arith.constant 0 : i32
    return %arg0, %c0_i32 : i32, i32
  }
}

</mosaic_0001>

<llo_original>
// kernel: deepfake_forward.1
$region0: #{deepfake_forward.1}
  #allocation0 [shape = 'u32[]', space=smem, size = 0x4, offset = 0x4, fixed_abs, tag = 'smem constant byte address 0x4 - core index']
  #allocation1 [shape = 'u32[144,128]{1,0:T(1,128)}', space=vmem, size = 0x12000, scoped, tag = 'internal scratch']
  %s0 = inlined_call_operand.vmem [shape: bf16[16,2048], index: 0, kind: input, shape index: {}]
  %s1 = inlined_call_operand.hbm [shape: bf16[2048,512], index: 1, kind: input, shape index: {}]
  %s2 = inlined_call_operand.hbm [shape: f32[1,512], index: 2, kind: input, shape index: {}]
  %s3 = inlined_call_operand.hbm [shape: bf16[512,128], index: 3, kind: input, shape index: {}]
  %s4 = inlined_call_operand.hbm [shape: f32[1,128], index: 4, kind: input, shape index: {}]
  %s5 = inlined_call_operand.vmem [shape: f32[16,128], index: 5, kind: output, shape index: {}]
  %s6 = sld [smem:[#allocation0]]
  $region46: #{deepfake_forward.1} parent=0
    _
  %s8 = ssub.s32 1, %s6
  %s9 = scalar_select 0, %s8, %s6
  $region1: #{deepfake_forward.1} parent=0
    #allocation2 [shape = 'u8[2097152]{0}', space=vmem, size = 0x200000, scoped, tag = 'input window, operand 1, single buffered']
    #allocation3 [shape = 's32[1]{0}', space=sflag, size = 0x4, scoped, tag = 'scoped memory for deepfake_forward.1']
    #allocation4 [shape = 'u8[2048]{0}', space=vmem, size = 0x800, scoped, tag = 'input window, operand 2, single buffered']
    #allocation5 [shape = 's32[1]{0}', space=sflag, size = 0x4, scoped, tag = 'scoped memory for deepfake_forward.1']
    #allocation6 [shape = 'u8[131072]{0}', space=vmem, size = 0x20000, scoped, tag = 'input window, operand 3, single buffered']
    #allocation7 [shape = 'u8[512]{0}', space=vmem, size = 0x400, scoped, tag = 'input window, operand 4, single buffered']
    #allocation8 [shape = 's32[1]{0}', space=sflag, size = 0x4, scoped, tag = 'scoped memory for deepfake_forward.1']
    %10 = vsyncpa [#allocation3], 0
    %11 = vsyncpa [#allocation5], 0
    %12 = vsyncpa [#allocation8], 0
    // Predicated region
    $region2: #{deepfake_forward.1} parent=1 // pred_check
      _
    $region3: #{deepfake_forward.1} parent=1 // pred_check_branch
      %14 = sbr.rel (0) target = $region5
    $region4: #{deepfake_forward.1} parent=1 // pred_region
      _
    $region5: #{deepfake_forward.1} parent=1 // pred_fallthru
      _
    // Predicated region
    $region6: #{deepfake_forward.1} parent=1 // pred_check
      _
    $region7: #{deepfake_forward.1} parent=1 // pred_check_branch
      %16 = sbr.rel (0) target = $region9
    $region8: #{deepfake_forward.1} parent=1 // pred_region
      %s18 = ssub.s32 65536, 65536
      %19 = vsyncadd [#allocation3], %s18
      %s20 = sshll.u32 [#allocation2], 4
      %s21 = int_to_ptr.vmem [resolvable:$true] %s20
      %26 = dma.hbm_to_vmem [thread:$0]  %s1, 65536, %s21, [#allocation3], 256, 256, 16
    $region9: #{deepfake_forward.1} parent=1 // pred_fallthru
      _
    // Predicated region
    $region10: #{deepfake_forward.1} parent=1 // pred_check
      _
    $region11: #{deepfake_forward.1} parent=1 // pred_check_branch
      %28 = sbr.rel (0) target = $region13
    $region12: #{deepfake_forward.1} parent=1 // pred_region
      %s30 = ssub.s32 64, 64
      %31 = vsyncadd [#allocation5], %s30
      %s33 = sshll.u32 [#allocation4], 4
      %s34 = int_to_ptr.vmem [resolvable:$true] %s33
      %36 = dma.hbm_to_vmem [thread:$0]  %s2, 64, %s34, [#allocation5]
    $region13: #{deepfake_forward.1} parent=1 // pred_fallthru
      _
    // Predicated region
    $region14: #{deepfake_forward.1} parent=1 // pred_check
      _
    $region15: #{deepfake_forward.1} parent=1 // pred_check_branch
      %38 = sbr.rel (0) target = $region17
    $region16: #{deepfake_forward.1} parent=1 // pred_region
      %s40 = ssub.s32 4096, 4096
      %41 = vsyncadd [#allocation5], %s40
      %s42 = sshll.u32 [#allocation6], 4
      %s43 = int_to_ptr.vmem [resolvable:$true] %s42
      %48 = dma.hbm_to_vmem [thread:$0]  %s3, 4096, %s43, [#allocation5], 64, 64, 4
    $region17: #{deepfake_forward.1} parent=1 // pred_fallthru
      _
    // Predicated region
    $region18: #{deepfake_forward.1} parent=1 // pred_check
      _
    $region19: #{deepfake_forward.1} parent=1 // pred_check_branch
      %50 = sbr.rel (0) target = $region21
    $region20: #{deepfake_forward.1} parent=1 // pred_region
      %s52 = ssub.s32 16, 16
      %53 = vsyncadd [#allocation8], %s52
      %s55 = sshll.u32 [#allocation7], 4
      %s56 = int_to_ptr.vmem [resolvable:$true] %s55
      %58 = dma.hbm_to_vmem [thread:$0]  %s4, 16, %s56, [#allocation8]
    $region21: #{deepfake_forward.1} parent=1 // pred_fallthru
      _
    // Predicated region
    $region22: #{deepfake_forward.1} parent=1 // pred_check
      _
    $region23: #{deepfake_forward.1} parent=1 // pred_check_branch
      %60 = sbr.rel (0) target = $region25
    $region24: #{deepfake_forward.1} parent=1 // pred_region
      %61 = dma.done [#allocation3], 65536
    $region25: #{deepfake_forward.1} parent=1 // pred_fallthru
      _
    // Predicated region
    $region26: #{deepfake_forward.1} parent=1 // pred_check
      _
    $region27: #{deepfake_forward.1} parent=1 // pred_check_branch
      %63 = sbr.rel (0) target = $region29
    $region28: #{deepfake_forward.1} parent=1 // pred_region
      %64 = dma.done [#allocation5], 64
    $region29: #{deepfake_forward.1} parent=1 // pred_fallthru
      _
    // Predicated region
    $region30: #{deepfake_forward.1} parent=1 // pred_check
      _
    $region31: #{deepfake_forward.1} parent=1 // pred_check_branch
      %66 = sbr.rel (0) target = $region33
    $region32: #{deepfake_forward.1} parent=1 // pred_region
      %67 = dma.done [#allocation5], 4096
    $region33: #{deepfake_forward.1} parent=1 // pred_fallthru
      _
    // Predicated region
    $region34: #{deepfake_forward.1} parent=1 // pred_check
      _
    $region35: #{deepfake_forward.1} parent=1 // pred_check_branch
      %69 = sbr.rel (0) target = $region37
    $region36: #{deepfake_forward.1} parent=1 // pred_region
      %70 = dma.done [#allocation8], 16
    $region37: #{deepfake_forward.1} parent=1 // pred_fallthru
      _
    %v72 = vld [vmem:[%s0] sm:$0xff]
    %v73 = vld [vmem:[%s0 + $0x8] sm:$0xff]
    %v74 = vld [vmem:[%s0 + $0x10] sm:$0xff]
    %v75 = vld [vmem:[%s0 + $0x18] sm:$0xff]
    %v76 = vld [vmem:[%s0 + $0x20] sm:$0xff]
    %v77 = vld [vmem:[%s0 + $0x28] sm:$0xff]
    %v78 = vld [vmem:[%s0 + $0x30] sm:$0xff]
    %v79 = vld [vmem:[%s0 + $0x38] sm:$0xff]
    %v80 = vld [vmem:[%s0 + $0x40] sm:$0xff]
    %v81 = vld [vmem:[%s0 + $0x48] sm:$0xff]
    %v82 = vld [vmem:[%s0 + $0x50] sm:$0xff]
    %v83 = vld [vmem:[%s0 + $0x58] sm:$0xff]
    %v84 = vld [vmem:[%s0 + $0x60] sm:$0xff]
    %v85 = vld [vmem:[%s0 + $0x68] sm:$0xff]
    %v86 = vld [vmem:[%s0 + $0x70] sm:$0xff]
    %v87 = vld [vmem:[%s0 + $0x78] sm:$0xff]
    %v88 = vld [vmem:[#allocation2] sm:$0xff]
    %v89 = vld [vmem:[#allocation2 + $0x8] sm:$0xff]
    %v90 = vld [vmem:[#allocation2 + $0x10] sm:$0xff]
    %v91 = vld [vmem:[#allocation2 + $0x18] sm:$0xff]
    %v92 = vld [vmem:[#allocation2 + $0x20] sm:$0xff]
    %v93 = vld [vmem:[#allocation2 + $0x28] sm:$0xff]
    %v94 = vld [vmem:[#allocation2 + $0x30] sm:$0xff]
    %v95 = vld [vmem:[#allocation2 + $0x38] sm:$0xff]
    %v96 = vld [vmem:[#allocation2 + $0x40] sm:$0xff]
    %v97 = vld [vmem:[#allocation2 + $0x48] sm:$0xff]
    %v98 = vld [vmem:[#allocation2 + $0x50] sm:$0xff]
    %v99 = vld [vmem:[#allocation2 + $0x58] sm:$0xff]
    %v100 = vld [vmem:[#allocation2 + $0x60] sm:$0xff]
    %v101 = vld [vmem:[#allocation2 + $0x68] sm:$0xff]
    %v102 = vld [vmem:[#allocation2 + $0x70] sm:$0xff]
    %v103 = vld [vmem:[#allocation2 + $0x78] sm:$0xff]
    %v104 = vld [vmem:[#allocation2 + $0x80] sm:$0xff]
    %v105 = vld [vmem:[#allocation2 + $0x88] sm:$0xff]
    %v106 = vld [vmem:[#allocation2 + $0x90] sm:$0xff]
    %v107 = vld [vmem:[#allocation2 + $0x98] sm:$0xff]
    %v108 = vld [vmem:[#allocation2 + $0xa0] sm:$0xff]
    %v109 = vld [vmem:[#allocation2 + $0xa8] sm:$0xff]
    %v110 = vld [vmem:[#allocation2 + $0xb0] sm:$0xff]
    %v111 = vld [vmem:[#allocation2 + $0xb8] sm:$0xff]
    %v112 = vld [vmem:[#allocation2 + $0xc0] sm:$0xff]
    %v113 = vld [vmem:[#allocation2 + $0xc8] sm:$0xff]
    %v114 = vld [vmem:[#allocation2 + $0xd0] sm:$0xff]
    %v115 = vld [vmem:[#allocation2 + $0xd8] sm:$0xff]
    %v116 = vld [vmem:[#allocation2 + $0xe0] sm:$0xff]
    %v117 = vld [vmem:[#allocation2 + $0xe8] sm:$0xff]
    %v118 = vld [vmem:[#allocation2 + $0xf0] sm:$0xff]
    %v119 = vld [vmem:[#allocation2 + $0xf8] sm:$0xff]
    %v120 = vld [vmem:[#allocation2 + $0x100] sm:$0xff]
    %v121 = vld [vmem:[#allocation2 + $0x108] sm:$0xff]
    %v122 = vld [vmem:[#allocation2 + $0x110] sm:$0xff]
    %v123 = vld [vmem:[#allocation2 + $0x118] sm:$0xff]
    %v124 = vld [vmem:[#allocation2 + $0x120] sm:$0xff]
    %v125 = vld [vmem:[#allocation2 + $0x128] sm:$0xff]
    %v126 = vld [vmem:[#allocation2 + $0x130] sm:$0xff]
    %v127 = vld [vmem:[#allocation2 + $0x138] sm:$0xff]
    %v128 = vld [vmem:[#allocation2 + $0x140] sm:$0xff]
    %v129 = vld [vmem:[#allocation2 + $0x148] sm:$0xff]
    %v130 = vld [vmem:[#allocation2 + $0x150] sm:$0xff]
    %v131 = vld [vmem:[#allocation2 + $0x158] sm:$0xff]
    %v132 = vld [vmem:[#allocation2 + $0x160] sm:$0xff]
    %v133 = vld [vmem:[#allocation2 + $0x168] sm:$0xff]
    %v134 = vld [vmem:[#allocation2 + $0x170] sm:$0xff]
    %v135 = vld [vmem:[#allocation2 + $0x178] sm:$0xff]
    %v136 = vld [vmem:[#allocation2 + $0x180] sm:$0xff]
    %v137 = vld [vmem:[#allocation2 + $0x188] sm:$0xff]
    %v138 = vld [vmem:[#allocation2 + $0x190] sm:$0xff]
    %v139 = vld [vmem:[#allocation2 + $0x198] sm:$0xff]
    %v140 = vld [vmem:[#allocation2 + $0x1a0] sm:$0xff]
    %v141 = vld [vmem:[#allocation2 + $0x1a8] sm:$0xff]
    %v142 = vld [vmem:[#allocation2 + $0x1b0] sm:$0xff]
    %v143 = vld [vmem:[#allocation2 + $0x1b8] sm:$0xff]
    %v144 = vld [vmem:[#allocation2 + $0x1c0] sm:$0xff]
    %v145 = vld [vmem:[#allocation2 + $0x1c8] sm:$0xff]
    %v146 = vld [vmem:[#allocation2 + $0x1d0] sm:$0xff]
    %v147 = vld [vmem:[#allocation2 + $0x1d8] sm:$0xff]
    %v148 = vld [vmem:[#allocation2 + $0x1e0] sm:$0xff]
    %v149 = vld [vmem:[#allocation2 + $0x1e8] sm:$0xff]
    %v150 = vld [vmem:[#allocation2 + $0x1f0] sm:$0xff]
    %v151 = vld [vmem:[#allocation2 + $0x1f8] sm:$0xff]
    %v152 = vld [vmem:[#allocation2 + $0x200] sm:$0xff]
    %v153 = vld [vmem:[#allocation2 + $0x208] sm:$0xff]
    %v154 = vld [vmem:[#allocation2 + $0x210] sm:$0xff]
    %v155 = vld [vmem:[#allocation2 + $0x218] sm:$0xff]
    %v156 = vld [vmem:[#allocation2 + $0x220] sm:$0xff]
    %v157 = vld [vmem:[#allocation2 + $0x228] sm:$0xff]
    %v158 = vld [vmem:[#allocation2 + $0x230] sm:$0xff]
    %v159 = vld [vmem:[#allocation2 + $0x238] sm:$0xff]
    %v160 = vld [vmem:[#allocation2 + $0x240] sm:$0xff]
    %v161 = vld [vmem:[#allocation2 + $0x248] sm:$0xff]
    %v162 = vld [vmem:[#allocation2 + $0x250] sm:$0xff]
    %v163 = vld [vmem:[#allocation2 + $0x258] sm:$0xff]
    %v164 = vld [vmem:[#allocation2 + $0x260] sm:$0xff]
    %v165 = vld [vmem:[#allocation2 + $0x268] sm:$0xff]
    %v166 = vld [vmem:[#allocation2 + $0x270] sm:$0xff]
    %v167 = vld [vmem:[#allocation2 + $0x278] sm:$0xff]
    %v168 = vld [vmem:[#allocation2 + $0x280] sm:$0xff]
    %v169 = vld [vmem:[#allocation2 + $0x288] sm:$0xff]
    %v170 = vld [vmem:[#allocation2 + $0x290] sm:$0xff]
    %v171 = vld [vmem:[#allocation2 + $0x298] sm:$0xff]
    %v172 = vld [vmem:[#allocation2 + $0x2a0] sm:$0xff]
    %v173 = vld [vmem:[#allocation2 + $0x2a8] sm:$0xff]
    %v174 = vld [vmem:[#allocation2 + $0x2b0] sm:$0xff]
    %v175 = vld [vmem:[#allocation2 + $0x2b8] sm:$0xff]
    %v176 = vld [vmem:[#allocation2 + $0x2c0] sm:$0xff]
    %v177 = vld [vmem:[#allocation2 + $0x2c8] sm:$0xff]
    %v178 = vld [vmem:[#allocation2 + $0x2d0] sm:$0xff]
    %v179 = vld [vmem:[#allocation2 + $0x2d8] sm:$0xff]
    %v180 = vld [vmem:[#allocation2 + $0x2e0] sm:$0xff]
    %v181 = vld [vmem:[#allocation2 + $0x2e8] sm:$0xff]
    %v182 = vld [vmem:[#allocation2 + $0x2f0] sm:$0xff]
    %v183 = vld [vmem:[#allocation2 + $0x2f8] sm:$0xff]
    %v184 = vld [vmem:[#allocation2 + $0x300] sm:$0xff]
    %v185 = vld [vmem:[#allocation2 + $0x308] sm:$0xff]
    %v186 = vld [vmem:[#allocation2 + $0x310] sm:$0xff]
    %v187 = vld [vmem:[#allocation2 + $0x318] sm:$0xff]
    %v188 = vld [vmem:[#allocation2 + $0x320] sm:$0xff]
    %v189 = vld [vmem:[#allocation2 + $0x328] sm:$0xff]
    %v190 = vld [vmem:[#allocation2 + $0x330] sm:$0xff]
    %v191 = vld [vmem:[#allocation2 + $0x338] sm:$0xff]
    %v192 = vld [vmem:[#allocation2 + $0x340] sm:$0xff]
    %v193 = vld [vmem:[#allocation2 + $0x348] sm:$0xff]
    %v194 = vld [vmem:[#allocation2 + $0x350] sm:$0xff]
    %v195 = vld [vmem:[#allocation2 + $0x358] sm:$0xff]
    %v196 = vld [vmem:[#allocation2 + $0x360] sm:$0xff]
    %v197 = vld [vmem:[#allocation2 + $0x368] sm:$0xff]
    %v198 = vld [vmem:[#allocation2 + $0x370] sm:$0xff]
    %v199 = vld [vmem:[#allocation2 + $0x378] sm:$0xff]
    %v200 = vld [vmem:[#allocation2 + $0x380] sm:$0xff]
    %v201 = vld [vmem:[#allocation2 + $0x388] sm:$0xff]
    %v202 = vld [vmem:[#allocation2 + $0x390] sm:$0xff]
    %v203 = vld [vmem:[#allocation2 + $0x398] sm:$0xff]
    %v204 = vld [vmem:[#allocation2 + $0x3a0] sm:$0xff]
    %v205 = vld [vmem:[#allocation2 + $0x3a8] sm:$0xff]
    %v206 = vld [vmem:[#allocation2 + $0x3b0] sm:$0xff]
    %v207 = vld [vmem:[#allocation2 + $0x3b8] sm:$0xff]
    %v208 = vld [vmem:[#allocation2 + $0x3c0] sm:$0xff]
    %v209 = vld [vmem:[#allocation2 + $0x3c8] sm:$0xff]
    %v210 = vld [vmem:[#allocation2 + $0x3d0] sm:$0xff]
    %v211 = vld [vmem:[#allocation2 + $0x3d8] sm:$0xff]
    %v212 = vld [vmem:[#allocation2 + $0x3e0] sm:$0xff]
    %v213 = vld [vmem:[#allocation2 + $0x3e8] sm:$0xff]
    %v214 = vld [vmem:[#allocation2 + $0x3f0] sm:$0xff]
    %v215 = vld [vmem:[#allocation2 + $0x3f8] sm:$0xff]
    %v216 = vld [vmem:[#allocation2 + $0x400] sm:$0xff]
    %v217 = vld [vmem:[#allocation2 + $0x408] sm:$0xff]
    %v218 = vld [vmem:[#allocation2 + $0x410] sm:$0xff]
    %v219 = vld [vmem:[#allocation2 + $0x418] sm:$0xff]
    %v220 = vld [vmem:[#allocation2 + $0x420] sm:$0xff]
    %v221 = vld [vmem:[#allocation2 + $0x428] sm:$0xff]
    %v222 = vld [vmem:[#allocation2 + $0x430] sm:$0xff]
    %v223 = vld [vmem:[#allocation2 + $0x438] sm:$0xff]
    %v224 = vld [vmem:[#allocation2 + $0x440] sm:$0xff]
    %v225 = vld [vmem:[#allocation2 + $0x448] sm:$0xff]
    %v226 = vld [vmem:[#allocation2 + $0x450] sm:$0xff]
    %v227 = vld [vmem:[#allocation2 + $0x458] sm:$0xff]
    %v228 = vld [vmem:[#allocation2 + $0x460] sm:$0xff]
    %v229 = vld [vmem:[#allocation2 + $0x468] sm:$0xff]
    %v230 = vld [vmem:[#allocation2 + $0x470] sm:$0xff]
    %v231 = vld [vmem:[#allocation2 + $0x478] sm:$0xff]
    %v232 = vld [vmem:[#allocation2 + $0x480] sm:$0xff]
    %v233 = vld [vmem:[#allocation2 + $0x488] sm:$0xff]
    %v234 = vld [vmem:[#allocation2 + $0x490] sm:$0xff]
    %v235 = vld [vmem:[#allocation2 + $0x498] sm:$0xff]
    %v236 = vld [vmem:[#allocation2 + $0x4a0] sm:$0xff]
    %v237 = vld [vmem:[#allocation2 + $0x4a8] sm:$0xff]
    %v238 = vld [vmem:[#allocation2 + $0x4b0] sm:$0xff]
    %v239 = vld [vmem:[#allocation2 + $0x4b8] sm:$0xff]
    %v240 = vld [vmem:[#allocation2 + $0x4c0] sm:$0xff]
    %v241 = vld [vmem:[#allocation2 + $0x4c8] sm:$0xff]
    %v242 = vld [vmem:[#allocation2 + $0x4d0] sm:$0xff]
    %v243 = vld [vmem:[#allocation2 + $0x4d8] sm:$0xff]
    %v244 = vld [vmem:[#allocation2 + $0x4e0] sm:$0xff]
    %v245 = vld [vmem:[#allocation2 + $0x4e8] sm:$0xff]
    %v246 = vld [vmem:[#allocation2 + $0x4f0] sm:$0xff]
    %v247 = vld [vmem:[#allocation2 + $0x4f8] sm:$0xff]
    %v248 = vld [vmem:[#allocation2 + $0x500] sm:$0xff]
    %v249 = vld [vmem:[#allocation2 + $0x508] sm:$0xff]
    %v250 = vld [vmem:[#allocation2 + $0x510] sm:$0xff]
    %v251 = vld [vmem:[#allocation2 + $0x518] sm:$0xff]
    %v252 = vld [vmem:[#allocation2 + $0x520] sm:$0xff]
    %v253 = vld [vmem:[#allocation2 + $0x528] sm:$0xff]
    %v254 = vld [vmem:[#allocation2 + $0x530] sm:$0xff]
    %v255 = vld [vmem:[#allocation2 + $0x538] sm:$0xff]
    %v256 = vld [vmem:[#allocation2 + $0x540] sm:$0xff]
    %v257 = vld [vmem:[#allocation2 + $0x548] sm:$0xff]
    %v258 = vld [vmem:[#allocation2 + $0x550] sm:$0xff]
    %v259 = vld [vmem:[#allocation2 + $0x558] sm:$0xff]
    %v260 = vld [vmem:[#allocation2 + $0x560] sm:$0xff]
    %v261 = vld [vmem:[#allocation2 + $0x568] sm:$0xff]
    %v262 = vld [vmem:[#allocation2 + $0x570] sm:$0xff]
    %v263 = vld [vmem:[#allocation2 + $0x578] sm:$0xff]
    %v264 = vld [vmem:[#allocation2 + $0x580] sm:$0xff]
    %v265 = vld [vmem:[#allocation2 + $0x588] sm:$0xff]
    %v266 = vld [vmem:[#allocation2 + $0x590] sm:$0xff]
    %v267 = vld [vmem:[#allocation2 + $0x598] sm:$0xff]
    %v268 = vld [vmem:[#allocation2 + $0x5a0] sm:$0xff]
    %v269 = vld [vmem:[#allocation2 + $0x5a8] sm:$0xff]
    %v270 = vld [vmem:[#allocation2 + $0x5b0] sm:$0xff]
    %v271 = vld [vmem:[#allocation2 + $0x5b8] sm:$0xff]
    %v272 = vld [vmem:[#allocation2 + $0x5c0] sm:$0xff]
    %v273 = vld [vmem:[#allocation2 + $0x5c8] sm:$0xff]
    %v274 = vld [vmem:[#allocation2 + $0x5d0] sm:$0xff]
    %v275 = vld [vmem:[#allocation2 + $0x5d8] sm:$0xff]
    %v276 = vld [vmem:[#allocation2 + $0x5e0] sm:$0xff]
    %v277 = vld [vmem:[#allocation2 + $0x5e8] sm:$0xff]
    %v278 = vld [vmem:[#allocation2 + $0x5f0] sm:$0xff]
    %v279 = vld [vmem:[#allocation2 + $0x5f8] sm:$0xff]
    %v280 = vld [vmem:[#allocation2 + $0x600] sm:$0xff]
    %v281 = vld [vmem:[#allocation2 + $0x608] sm:$0xff]
    %v282 = vld [vmem:[#allocation2 + $0x610] sm:$0xff]
    %v283 = vld [vmem:[#allocation2 + $0x618] sm:$0xff]
    %v284 = vld [vmem:[#allocation2 + $0x620] sm:$0xff]
    %v285 = vld [vmem:[#allocation2 + $0x628] sm:$0xff]
    %v286 = vld [vmem:[#allocation2 + $0x630] sm:$0xff]
    %v287 = vld [vmem:[#allocation2 + $0x638] sm:$0xff]
    %v288 = vld [vmem:[#allocation2 + $0x640] sm:$0xff]
    %v289 = vld [vmem:[#allocation2 + $0x648] sm:$0xff]
    %v290 = vld [vmem:[#allocation2 + $0x650] sm:$0xff]
    %v291 = vld [vmem:[#allocation2 + $0x658] sm:$0xff]
    %v292 = vld [vmem:[#allocation2 + $0x660] sm:$0xff]
    %v293 = vld [vmem:[#allocation2 + $0x668] sm:$0xff]
    %v294 = vld [vmem:[#allocation2 + $0x670] sm:$0xff]
    %v295 = vld [vmem:[#allocation2 + $0x678] sm:$0xff]
    %v296 = vld [vmem:[#allocation2 + $0x680] sm:$0xff]
    %v297 = vld [vmem:[#allocation2 + $0x688] sm:$0xff]
    %v298 = vld [vmem:[#allocation2 + $0x690] sm:$0xff]
    %v299 = vld [vmem:[#allocation2 + $0x698] sm:$0xff]
    %v300 = vld [vmem:[#allocation2 + $0x6a0] sm:$0xff]
    %v301 = vld [vmem:[#allocation2 + $0x6a8] sm:$0xff]
    %v302 = vld [vmem:[#allocation2 + $0x6b0] sm:$0xff]
    %v303 = vld [vmem:[#allocation2 + $0x6b8] sm:$0xff]
    %v304 = vld [vmem:[#allocation2 + $0x6c0] sm:$0xff]
    %v305 = vld [vmem:[#allocation2 + $0x6c8] sm:$0xff]
    %v306 = vld [vmem:[#allocation2 + $0x6d0] sm:$0xff]
    %v307 = vld [vmem:[#allocation2 + $0x6d8] sm:$0xff]
    %v308 = vld [vmem:[#allocation2 + $0x6e0] sm:$0xff]
    %v309 = vld [vmem:[#allocation2 + $0x6e8] sm:$0xff]
    %v310 = vld [vmem:[#allocation2 + $0x6f0] sm:$0xff]
    %v311 = vld [vmem:[#allocation2 + $0x6f8] sm:$0xff]
    %v312 = vld [vmem:[#allocation2 + $0x700] sm:$0xff]
    %v313 = vld [vmem:[#allocation2 + $0x708] sm:$0xff]
    %v314 = vld [vmem:[#allocation2 + $0x710] sm:$0xff]
    %v315 = vld [vmem:[#allocation2 + $0x718] sm:$0xff]
    %v316 = vld [vmem:[#allocation2 + $0x720] sm:$0xff]
    %v317 = vld [vmem:[#allocation2 + $0x728] sm:$0xff]
    %v318 = vld [vmem:[#allocation2 + $0x730] sm:$0xff]
    %v319 = vld [vmem:[#allocation2 + $0x738] sm:$0xff]
    %v320 = vld [vmem:[#allocation2 + $0x740] sm:$0xff]
    %v321 = vld [vmem:[#allocation2 + $0x748] sm:$0xff]
    %v322 = vld [vmem:[#allocation2 + $0x750] sm:$0xff]
    %v323 = vld [vmem:[#allocation2 + $0x758] sm:$0xff]
    %v324 = vld [vmem:[#allocation2 + $0x760] sm:$0xff]
    %v325 = vld [vmem:[#allocation2 + $0x768] sm:$0xff]
    %v326 = vld [vmem:[#allocation2 + $0x770] sm:$0xff]
    %v327 = vld [vmem:[#allocation2 + $0x778] sm:$0xff]
    %v328 = vld [vmem:[#allocation2 + $0x780] sm:$0xff]
    %v329 = vld [vmem:[#allocation2 + $0x788] sm:$0xff]
    %v330 = vld [vmem:[#allocation2 + $0x790] sm:$0xff]
    %v331 = vld [vmem:[#allocation2 + $0x798] sm:$0xff]
    %v332 = vld [vmem:[#allocation2 + $0x7a0] sm:$0xff]
    %v333 = vld [vmem:[#allocation2 + $0x7a8] sm:$0xff]
    %v334 = vld [vmem:[#allocation2 + $0x7b0] sm:$0xff]
    %v335 = vld [vmem:[#allocation2 + $0x7b8] sm:$0xff]
    %v336 = vld [vmem:[#allocation2 + $0x7c0] sm:$0xff]
    %v337 = vld [vmem:[#allocation2 + $0x7c8] sm:$0xff]
    %v338 = vld [vmem:[#allocation2 + $0x7d0] sm:$0xff]
    %v339 = vld [vmem:[#allocation2 + $0x7d8] sm:$0xff]
    %v340 = vld [vmem:[#allocation2 + $0x7e0] sm:$0xff]
    %v341 = vld [vmem:[#allocation2 + $0x7e8] sm:$0xff]
    %v342 = vld [vmem:[#allocation2 + $0x7f0] sm:$0xff]
    %v343 = vld [vmem:[#allocation2 + $0x7f8] sm:$0xff]
    %v344 = vld [vmem:[#allocation2 + $0x800] sm:$0xff]
    %v345 = vld [vmem:[#allocation2 + $0x808] sm:$0xff]
    %v346 = vld [vmem:[#allocation2 + $0x810] sm:$0xff]
    %v347 = vld [vmem:[#allocation2 + $0x818] sm:$0xff]
    %v348 = vld [vmem:[#allocation2 + $0x820] sm:$0xff]
    %v349 = vld [vmem:[#allocation2 + $0x828] sm:$0xff]
    %v350 = vld [vmem:[#allocation2 + $0x830] sm:$0xff]
    %v351 = vld [vmem:[#allocation2 + $0x838] sm:$0xff]
    %v352 = vld [vmem:[#allocation2 + $0x840] sm:$0xff]
    %v353 = vld [vmem:[#allocation2 + $0x848] sm:$0xff]
    %v354 = vld [vmem:[#allocation2 + $0x850] sm:$0xff]
    %v355 = vld [vmem:[#allocation2 + $0x858] sm:$0xff]
    %v356 = vld [vmem:[#allocation2 + $0x860] sm:$0xff]
    %v357 = vld [vmem:[#allocation2 + $0x868] sm:$0xff]
    %v358 = vld [vmem:[#allocation2 + $0x870] sm:$0xff]
    %v359 = vld [vmem:[#allocation2 + $0x878] sm:$0xff]
    %v360 = vld [vmem:[#allocation2 + $0x880] sm:$0xff]
    %v361 = vld [vmem:[#allocation2 + $0x888] sm:$0xff]
    %v362 = vld [vmem:[#allocation2 + $0x890] sm:$0xff]
    %v363 = vld [vmem:[#allocation2 + $0x898] sm:$0xff]
    %v364 = vld [vmem:[#allocation2 + $0x8a0] sm:$0xff]
    %v365 = vld [vmem:[#allocation2 + $0x8a8] sm:$0xff]
    %v366 = vld [vmem:[#allocation2 + $0x8b0] sm:$0xff]
    %v367 = vld [vmem:[#allocation2 + $0x8b8] sm:$0xff]
    %v368 = vld [vmem:[#allocation2 + $0x8c0] sm:$0xff]
    %v369 = vld [vmem:[#allocation2 + $0x8c8] sm:$0xff]
    %v370 = vld [vmem:[#allocation2 + $0x8d0] sm:$0xff]
    %v371 = vld [vmem:[#allocation2 + $0x8d8] sm:$0xff]
    %v372 = vld [vmem:[#allocation2 + $0x8e0] sm:$0xff]
    %v373 = vld [vmem:[#allocation2 + $0x8e8] sm:$0xff]
    %v374 = vld [vmem:[#allocation2 + $0x8f0] sm:$0xff]
    %v375 = vld [vmem:[#allocation2 + $0x8f8] sm:$0xff]
    %v376 = vld [vmem:[#allocation2 + $0x900] sm:$0xff]
    %v377 = vld [vmem:[#allocation2 + $0x908] sm:$0xff]
    %v378 = vld [vmem:[#allocation2 + $0x910] sm:$0xff]
    %v379 = vld [vmem:[#allocation2 + $0x918] sm:$0xff]
    %v380 = vld [vmem:[#allocation2 + $0x920] sm:$0xff]
    %v381 = vld [vmem:[#allocation2 + $0x928] sm:$0xff]
    %v382 = vld [vmem:[#allocation2 + $0x930] sm:$0xff]
    %v383 = vld [vmem:[#allocation2 + $0x938] sm:$0xff]
    %v384 = vld [vmem:[#allocation2 + $0x940] sm:$0xff]
    %v385 = vld [vmem:[#allocation2 + $0x948] sm:$0xff]
    %v386 = vld [vmem:[#allocation2 + $0x950] sm:$0xff]
    %v387 = vld [vmem:[#allocation2 + $0x958] sm:$0xff]
    %v388 = vld [vmem:[#allocation2 + $0x960] sm:$0xff]
    %v389 = vld [vmem:[#allocation2 + $0x968] sm:$0xff]
    %v390 = vld [vmem:[#allocation2 + $0x970] sm:$0xff]
    %v391 = vld [vmem:[#allocation2 + $0x978] sm:$0xff]
    %v392 = vld [vmem:[#allocation2 + $0x980] sm:$0xff]
    %v393 = vld [vmem:[#allocation2 + $0x988] sm:$0xff]
    %v394 = vld [vmem:[#allocation2 + $0x990] sm:$0xff]
    %v395 = vld [vmem:[#allocation2 + $0x998] sm:$0xff]
    %v396 = vld [vmem:[#allocation2 + $0x9a0] sm:$0xff]
    %v397 = vld [vmem:[#allocation2 + $0x9a8] sm:$0xff]
    %v398 = vld [vmem:[#allocation2 + $0x9b0] sm:$0xff]
    %v399 = vld [vmem:[#allocation2 + $0x9b8] sm:$0xff]
    %v400 = vld [vmem:[#allocation2 + $0x9c0] sm:$0xff]
    %v401 = vld [vmem:[#allocation2 + $0x9c8] sm:$0xff]
    %v402 = vld [vmem:[#allocation2 + $0x9d0] sm:$0xff]
    %v403 = vld [vmem:[#allocation2 + $0x9d8] sm:$0xff]
    %v404 = vld [vmem:[#allocation2 + $0x9e0] sm:$0xff]
    %v405 = vld [vmem:[#allocation2 + $0x9e8] sm:$0xff]
    %v406 = vld [vmem:[#allocation2 + $0x9f0] sm:$0xff]
    %v407 = vld [vmem:[#allocation2 + $0x9f8] sm:$0xff]
    %v408 = vld [vmem:[#allocation2 + $0xa00] sm:$0xff]
    %v409 = vld [vmem:[#allocation2 + $0xa08] sm:$0xff]
    %v410 = vld [vmem:[#allocation2 + $0xa10] sm:$0xff]
    %v411 = vld [vmem:[#allocation2 + $0xa18] sm:$0xff]
    %v412 = vld [vmem:[#allocation2 + $0xa20] sm:$0xff]
    %v413 = vld [vmem:[#allocation2 + $0xa28] sm:$0xff]
    %v414 = vld [vmem:[#allocation2 + $0xa30] sm:$0xff]
    %v415 = vld [vmem:[#allocation2 + $0xa38] sm:$0xff]
    %v416 = vld [vmem:[#allocation2 + $0xa40] sm:$0xff]
    %v417 = vld [vmem:[#allocation2 + $0xa48] sm:$0xff]
    %v418 = vld [vmem:[#allocation2 + $0xa50] sm:$0xff]
    %v419 = vld [vmem:[#allocation2 + $0xa58] sm:$0xff]
    %v420 = vld [vmem:[#allocation2 + $0xa60] sm:$0xff]
    %v421 = vld [vmem:[#allocation2 + $0xa68] sm:$0xff]
    %v422 = vld [vmem:[#allocation2 + $0xa70] sm:$0xff]
    %v423 = vld [vmem:[#allocation2 + $0xa78] sm:$0xff]
    %v424 = vld [vmem:[#allocation2 + $0xa80] sm:$0xff]
    %v425 = vld [vmem:[#allocation2 + $0xa88] sm:$0xff]
    %v426 = vld [vmem:[#allocation2 + $0xa90] sm:$0xff]
    %v427 = vld [vmem:[#allocation2 + $0xa98] sm:$0xff]
    %v428 = vld [vmem:[#allocation2 + $0xaa0] sm:$0xff]
    %v429 = vld [vmem:[#allocation2 + $0xaa8] sm:$0xff]
    %v430 = vld [vmem:[#allocation2 + $0xab0] sm:$0xff]
    %v431 = vld [vmem:[#allocation2 + $0xab8] sm:$0xff]
    %v432 = vld [vmem:[#allocation2 + $0xac0] sm:$0xff]
    %v433 = vld [vmem:[#allocation2 + $0xac8] sm:$0xff]
    %v434 = vld [vmem:[#allocation2 + $0xad0] sm:$0xff]
    %v435 = vld [vmem:[#allocation2 + $0xad8] sm:$0xff]
    %v436 = vld [vmem:[#allocation2 + $0xae0] sm:$0xff]
    %v437 = vld [vmem:[#allocation2 + $0xae8] sm:$0xff]
    %v438 = vld [vmem:[#allocation2 + $0xaf0] sm:$0xff]
    %v439 = vld [vmem:[#allocation2 + $0xaf8] sm:$0xff]
    %v440 = vld [vmem:[#allocation2 + $0xb00] sm:$0xff]
    %v441 = vld [vmem:[#allocation2 + $0xb08] sm:$0xff]
    %v442 = vld [vmem:[#allocation2 + $0xb10] sm:$0xff]
    %v443 = vld [vmem:[#allocation2 + $0xb18] sm:$0xff]
    %v444 = vld [vmem:[#allocation2 + $0xb20] sm:$0xff]
    %v445 = vld [vmem:[#allocation2 + $0xb28] sm:$0xff]
    %v446 = vld [vmem:[#allocation2 + $0xb30] sm:$0xff]
    %v447 = vld [vmem:[#allocation2 + $0xb38] sm:$0xff]
    %v448 = vld [vmem:[#allocation2 + $0xb40] sm:$0xff]
    %v449 = vld [vmem:[#allocation2 + $0xb48] sm:$0xff]
    %v450 = vld [vmem:[#allocation2 + $0xb50] sm:$0xff]
    %v451 = vld [vmem:[#allocation2 + $0xb58] sm:$0xff]
    %v452 = vld [vmem:[#allocation2 + $0xb60] sm:$0xff]
    %v453 = vld [vmem:[#allocation2 + $0xb68] sm:$0xff]
    %v454 = vld [vmem:[#allocation2 + $0xb70] sm:$0xff]
    %v455 = vld [vmem:[#allocation2 + $0xb78] sm:$0xff]
    %v456 = vld [vmem:[#allocation2 + $0xb80] sm:$0xff]
    %v457 = vld [vmem:[#allocation2 + $0xb88] sm:$0xff]
    %v458 = vld [vmem:[#allocation2 + $0xb90] sm:$0xff]
    %v459 = vld [vmem:[#allocation2 + $0xb98] sm:$0xff]
    %v460 = vld [vmem:[#allocation2 + $0xba0] sm:$0xff]
    %v461 = vld [vmem:[#allocation2 + $0xba8] sm:$0xff]
    %v462 = vld [vmem:[#allocation2 + $0xbb0] sm:$0xff]
    %v463 = vld [vmem:[#allocation2 + $0xbb8] sm:$0xff]
    %v464 = vld [vmem:[#allocation2 + $0xbc0] sm:$0xff]
    %v465 = vld [vmem:[#allocation2 + $0xbc8] sm:$0xff]
    %v466 = vld [vmem:[#allocation2 + $0xbd0] sm:$0xff]
    %v467 = vld [vmem:[#allocation2 + $0xbd8] sm:$0xff]
    %v468 = vld [vmem:[#allocation2 + $0xbe0] sm:$0xff]
    %v469 = vld [vmem:[#allocation2 + $0xbe8] sm:$0xff]
    %v470 = vld [vmem:[#allocation2 + $0xbf0] sm:$0xff]
    %v471 = vld [vmem:[#allocation2 + $0xbf8] sm:$0xff]
    %v472 = vld [vmem:[#allocation2 + $0xc00] sm:$0xff]
    %v473 = vld [vmem:[#allocation2 + $0xc08] sm:$0xff]
    %v474 = vld [vmem:[#allocation2 + $0xc10] sm:$0xff]
    %v475 = vld [vmem:[#allocation2 + $0xc18] sm:$0xff]
    %v476 = vld [vmem:[#allocation2 + $0xc20] sm:$0xff]
    %v477 = vld [vmem:[#allocation2 + $0xc28] sm:$0xff]
    %v478 = vld [vmem:[#allocation2 + $0xc30] sm:$0xff]
    %v479 = vld [vmem:[#allocation2 + $0xc38] sm:$0xff]
    %v480 = vld [vmem:[#allocation2 + $0xc40] sm:$0xff]
    %v481 = vld [vmem:[#allocation2 + $0xc48] sm:$0xff]
    %v482 = vld [vmem:[#allocation2 + $0xc50] sm:$0xff]
    %v483 = vld [vmem:[#allocation2 + $0xc58] sm:$0xff]
    %v484 = vld [vmem:[#allocation2 + $0xc60] sm:$0xff]
    %v485 = vld [vmem:[#allocation2 + $0xc68] sm:$0xff]
    %v486 = vld [vmem:[#allocation2 + $0xc70] sm:$0xff]
    %v487 = vld [vmem:[#allocation2 + $0xc78] sm:$0xff]
    %v488 = vld [vmem:[#allocation2 + $0xc80] sm:$0xff]
    %v489 = vld [vmem:[#allocation2 + $0xc88] sm:$0xff]
    %v490 = vld [vmem:[#allocation2 + $0xc90] sm:$0xff]
    %v491 = vld [vmem:[#allocation2 + $0xc98] sm:$0xff]
    %v492 = vld [vmem:[#allocation2 + $0xca0] sm:$0xff]
    %v493 = vld [vmem:[#allocation2 + $0xca8] sm:$0xff]
    %v494 = vld [vmem:[#allocation2 + $0xcb0] sm:$0xff]
    %v495 = vld [vmem:[#allocation2 + $0xcb8] sm:$0xff]
    %v496 = vld [vmem:[#allocation2 + $0xcc0] sm:$0xff]
    %v497 = vld [vmem:[#allocation2 + $0xcc8] sm:$0xff]
    %v498 = vld [vmem:[#allocation2 + $0xcd0] sm:$0xff]
    %v499 = vld [vmem:[#allocation2 + $0xcd8] sm:$0xff]
    %v500 = vld [vmem:[#allocation2 + $0xce0] sm:$0xff]
    %v501 = vld [vmem:[#allocation2 + $0xce8] sm:$0xff]
    %v502 = vld [vmem:[#allocation2 + $0xcf0] sm:$0xff]
    %v503 = vld [vmem:[#allocation2 + $0xcf8] sm:$0xff]
    %v504 = vld [vmem:[#allocation2 + $0xd00] sm:$0xff]
    %v505 = vld [vmem:[#allocation2 + $0xd08] sm:$0xff]
    %v506 = vld [vmem:[#allocation2 + $0xd10] sm:$0xff]
    %v507 = vld [vmem:[#allocation2 + $0xd18] sm:$0xff]
    %v508 = vld [vmem:[#allocation2 + $0xd20] sm:$0xff]
    %v509 = vld [vmem:[#allocation2 + $0xd28] sm:$0xff]
    %v510 = vld [vmem:[#allocation2 + $0xd30] sm:$0xff]
    %v511 = vld [vmem:[#allocation2 + $0xd38] sm:$0xff]
    %v512 = vld [vmem:[#allocation2 + $0xd40] sm:$0xff]
    %v513 = vld [vmem:[#allocation2 + $0xd48] sm:$0xff]
    %v514 = vld [vmem:[#allocation2 + $0xd50] sm:$0xff]
    %v515 = vld [vmem:[#allocation2 + $0xd58] sm:$0xff]
    %v516 = vld [vmem:[#allocation2 + $0xd60] sm:$0xff]
    %v517 = vld [vmem:[#allocation2 + $0xd68] sm:$0xff]
    %v518 = vld [vmem:[#allocation2 + $0xd70] sm:$0xff]
    %v519 = vld [vmem:[#allocation2 + $0xd78] sm:$0xff]
    %v520 = vld [vmem:[#allocation2 + $0xd80] sm:$0xff]
    %v521 = vld [vmem:[#allocation2 + $0xd88] sm:$0xff]
    %v522 = vld [vmem:[#allocation2 + $0xd90] sm:$0xff]
    %v523 = vld [vmem:[#allocation2 + $0xd98] sm:$0xff]
    %v524 = vld [vmem:[#allocation2 + $0xda0] sm:$0xff]
    %v525 = vld [vmem:[#allocation2 + $0xda8] sm:$0xff]
    %v526 = vld [vmem:[#allocation2 + $0xdb0] sm:$0xff]
    %v527 = vld [vmem:[#allocation2 + $0xdb8] sm:$0xff]
    %v528 = vld [vmem:[#allocation2 + $0xdc0] sm:$0xff]
    %v529 = vld [vmem:[#allocation2 + $0xdc8] sm:$0xff]
    %v530 = vld [vmem:[#allocation2 + $0xdd0] sm:$0xff]
    %v531 = vld [vmem:[#allocation2 + $0xdd8] sm:$0xff]
    %v532 = vld [vmem:[#allocation2 + $0xde0] sm:$0xff]
    %v533 = vld [vmem:[#allocation2 + $0xde8] sm:$0xff]
    %v534 = vld [vmem:[#allocation2 + $0xdf0] sm:$0xff]
    %v535 = vld [vmem:[#allocation2 + $0xdf8] sm:$0xff]
    %v536 = vld [vmem:[#allocation2 + $0xe00] sm:$0xff]
    %v537 = vld [vmem:[#allocation2 + $0xe08] sm:$0xff]
    %v538 = vld [vmem:[#allocation2 + $0xe10] sm:$0xff]
    %v539 = vld [vmem:[#allocation2 + $0xe18] sm:$0xff]
    %v540 = vld [vmem:[#allocation2 + $0xe20] sm:$0xff]
    %v541 = vld [vmem:[#allocation2 + $0xe28] sm:$0xff]
    %v542 = vld [vmem:[#allocation2 + $0xe30] sm:$0xff]
    %v543 = vld [vmem:[#allocation2 + $0xe38] sm:$0xff]
    %v544 = vld [vmem:[#allocation2 + $0xe40] sm:$0xff]
    %v545 = vld [vmem:[#allocation2 + $0xe48] sm:$0xff]
    %v546 = vld [vmem:[#allocation2 + $0xe50] sm:$0xff]
    %v547 = vld [vmem:[#allocation2 + $0xe58] sm:$0xff]
    %v548 = vld [vmem:[#allocation2 + $0xe60] sm:$0xff]
    %v549 = vld [vmem:[#allocation2 + $0xe68] sm:$0xff]
    %v550 = vld [vmem:[#allocation2 + $0xe70] sm:$0xff]
    %v551 = vld [vmem:[#allocation2 + $0xe78] sm:$0xff]
    %v552 = vld [vmem:[#allocation2 + $0xe80] sm:$0xff]
    %v553 = vld [vmem:[#allocation2 + $0xe88] sm:$0xff]
    %v554 = vld [vmem:[#allocation2 + $0xe90] sm:$0xff]
    %v555 = vld [vmem:[#allocation2 + $0xe98] sm:$0xff]
    %v556 = vld [vmem:[#allocation2 + $0xea0] sm:$0xff]
    %v557 = vld [vmem:[#allocation2 + $0xea8] sm:$0xff]
    %v558 = vld [vmem:[#allocation2 + $0xeb0] sm:$0xff]
    %v559 = vld [vmem:[#allocation2 + $0xeb8] sm:$0xff]
    %v560 = vld [vmem:[#allocation2 + $0xec0] sm:$0xff]
    %v561 = vld [vmem:[#allocation2 + $0xec8] sm:$0xff]
    %v562 = vld [vmem:[#allocation2 + $0xed0] sm:$0xff]
    %v563 = vld [vmem:[#allocation2 + $0xed8] sm:$0xff]
    %v564 = vld [vmem:[#allocation2 + $0xee0] sm:$0xff]
    %v565 = vld [vmem:[#allocation2 + $0xee8] sm:$0xff]
    %v566 = vld [vmem:[#allocation2 + $0xef0] sm:$0xff]
    %v567 = vld [vmem:[#allocation2 + $0xef8] sm:$0xff]
    %v568 = vld [vmem:[#allocation2 + $0xf00] sm:$0xff]
    %v569 = vld [vmem:[#allocation2 + $0xf08] sm:$0xff]
    %v570 = vld [vmem:[#allocation2 + $0xf10] sm:$0xff]
    %v571 = vld [vmem:[#allocation2 + $0xf18] sm:$0xff]
    %v572 = vld [vmem:[#allocation2 + $0xf20] sm:$0xff]
    %v573 = vld [vmem:[#allocation2 + $0xf28] sm:$0xff]
    %v574 = vld [vmem:[#allocation2 + $0xf30] sm:$0xff]
    %v575 = vld [vmem:[#allocation2 + $0xf38] sm:$0xff]
    %v576 = vld [vmem:[#allocation2 + $0xf40] sm:$0xff]
    %v577 = vld [vmem:[#allocation2 + $0xf48] sm:$0xff]
    %v578 = vld [vmem:[#allocation2 + $0xf50] sm:$0xff]
    %v579 = vld [vmem:[#allocation2 + $0xf58] sm:$0xff]
    %v580 = vld [vmem:[#allocation2 + $0xf60] sm:$0xff]
    %v581 = vld [vmem:[#allocation2 + $0xf68] sm:$0xff]
    %v582 = vld [vmem:[#allocation2 + $0xf70] sm:$0xff]
    %v583 = vld [vmem:[#allocation2 + $0xf78] sm:$0xff]
    %v584 = vld [vmem:[#allocation2 + $0xf80] sm:$0xff]
    %v585 = vld [vmem:[#allocation2 + $0xf88] sm:$0xff]
    %v586 = vld [vmem:[#allocation2 + $0xf90] sm:$0xff]
    %v587 = vld [vmem:[#allocation2 + $0xf98] sm:$0xff]
    %v588 = vld [vmem:[#allocation2 + $0xfa0] sm:$0xff]
    %v589 = vld [vmem:[#allocation2 + $0xfa8] sm:$0xff]
    %v590 = vld [vmem:[#allocation2 + $0xfb0] sm:$0xff]
    %v591 = vld [vmem:[#allocation2 + $0xfb8] sm:$0xff]
    %v592 = vld [vmem:[#allocation2 + $0xfc0] sm:$0xff]
    %v593 = vld [vmem:[#allocation2 + $0xfc8] sm:$0xff]
    %v594 = vld [vmem:[#allocation2 + $0xfd0] sm:$0xff]
    %v595 = vld [vmem:[#allocation2 + $0xfd8] sm:$0xff]
    %v596 = vld [vmem:[#allocation2 + $0xfe0] sm:$0xff]
    %v597 = vld [vmem:[#allocation2 + $0xfe8] sm:$0xff]
    %v598 = vld [vmem:[#allocation2 + $0xff0] sm:$0xff]
    %v599 = vld [vmem:[#allocation2 + $0xff8] sm:$0xff]
    %v600 = vld [vmem:[#allocation4] sm:$0xf]
    %v602 = vlaneseq
    %v603 = vshrl.u32 %v602, 7
    %v604 = vsub.s32 0, %v603
    %v605 = vrot.slane %v600, %v604
    %v606 = vlaneseq
    %v607 = vshrl.u32 %v606, 7
    %v608 = vsub.s32 1, %v607
    %v609 = vrot.slane %v600, %v608
    %v610 = vlaneseq
    %v611 = vshrl.u32 %v610, 7
    %v612 = vsub.s32 2, %v611
    %v613 = vrot.slane %v600, %v612
    %v614 = vlaneseq
    %v615 = vshrl.u32 %v614, 7
    %v616 = vsub.s32 3, %v615
    %v617 = vrot.slane %v600, %v616
    %v638 = vunpack.c.l.b16 %v72
    %v639 = vunpack.c.h.b16 %v72
    %v640 = vunpack.c.l.b16 %v73
    %v641 = vunpack.c.h.b16 %v73
    %v642 = vunpack.c.l.b16 %v74
    %v643 = vunpack.c.h.b16 %v74
    %v644 = vunpack.c.l.b16 %v75
    %v645 = vunpack.c.h.b16 %v75
    %v646 = vunpack.c.l.b16 %v76
    %v647 = vunpack.c.h.b16 %v76
    %v648 = vunpack.c.l.b16 %v77
    %v649 = vunpack.c.h.b16 %v77
    %v650 = vunpack.c.l.b16 %v78
    %v651 = vunpack.c.h.b16 %v78
    %v652 = vunpack.c.l.b16 %v79
    %v653 = vunpack.c.h.b16 %v79
    %v654 = vunpack.c.l.b16 %v80
    %v655 = vunpack.c.h.b16 %v80
    %v656 = vunpack.c.l.b16 %v81
    %v657 = vunpack.c.h.b16 %v81
    %v658 = vunpack.c.l.b16 %v82
    %v659 = vunpack.c.h.b16 %v82
    %v660 = vunpack.c.l.b16 %v83
    %v661 = vunpack.c.h.b16 %v83
    %v662 = vunpack.c.l.b16 %v84
    %v663 = vunpack.c.h.b16 %v84
    %v664 = vunpack.c.l.b16 %v85
    %v665 = vunpack.c.h.b16 %v85
    %v666 = vunpack.c.l.b16 %v86
    %v667 = vunpack.c.h.b16 %v86
    %v668 = vunpack.c.l.b16 %v87
    %v669 = vunpack.c.h.b16 %v87
    %v670 = vpack.c.b16 %v654, %v638
    %v671 = vpack.c.b16 %v655, %v639
    %v672 = vpack.c.b16 %v656, %v640
    %v673 = vpack.c.b16 %v657, %v641
    %v674 = vpack.c.b16 %v658, %v642
    %v675 = vpack.c.b16 %v659, %v643
    %v676 = vpack.c.b16 %v660, %v644
    %v677 = vpack.c.b16 %v661, %v645
    %v678 = vpack.c.b16 %v662, %v646
    %v679 = vpack.c.b16 %v663, %v647
    %v680 = vpack.c.b16 %v664, %v648
    %v681 = vpack.c.b16 %v665, %v649
    %v682 = vpack.c.b16 %v666, %v650
    %v683 = vpack.c.b16 %v667, %v651
    %v684 = vpack.c.b16 %v668, %v652
    %v685 = vpack.c.b16 %v669, %v653
    %v1214 = vunpack.c.l.b16 %v88
    %v1215 = vunpack.c.h.b16 %v88
    %v1216 = vunpack.c.l.b16 %v89
    %v1217 = vunpack.c.h.b16 %v89
    %v1218 = vunpack.c.l.b16 %v90
    %v1219 = vunpack.c.h.b16 %v90
    %v1220 = vunpack.c.l.b16 %v91
    %v1221 = vunpack.c.h.b16 %v91
    %v1222 = vunpack.c.l.b16 %v92
    %v1223 = vunpack.c.h.b16 %v92
    %v1224 = vunpack.c.l.b16 %v93
    %v1225 = vunpack.c.h.b16 %v93
    %v1226 = vunpack.c.l.b16 %v94
    %v1227 = vunpack.c.h.b16 %v94
    %v1228 = vunpack.c.l.b16 %v95
    %v1229 = vunpack.c.h.b16 %v95
    %v1230 = vunpack.c.l.b16 %v96
    %v1231 = vunpack.c.h.b16 %v96
    %v1232 = vunpack.c.l.b16 %v97
    %v1233 = vunpack.c.h.b16 %v97
    %v1234 = vunpack.c.l.b16 %v98
    %v1235 = vunpack.c.h.b16 %v98
    %v1236 = vunpack.c.l.b16 %v99
    %v1237 = vunpack.c.h.b16 %v99
    %v1238 = vunpack.c.l.b16 %v100
    %v1239 = vunpack.c.h.b16 %v100
    %v1240 = vunpack.c.l.b16 %v101
    %v1241 = vunpack.c.h.b16 %v101
    %v1242 = vunpack.c.l.b16 %v102
    %v1243 = vunpack.c.h.b16 %v102
    %v1244 = vunpack.c.l.b16 %v103
    %v1245 = vunpack.c.h.b16 %v103
    %v1246 = vunpack.c.l.b16 %v104
    %v1247 = vunpack.c.h.b16 %v104
    %v1248 = vunpack.c.l.b16 %v105
    %v1249 = vunpack.c.h.b16 %v105
    %v1250 = vunpack.c.l.b16 %v106
    %v1251 = vunpack.c.h.b16 %v106
    %v1252 = vunpack.c.l.b16 %v107
    %v1253 = vunpack.c.h.b16 %v107
    %v1254 = vunpack.c.l.b16 %v108
    %v1255 = vunpack.c.h.b16 %v108
    %v1256 = vunpack.c.l.b16 %v109
    %v1257 = vunpack.c.h.b16 %v109
    %v1258 = vunpack.c.l.b16 %v110
    %v1259 = vunpack.c.h.b16 %v110
    %v1260 = vunpack.c.l.b16 %v111
    %v1261 = vunpack.c.h.b16 %v111
    %v1262 = vunpack.c.l.b16 %v112
    %v1263 = vunpack.c.h.b16 %v112
    %v1264 = vunpack.c.l.b16 %v113
    %v1265 = vunpack.c.h.b16 %v113
    %v1266 = vunpack.c.l.b16 %v114
    %v1267 = vunpack.c.h.b16 %v114
    %v1268 = vunpack.c.l.b16 %v115
    %v1269 = vunpack.c.h.b16 %v115
    %v1270 = vunpack.c.l.b16 %v116
    %v1271 = vunpack.c.h.b16 %v116
    %v1272 = vunpack.c.l.b16 %v117
    %v1273 = vunpack.c.h.b16 %v117
    %v1274 = vunpack.c.l.b16 %v118
    %v1275 = vunpack.c.h.b16 %v118
    %v1276 = vunpack.c.l.b16 %v119
    %v1277 = vunpack.c.h.b16 %v119
    %v1278 = vunpack.c.l.b16 %v120
    %v1279 = vunpack.c.h.b16 %v120
    %v1280 = vunpack.c.l.b16 %v121
    %v1281 = vunpack.c.h.b16 %v121
    %v1282 = vunpack.c.l.b16 %v122
    %v1283 = vunpack.c.h.b16 %v122
    %v1284 = vunpack.c.l.b16 %v123
    %v1285 = vunpack.c.h.b16 %v123
    %v1286 = vunpack.c.l.b16 %v124
    %v1287 = vunpack.c.h.b16 %v124
    %v1288 = vunpack.c.l.b16 %v125
    %v1289 = vunpack.c.h.b16 %v125
    %v1290 = vunpack.c.l.b16 %v126
    %v1291 = vunpack.c.h.b16 %v126
    %v1292 = vunpack.c.l.b16 %v127
    %v1293 = vunpack.c.h.b16 %v127
    %v1294 = vunpack.c.l.b16 %v128
    %v1295 = vunpack.c.h.b16 %v128
    %v1296 = vunpack.c.l.b16 %v129
    %v1297 = vunpack.c.h.b16 %v129
    %v1298 = vunpack.c.l.b16 %v130
    %v1299 = vunpack.c.h.b16 %v130
    %v1300 = vunpack.c.l.b16 %v131
    %v1301 = vunpack.c.h.b16 %v131
    %v1302 = vunpack.c.l.b16 %v132
    %v1303 = vunpack.c.h.b16 %v132
    %v1304 = vunpack.c.l.b16 %v133
    %v1305 = vunpack.c.h.b16 %v133
    %v1306 = vunpack.c.l.b16 %v134
    %v1307 = vunpack.c.h.b16 %v134
    %v1308 = vunpack.c.l.b16 %v135
    %v1309 = vunpack.c.h.b16 %v135
    %v1310 = vunpack.c.l.b16 %v136
    %v1311 = vunpack.c.h.b16 %v136
    %v1312 = vunpack.c.l.b16 %v137
    %v1313 = vunpack.c.h.b16 %v137
    %v1314 = vunpack.c.l.b16 %v138
    %v1315 = vunpack.c.h.b16 %v138
    %v1316 = vunpack.c.l.b16 %v139
    %v1317 = vunpack.c.h.b16 %v139
    %v1318 = vunpack.c.l.b16 %v140
    %v1319 = vunpack.c.h.b16 %v140
    %v1320 = vunpack.c.l.b16 %v141
    %v1321 = vunpack.c.h.b16 %v141
    %v1322 = vunpack.c.l.b16 %v142
    %v1323 = vunpack.c.h.b16 %v142
    %v1324 = vunpack.c.l.b16 %v143
    %v1325 = vunpack.c.h.b16 %v143
    %v1326 = vunpack.c.l.b16 %v144
    %v1327 = vunpack.c.h.b16 %v144
    %v1328 = vunpack.c.l.b16 %v145
    %v1329 = vunpack.c.h.b16 %v145
    %v1330 = vunpack.c.l.b16 %v146
    %v1331 = vunpack.c.h.b16 %v146
    %v1332 = vunpack.c.l.b16 %v147
    %v1333 = vunpack.c.h.b16 %v147
    %v1334 = vunpack.c.l.b16 %v148
    %v1335 = vunpack.c.h.b16 %v148
    %v1336 = vunpack.c.l.b16 %v149
    %v1337 = vunpack.c.h.b16 %v149
    %v1338 = vunpack.c.l.b16 %v150
    %v1339 = vunpack.c.h.b16 %v150
    %v1340 = vunpack.c.l.b16 %v151
    %v1341 = vunpack.c.h.b16 %v151
    %v1342 = vunpack.c.l.b16 %v152
    %v1343 = vunpack.c.h.b16 %v152
    %v1344 = vunpack.c.l.b16 %v153
    %v1345 = vunpack.c.h.b16 %v153
    %v1346 = vunpack.c.l.b16 %v154
    %v1347 = vunpack.c.h.b16 %v154
    %v1348 = vunpack.c.l.b16 %v155
    %v1349 = vunpack.c.h.b16 %v155
    %v1350 = vunpack.c.l.b16 %v156
    %v1351 = vunpack.c.h.b16 %v156
    %v1352 = vunpack.c.l.b16 %v157
    %v1353 = vunpack.c.h.b16 %v157
    %v1354 = vunpack.c.l.b16 %v158
    %v1355 = vunpack.c.h.b16 %v158
    %v1356 = vunpack.c.l.b16 %v159
    %v1357 = vunpack.c.h.b16 %v159
    %v1358 = vunpack.c.l.b16 %v160
    %v1359 = vunpack.c.h.b16 %v160
    %v1360 = vunpack.c.l.b16 %v161
    %v1361 = vunpack.c.h.b16 %v161
    %v1362 = vunpack.c.l.b16 %v162
    %v1363 = vunpack.c.h.b16 %v162
    %v1364 = vunpack.c.l.b16 %v163
    %v1365 = vunpack.c.h.b16 %v163
    %v1366 = vunpack.c.l.b16 %v164
    %v1367 = vunpack.c.h.b16 %v164
    %v1368 = vunpack.c.l.b16 %v165
    %v1369 = vunpack.c.h.b16 %v165
    %v1370 = vunpack.c.l.b16 %v166
    %v1371 = vunpack.c.h.b16 %v166
    %v1372 = vunpack.c.l.b16 %v167
    %v1373 = vunpack.c.h.b16 %v167
    %v1374 = vunpack.c.l.b16 %v168
    %v1375 = vunpack.c.h.b16 %v168
    %v1376 = vunpack.c.l.b16 %v169
    %v1377 = vunpack.c.h.b16 %v169
    %v1378 = vunpack.c.l.b16 %v170
    %v1379 = vunpack.c.h.b16 %v170
    %v1380 = vunpack.c.l.b16 %v171
    %v1381 = vunpack.c.h.b16 %v171
    %v1382 = vunpack.c.l.b16 %v172
    %v1383 = vunpack.c.h.b16 %v172
    %v1384 = vunpack.c.l.b16 %v173
    %v1385 = vunpack.c.h.b16 %v173
    %v1386 = vunpack.c.l.b16 %v174
    %v1387 = vunpack.c.h.b16 %v174
    %v1388 = vunpack.c.l.b16 %v175
    %v1389 = vunpack.c.h.b16 %v175
    %v1390 = vunpack.c.l.b16 %v176
    %v1391 = vunpack.c.h.b16 %v176
    %v1392 = vunpack.c.l.b16 %v177
    %v1393 = vunpack.c.h.b16 %v177
    %v1394 = vunpack.c.l.b16 %v178
    %v1395 = vunpack.c.h.b16 %v178
    %v1396 = vunpack.c.l.b16 %v179
    %v1397 = vunpack.c.h.b16 %v179
    %v1398 = vunpack.c.l.b16 %v180
    %v1399 = vunpack.c.h.b16 %v180
    %v1400 = vunpack.c.l.b16 %v181
    %v1401 = vunpack.c.h.b16 %v181
    %v1402 = vunpack.c.l.b16 %v182
    %v1403 = vunpack.c.h.b16 %v182
    %v1404 = vunpack.c.l.b16 %v183
    %v1405 = vunpack.c.h.b16 %v183
    %v1406 = vunpack.c.l.b16 %v184
    %v1407 = vunpack.c.h.b16 %v184
    %v1408 = vunpack.c.l.b16 %v185
    %v1409 = vunpack.c.h.b16 %v185
    %v1410 = vunpack.c.l.b16 %v186
    %v1411 = vunpack.c.h.b16 %v186
    %v1412 = vunpack.c.l.b16 %v187
    %v1413 = vunpack.c.h.b16 %v187
    %v1414 = vunpack.c.l.b16 %v188
    %v1415 = vunpack.c.h.b16 %v188
    %v1416 = vunpack.c.l.b16 %v189
    %v1417 = vunpack.c.h.b16 %v189
    %v1418 = vunpack.c.l.b16 %v190
    %v1419 = vunpack.c.h.b16 %v190
    %v1420 = vunpack.c.l.b16 %v191
    %v1421 = vunpack.c.h.b16 %v191
    %v1422 = vunpack.c.l.b16 %v192
    %v1423 = vunpack.c.h.b16 %v192
    %v1424 = vunpack.c.l.b16 %v193
    %v1425 = vunpack.c.h.b16 %v193
    %v1426 = vunpack.c.l.b16 %v194
    %v1427 = vunpack.c.h.b16 %v194
    %v1428 = vunpack.c.l.b16 %v195
    %v1429 = vunpack.c.h.b16 %v195
    %v1430 = vunpack.c.l.b16 %v196
    %v1431 = vunpack.c.h.b16 %v196
    %v1432 = vunpack.c.l.b16 %v197
    %v1433 = vunpack.c.h.b16 %v197
    %v1434 = vunpack.c.l.b16 %v198
    %v1435 = vunpack.c.h.b16 %v198
    %v1436 = vunpack.c.l.b16 %v199
    %v1437 = vunpack.c.h.b16 %v199
    %v1438 = vunpack.c.l.b16 %v200
    %v1439 = vunpack.c.h.b16 %v200
    %v1440 = vunpack.c.l.b16 %v201
    %v1441 = vunpack.c.h.b16 %v201
    %v1442 = vunpack.c.l.b16 %v202
    %v1443 = vunpack.c.h.b16 %v202
    %v1444 = vunpack.c.l.b16 %v203
    %v1445 = vunpack.c.h.b16 %v203
    %v1446 = vunpack.c.l.b16 %v204
    %v1447 = vunpack.c.h.b16 %v204
    %v1448 = vunpack.c.l.b16 %v205
    %v1449 = vunpack.c.h.b16 %v205
    %v1450 = vunpack.c.l.b16 %v206
    %v1451 = vunpack.c.h.b16 %v206
    %v1452 = vunpack.c.l.b16 %v207
    %v1453 = vunpack.c.h.b16 %v207
    %v1454 = vunpack.c.l.b16 %v208
    %v1455 = vunpack.c.h.b16 %v208
    %v1456 = vunpack.c.l.b16 %v209
    %v1457 = vunpack.c.h.b16 %v209
    %v1458 = vunpack.c.l.b16 %v210
    %v1459 = vunpack.c.h.b16 %v210
    %v1460 = vunpack.c.l.b16 %v211
    %v1461 = vunpack.c.h.b16 %v211
    %v1462 = vunpack.c.l.b16 %v212
    %v1463 = vunpack.c.h.b16 %v212
    %v1464 = vunpack.c.l.b16 %v213
    %v1465 = vunpack.c.h.b16 %v213
    %v1466 = vunpack.c.l.b16 %v214
    %v1467 = vunpack.c.h.b16 %v214
    %v1468 = vunpack.c.l.b16 %v215
    %v1469 = vunpack.c.h.b16 %v215
    %v1470 = vunpack.c.l.b16 %v216
    %v1471 = vunpack.c.h.b16 %v216
    %v1472 = vunpack.c.l.b16 %v217
    %v1473 = vunpack.c.h.b16 %v217
    %v1474 = vunpack.c.l.b16 %v218
    %v1475 = vunpack.c.h.b16 %v218
    %v1476 = vunpack.c.l.b16 %v219
    %v1477 = vunpack.c.h.b16 %v219
    %v1478 = vunpack.c.l.b16 %v220
    %v1479 = vunpack.c.h.b16 %v220
    %v1480 = vunpack.c.l.b16 %v221
    %v1481 = vunpack.c.h.b16 %v221
    %v1482 = vunpack.c.l.b16 %v222
    %v1483 = vunpack.c.h.b16 %v222
    %v1484 = vunpack.c.l.b16 %v223
    %v1485 = vunpack.c.h.b16 %v223
    %v1486 = vunpack.c.l.b16 %v224
    %v1487 = vunpack.c.h.b16 %v224
    %v1488 = vunpack.c.l.b16 %v225
    %v1489 = vunpack.c.h.b16 %v225
    %v1490 = vunpack.c.l.b16 %v226
    %v1491 = vunpack.c.h.b16 %v226
    %v1492 = vunpack.c.l.b16 %v227
    %v1493 = vunpack.c.h.b16 %v227
    %v1494 = vunpack.c.l.b16 %v228
    %v1495 = vunpack.c.h.b16 %v228
    %v1496 = vunpack.c.l.b16 %v229
    %v1497 = vunpack.c.h.b16 %v229
    %v1498 = vunpack.c.l.b16 %v230
    %v1499 = vunpack.c.h.b16 %v230
    %v1500 = vunpack.c.l.b16 %v231
    %v1501 = vunpack.c.h.b16 %v231
    %v1502 = vunpack.c.l.b16 %v232
    %v1503 = vunpack.c.h.b16 %v232
    %v1504 = vunpack.c.l.b16 %v233
    %v1505 = vunpack.c.h.b16 %v233
    %v1506 = vunpack.c.l.b16 %v234
    %v1507 = vunpack.c.h.b16 %v234
    %v1508 = vunpack.c.l.b16 %v235
    %v1509 = vunpack.c.h.b16 %v235
    %v1510 = vunpack.c.l.b16 %v236
    %v1511 = vunpack.c.h.b16 %v236
    %v1512 = vunpack.c.l.b16 %v237
    %v1513 = vunpack.c.h.b16 %v237
    %v1514 = vunpack.c.l.b16 %v238
    %v1515 = vunpack.c.h.b16 %v238
    %v1516 = vunpack.c.l.b16 %v239
    %v1517 = vunpack.c.h.b16 %v239
    %v1518 = vunpack.c.l.b16 %v240
    %v1519 = vunpack.c.h.b16 %v240
    %v1520 = vunpack.c.l.b16 %v241
    %v1521 = vunpack.c.h.b16 %v241
    %v1522 = vunpack.c.l.b16 %v242
    %v1523 = vunpack.c.h.b16 %v242
    %v1524 = vunpack.c.l.b16 %v243
    %v1525 = vunpack.c.h.b16 %v243
    %v1526 = vunpack.c.l.b16 %v244
    %v1527 = vunpack.c.h.b16 %v244
    %v1528 = vunpack.c.l.b16 %v245
    %v1529 = vunpack.c.h.b16 %v245
    %v1530 = vunpack.c.l.b16 %v246
    %v1531 = vunpack.c.h.b16 %v246
    %v1532 = vunpack.c.l.b16 %v247
    %v1533 = vunpack.c.h.b16 %v247
    %v1534 = vunpack.c.l.b16 %v248
    %v1535 = vunpack.c.h.b16 %v248
    %v1536 = vunpack.c.l.b16 %v249
    %v1537 = vunpack.c.h.b16 %v249
    %v1538 = vunpack.c.l.b16 %v250
    %v1539 = vunpack.c.h.b16 %v250
    %v1540 = vunpack.c.l.b16 %v251
    %v1541 = vunpack.c.h.b16 %v251
    %v1542 = vunpack.c.l.b16 %v252
    %v1543 = vunpack.c.h.b16 %v252
    %v1544 = vunpack.c.l.b16 %v253
    %v1545 = vunpack.c.h.b16 %v253
    %v1546 = vunpack.c.l.b16 %v254
    %v1547 = vunpack.c.h.b16 %v254
    %v1548 = vunpack.c.l.b16 %v255
    %v1549 = vunpack.c.h.b16 %v255
    %v1550 = vunpack.c.l.b16 %v256
    %v1551 = vunpack.c.h.b16 %v256
    %v1552 = vunpack.c.l.b16 %v257
    %v1553 = vunpack.c.h.b16 %v257
    %v1554 = vunpack.c.l.b16 %v258
    %v1555 = vunpack.c.h.b16 %v258
    %v1556 = vunpack.c.l.b16 %v259
    %v1557 = vunpack.c.h.b16 %v259
    %v1558 = vunpack.c.l.b16 %v260
    %v1559 = vunpack.c.h.b16 %v260
    %v1560 = vunpack.c.l.b16 %v261
    %v1561 = vunpack.c.h.b16 %v261
    %v1562 = vunpack.c.l.b16 %v262
    %v1563 = vunpack.c.h.b16 %v262
    %v1564 = vunpack.c.l.b16 %v263
    %v1565 = vunpack.c.h.b16 %v263
    %v1566 = vunpack.c.l.b16 %v264
    %v1567 = vunpack.c.h.b16 %v264
    %v1568 = vunpack.c.l.b16 %v265
    %v1569 = vunpack.c.h.b16 %v265
    %v1570 = vunpack.c.l.b16 %v266
    %v1571 = vunpack.c.h.b16 %v266
    %v1572 = vunpack.c.l.b16 %v267
    %v1573 = vunpack.c.h.b16 %v267
    %v1574 = vunpack.c.l.b16 %v268
    %v1575 = vunpack.c.h.b16 %v268
    %v1576 = vunpack.c.l.b16 %v269
    %v1577 = vunpack.c.h.b16 %v269
    %v1578 = vunpack.c.l.b16 %v270
    %v1579 = vunpack.c.h.b16 %v270
    %v1580 = vunpack.c.l.b16 %v271
    %v1581 = vunpack.c.h.b16 %v271
    %v1582 = vunpack.c.l.b16 %v272
    %v1583 = vunpack.c.h.b16 %v272
    %v1584 = vunpack.c.l.b16 %v273
    %v1585 = vunpack.c.h.b16 %v273
    %v1586 = vunpack.c.l.b16 %v274
    %v1587 = vunpack.c.h.b16 %v274
    %v1588 = vunpack.c.l.b16 %v275
    %v1589 = vunpack.c.h.b16 %v275
    %v1590 = vunpack.c.l.b16 %v276
    %v1591 = vunpack.c.h.b16 %v276
    %v1592 = vunpack.c.l.b16 %v277
    %v1593 = vunpack.c.h.b16 %v277
    %v1594 = vunpack.c.l.b16 %v278
    %v1595 = vunpack.c.h.b16 %v278
    %v1596 = vunpack.c.l.b16 %v279
    %v1597 = vunpack.c.h.b16 %v279
    %v1598 = vunpack.c.l.b16 %v280
    %v1599 = vunpack.c.h.b16 %v280
    %v1600 = vunpack.c.l.b16 %v281
    %v1601 = vunpack.c.h.b16 %v281
    %v1602 = vunpack.c.l.b16 %v282
    %v1603 = vunpack.c.h.b16 %v282
    %v1604 = vunpack.c.l.b16 %v283
    %v1605 = vunpack.c.h.b16 %v283
    %v1606 = vunpack.c.l.b16 %v284
    %v1607 = vunpack.c.h.b16 %v284
    %v1608 = vunpack.c.l.b16 %v285
    %v1609 = vunpack.c.h.b16 %v285
    %v1610 = vunpack.c.l.b16 %v286
    %v1611 = vunpack.c.h.b16 %v286
    %v1612 = vunpack.c.l.b16 %v287
    %v1613 = vunpack.c.h.b16 %v287
    %v1614 = vunpack.c.l.b16 %v288
    %v1615 = vunpack.c.h.b16 %v288
    %v1616 = vunpack.c.l.b16 %v289
    %v1617 = vunpack.c.h.b16 %v289
    %v1618 = vunpack.c.l.b16 %v290
    %v1619 = vunpack.c.h.b16 %v290
    %v1620 = vunpack.c.l.b16 %v291
    %v1621 = vunpack.c.h.b16 %v291
    %v1622 = vunpack.c.l.b16 %v292
    %v1623 = vunpack.c.h.b16 %v292
    %v1624 = vunpack.c.l.b16 %v293
    %v1625 = vunpack.c.h.b16 %v293
    %v1626 = vunpack.c.l.b16 %v294
    %v1627 = vunpack.c.h.b16 %v294
    %v1628 = vunpack.c.l.b16 %v295
    %v1629 = vunpack.c.h.b16 %v295
    %v1630 = vunpack.c.l.b16 %v296
    %v1631 = vunpack.c.h.b16 %v296
    %v1632 = vunpack.c.l.b16 %v297
    %v1633 = vunpack.c.h.b16 %v297
    %v1634 = vunpack.c.l.b16 %v298
    %v1635 = vunpack.c.h.b16 %v298
    %v1636 = vunpack.c.l.b16 %v299
    %v1637 = vunpack.c.h.b16 %v299
    %v1638 = vunpack.c.l.b16 %v300
    %v1639 = vunpack.c.h.b16 %v300
    %v1640 = vunpack.c.l.b16 %v301
    %v1641 = vunpack.c.h.b16 %v301
    %v1642 = vunpack.c.l.b16 %v302
    %v1643 = vunpack.c.h.b16 %v302
    %v1644 = vunpack.c.l.b16 %v303
    %v1645 = vunpack.c.h.b16 %v303
    %v1646 = vunpack.c.l.b16 %v304
    %v1647 = vunpack.c.h.b16 %v304
    %v1648 = vunpack.c.l.b16 %v305
    %v1649 = vunpack.c.h.b16 %v305
    %v1650 = vunpack.c.l.b16 %v306
    %v1651 = vunpack.c.h.b16 %v306
    %v1652 = vunpack.c.l.b16 %v307
    %v1653 = vunpack.c.h.b16 %v307
    %v1654 = vunpack.c.l.b16 %v308
    %v1655 = vunpack.c.h.b16 %v308
    %v1656 = vunpack.c.l.b16 %v309
    %v1657 = vunpack.c.h.b16 %v309
    %v1658 = vunpack.c.l.b16 %v310
    %v1659 = vunpack.c.h.b16 %v310
    %v1660 = vunpack.c.l.b16 %v311
    %v1661 = vunpack.c.h.b16 %v311
    %v1662 = vunpack.c.l.b16 %v312
    %v1663 = vunpack.c.h.b16 %v312
    %v1664 = vunpack.c.l.b16 %v313
    %v1665 = vunpack.c.h.b16 %v313
    %v1666 = vunpack.c.l.b16 %v314
    %v1667 = vunpack.c.h.b16 %v314
    %v1668 = vunpack.c.l.b16 %v315
    %v1669 = vunpack.c.h.b16 %v315
    %v1670 = vunpack.c.l.b16 %v316
    %v1671 = vunpack.c.h.b16 %v316
    %v1672 = vunpack.c.l.b16 %v317
    %v1673 = vunpack.c.h.b16 %v317
    %v1674 = vunpack.c.l.b16 %v318
    %v1675 = vunpack.c.h.b16 %v318
    %v1676 = vunpack.c.l.b16 %v319
    %v1677 = vunpack.c.h.b16 %v319
    %v1678 = vunpack.c.l.b16 %v320
    %v1679 = vunpack.c.h.b16 %v320
    %v1680 = vunpack.c.l.b16 %v321
    %v1681 = vunpack.c.h.b16 %v321
    %v1682 = vunpack.c.l.b16 %v322
    %v1683 = vunpack.c.h.b16 %v322
    %v1684 = vunpack.c.l.b16 %v323
    %v1685 = vunpack.c.h.b16 %v323
    %v1686 = vunpack.c.l.b16 %v324
    %v1687 = vunpack.c.h.b16 %v324
    %v1688 = vunpack.c.l.b16 %v325
    %v1689 = vunpack.c.h.b16 %v325
    %v1690 = vunpack.c.l.b16 %v326
    %v1691 = vunpack.c.h.b16 %v326
    %v1692 = vunpack.c.l.b16 %v327
    %v1693 = vunpack.c.h.b16 %v327
    %v1694 = vunpack.c.l.b16 %v328
    %v1695 = vunpack.c.h.b16 %v328
    %v1696 = vunpack.c.l.b16 %v329
    %v1697 = vunpack.c.h.b16 %v329
    %v1698 = vunpack.c.l.b16 %v330
    %v1699 = vunpack.c.h.b16 %v330
    %v1700 = vunpack.c.l.b16 %v331
    %v1701 = vunpack.c.h.b16 %v331
    %v1702 = vunpack.c.l.b16 %v332
    %v1703 = vunpack.c.h.b16 %v332
    %v1704 = vunpack.c.l.b16 %v333
    %v1705 = vunpack.c.h.b16 %v333
    %v1706 = vunpack.c.l.b16 %v334
    %v1707 = vunpack.c.h.b16 %v334
    %v1708 = vunpack.c.l.b16 %v335
    %v1709 = vunpack.c.h.b16 %v335
    %v1710 = vunpack.c.l.b16 %v336
    %v1711 = vunpack.c.h.b16 %v336
    %v1712 = vunpack.c.l.b16 %v337
    %v1713 = vunpack.c.h.b16 %v337
    %v1714 = vunpack.c.l.b16 %v338
    %v1715 = vunpack.c.h.b16 %v338
    %v1716 = vunpack.c.l.b16 %v339
    %v1717 = vunpack.c.h.b16 %v339
    %v1718 = vunpack.c.l.b16 %v340
    %v1719 = vunpack.c.h.b16 %v340
    %v1720 = vunpack.c.l.b16 %v341
    %v1721 = vunpack.c.h.b16 %v341
    %v1722 = vunpack.c.l.b16 %v342
    %v1723 = vunpack.c.h.b16 %v342
    %v1724 = vunpack.c.l.b16 %v343
    %v1725 = vunpack.c.h.b16 %v343
    %v1726 = vunpack.c.l.b16 %v344
    %v1727 = vunpack.c.h.b16 %v344
    %v1728 = vunpack.c.l.b16 %v345
    %v1729 = vunpack.c.h.b16 %v345
    %v1730 = vunpack.c.l.b16 %v346
    %v1731 = vunpack.c.h.b16 %v346
    %v1732 = vunpack.c.l.b16 %v347
    %v1733 = vunpack.c.h.b16 %v347
    %v1734 = vunpack.c.l.b16 %v348
    %v1735 = vunpack.c.h.b16 %v348
    %v1736 = vunpack.c.l.b16 %v349
    %v1737 = vunpack.c.h.b16 %v349
    %v1738 = vunpack.c.l.b16 %v350
    %v1739 = vunpack.c.h.b16 %v350
    %v1740 = vunpack.c.l.b16 %v351
    %v1741 = vunpack.c.h.b16 %v351
    %v1742 = vunpack.c.l.b16 %v352
    %v1743 = vunpack.c.h.b16 %v352
    %v1744 = vunpack.c.l.b16 %v353
    %v1745 = vunpack.c.h.b16 %v353
    %v1746 = vunpack.c.l.b16 %v354
    %v1747 = vunpack.c.h.b16 %v354
    %v1748 = vunpack.c.l.b16 %v355
    %v1749 = vunpack.c.h.b16 %v355
    %v1750 = vunpack.c.l.b16 %v356
    %v1751 = vunpack.c.h.b16 %v356
    %v1752 = vunpack.c.l.b16 %v357
    %v1753 = vunpack.c.h.b16 %v357
    %v1754 = vunpack.c.l.b16 %v358
    %v1755 = vunpack.c.h.b16 %v358
    %v1756 = vunpack.c.l.b16 %v359
    %v1757 = vunpack.c.h.b16 %v359
    %v1758 = vunpack.c.l.b16 %v360
    %v1759 = vunpack.c.h.b16 %v360
    %v1760 = vunpack.c.l.b16 %v361
    %v1761 = vunpack.c.h.b16 %v361
    %v1762 = vunpack.c.l.b16 %v362
    %v1763 = vunpack.c.h.b16 %v362
    %v1764 = vunpack.c.l.b16 %v363
    %v1765 = vunpack.c.h.b16 %v363
    %v1766 = vunpack.c.l.b16 %v364
    %v1767 = vunpack.c.h.b16 %v364
    %v1768 = vunpack.c.l.b16 %v365
    %v1769 = vunpack.c.h.b16 %v365
    %v1770 = vunpack.c.l.b16 %v366
    %v1771 = vunpack.c.h.b16 %v366
    %v1772 = vunpack.c.l.b16 %v367
    %v1773 = vunpack.c.h.b16 %v367
    %v1774 = vunpack.c.l.b16 %v368
    %v1775 = vunpack.c.h.b16 %v368
    %v1776 = vunpack.c.l.b16 %v369
    %v1777 = vunpack.c.h.b16 %v369
    %v1778 = vunpack.c.l.b16 %v370
    %v1779 = vunpack.c.h.b16 %v370
    %v1780 = vunpack.c.l.b16 %v371
    %v1781 = vunpack.c.h.b16 %v371
    %v1782 = vunpack.c.l.b16 %v372
    %v1783 = vunpack.c.h.b16 %v372
    %v1784 = vunpack.c.l.b16 %v373
    %v1785 = vunpack.c.h.b16 %v373
    %v1786 = vunpack.c.l.b16 %v374
    %v1787 = vunpack.c.h.b16 %v374
    %v1788 = vunpack.c.l.b16 %v375
    %v1789 = vunpack.c.h.b16 %v375
    %v1790 = vunpack.c.l.b16 %v376
    %v1791 = vunpack.c.h.b16 %v376
    %v1792 = vunpack.c.l.b16 %v377
    %v1793 = vunpack.c.h.b16 %v377
    %v1794 = vunpack.c.l.b16 %v378
    %v1795 = vunpack.c.h.b16 %v378
    %v1796 = vunpack.c.l.b16 %v379
    %v1797 = vunpack.c.h.b16 %v379
    %v1798 = vunpack.c.l.b16 %v380
    %v1799 = vunpack.c.h.b16 %v380
    %v1800 = vunpack.c.l.b16 %v381
    %v1801 = vunpack.c.h.b16 %v381
    %v1802 = vunpack.c.l.b16 %v382
    %v1803 = vunpack.c.h.b16 %v382
    %v1804 = vunpack.c.l.b16 %v383
    %v1805 = vunpack.c.h.b16 %v383
    %v1806 = vunpack.c.l.b16 %v384
    %v1807 = vunpack.c.h.b16 %v384
    %v1808 = vunpack.c.l.b16 %v385
    %v1809 = vunpack.c.h.b16 %v385
    %v1810 = vunpack.c.l.b16 %v386
    %v1811 = vunpack.c.h.b16 %v386
    %v1812 = vunpack.c.l.b16 %v387
    %v1813 = vunpack.c.h.b16 %v387
    %v1814 = vunpack.c.l.b16 %v388
    %v1815 = vunpack.c.h.b16 %v388
    %v1816 = vunpack.c.l.b16 %v389
    %v1817 = vunpack.c.h.b16 %v389
    %v1818 = vunpack.c.l.b16 %v390
    %v1819 = vunpack.c.h.b16 %v390
    %v1820 = vunpack.c.l.b16 %v391
    %v1821 = vunpack.c.h.b16 %v391
    %v1822 = vunpack.c.l.b16 %v392
    %v1823 = vunpack.c.h.b16 %v392
    %v1824 = vunpack.c.l.b16 %v393
    %v1825 = vunpack.c.h.b16 %v393
    %v1826 = vunpack.c.l.b16 %v394
    %v1827 = vunpack.c.h.b16 %v394
    %v1828 = vunpack.c.l.b16 %v395
    %v1829 = vunpack.c.h.b16 %v395
    %v1830 = vunpack.c.l.b16 %v396
    %v1831 = vunpack.c.h.b16 %v396
    %v1832 = vunpack.c.l.b16 %v397
    %v1833 = vunpack.c.h.b16 %v397
    %v1834 = vunpack.c.l.b16 %v398
    %v1835 = vunpack.c.h.b16 %v398
    %v1836 = vunpack.c.l.b16 %v399
    %v1837 = vunpack.c.h.b16 %v399
    %v1838 = vunpack.c.l.b16 %v400
    %v1839 = vunpack.c.h.b16 %v400
    %v1840 = vunpack.c.l.b16 %v401
    %v1841 = vunpack.c.h.b16 %v401
    %v1842 = vunpack.c.l.b16 %v402
    %v1843 = vunpack.c.h.b16 %v402
    %v1844 = vunpack.c.l.b16 %v403
    %v1845 = vunpack.c.h.b16 %v403
    %v1846 = vunpack.c.l.b16 %v404
    %v1847 = vunpack.c.h.b16 %v404
    %v1848 = vunpack.c.l.b16 %v405
    %v1849 = vunpack.c.h.b16 %v405
    %v1850 = vunpack.c.l.b16 %v406
    %v1851 = vunpack.c.h.b16 %v406
    %v1852 = vunpack.c.l.b16 %v407
    %v1853 = vunpack.c.h.b16 %v407
    %v1854 = vunpack.c.l.b16 %v408
    %v1855 = vunpack.c.h.b16 %v408
    %v1856 = vunpack.c.l.b16 %v409
    %v1857 = vunpack.c.h.b16 %v409
    %v1858 = vunpack.c.l.b16 %v410
    %v1859 = vunpack.c.h.b16 %v410
    %v1860 = vunpack.c.l.b16 %v411
    %v1861 = vunpack.c.h.b16 %v411
    %v1862 = vunpack.c.l.b16 %v412
    %v1863 = vunpack.c.h.b16 %v412
    %v1864 = vunpack.c.l.b16 %v413
    %v1865 = vunpack.c.h.b16 %v413
    %v1866 = vunpack.c.l.b16 %v414
    %v1867 = vunpack.c.h.b16 %v414
    %v1868 = vunpack.c.l.b16 %v415
    %v1869 = vunpack.c.h.b16 %v415
    %v1870 = vunpack.c.l.b16 %v416
    %v1871 = vunpack.c.h.b16 %v416
    %v1872 = vunpack.c.l.b16 %v417
    %v1873 = vunpack.c.h.b16 %v417
    %v1874 = vunpack.c.l.b16 %v418
    %v1875 = vunpack.c.h.b16 %v418
    %v1876 = vunpack.c.l.b16 %v419
    %v1877 = vunpack.c.h.b16 %v419
    %v1878 = vunpack.c.l.b16 %v420
    %v1879 = vunpack.c.h.b16 %v420
    %v1880 = vunpack.c.l.b16 %v421
    %v1881 = vunpack.c.h.b16 %v421
    %v1882 = vunpack.c.l.b16 %v422
    %v1883 = vunpack.c.h.b16 %v422
    %v1884 = vunpack.c.l.b16 %v423
    %v1885 = vunpack.c.h.b16 %v423
    %v1886 = vunpack.c.l.b16 %v424
    %v1887 = vunpack.c.h.b16 %v424
    %v1888 = vunpack.c.l.b16 %v425
    %v1889 = vunpack.c.h.b16 %v425
    %v1890 = vunpack.c.l.b16 %v426
    %v1891 = vunpack.c.h.b16 %v426
    %v1892 = vunpack.c.l.b16 %v427
    %v1893 = vunpack.c.h.b16 %v427
    %v1894 = vunpack.c.l.b16 %v428
    %v1895 = vunpack.c.h.b16 %v428
    %v1896 = vunpack.c.l.b16 %v429
    %v1897 = vunpack.c.h.b16 %v429
    %v1898 = vunpack.c.l.b16 %v430
    %v1899 = vunpack.c.h.b16 %v430
    %v1900 = vunpack.c.l.b16 %v431
    %v1901 = vunpack.c.h.b16 %v431
    %v1902 = vunpack.c.l.b16 %v432
    %v1903 = vunpack.c.h.b16 %v432
    %v1904 = vunpack.c.l.b16 %v433
    %v1905 = vunpack.c.h.b16 %v433
    %v1906 = vunpack.c.l.b16 %v434
    %v1907 = vunpack.c.h.b16 %v434
    %v1908 = vunpack.c.l.b16 %v435
    %v1909 = vunpack.c.h.b16 %v435
    %v1910 = vunpack.c.l.b16 %v436
    %v1911 = vunpack.c.h.b16 %v436
    %v1912 = vunpack.c.l.b16 %v437
    %v1913 = vunpack.c.h.b16 %v437
    %v1914 = vunpack.c.l.b16 %v438
    %v1915 = vunpack.c.h.b16 %v438
    %v1916 = vunpack.c.l.b16 %v439
    %v1917 = vunpack.c.h.b16 %v439
    %v1918 = vunpack.c.l.b16 %v440
    %v1919 = vunpack.c.h.b16 %v440
    %v1920 = vunpack.c.l.b16 %v441
    %v1921 = vunpack.c.h.b16 %v441
    %v1922 = vunpack.c.l.b16 %v442
    %v1923 = vunpack.c.h.b16 %v442
    %v1924 = vunpack.c.l.b16 %v443
    %v1925 = vunpack.c.h.b16 %v443
    %v1926 = vunpack.c.l.b16 %v444
    %v1927 = vunpack.c.h.b16 %v444
    %v1928 = vunpack.c.l.b16 %v445
    %v1929 = vunpack.c.h.b16 %v445
    %v1930 = vunpack.c.l.b16 %v446
    %v1931 = vunpack.c.h.b16 %v446
    %v1932 = vunpack.c.l.b16 %v447
    %v1933 = vunpack.c.h.b16 %v447
    %v1934 = vunpack.c.l.b16 %v448
    %v1935 = vunpack.c.h.b16 %v448
    %v1936 = vunpack.c.l.b16 %v449
    %v1937 = vunpack.c.h.b16 %v449
    %v1938 = vunpack.c.l.b16 %v450
    %v1939 = vunpack.c.h.b16 %v450
    %v1940 = vunpack.c.l.b16 %v451
    %v1941 = vunpack.c.h.b16 %v451
    %v1942 = vunpack.c.l.b16 %v452
    %v1943 = vunpack.c.h.b16 %v452
    %v1944 = vunpack.c.l.b16 %v453
    %v1945 = vunpack.c.h.b16 %v453
    %v1946 = vunpack.c.l.b16 %v454
    %v1947 = vunpack.c.h.b16 %v454
    %v1948 = vunpack.c.l.b16 %v455
    %v1949 = vunpack.c.h.b16 %v455
    %v1950 = vunpack.c.l.b16 %v456
    %v1951 = vunpack.c.h.b16 %v456
    %v1952 = vunpack.c.l.b16 %v457
    %v1953 = vunpack.c.h.b16 %v457
    %v1954 = vunpack.c.l.b16 %v458
    %v1955 = vunpack.c.h.b16 %v458
    %v1956 = vunpack.c.l.b16 %v459
    %v1957 = vunpack.c.h.b16 %v459
    %v1958 = vunpack.c.l.b16 %v460
    %v1959 = vunpack.c.h.b16 %v460
    %v1960 = vunpack.c.l.b16 %v461
    %v1961 = vunpack.c.h.b16 %v461
    %v1962 = vunpack.c.l.b16 %v462
    %v1963 = vunpack.c.h.b16 %v462
    %v1964 = vunpack.c.l.b16 %v463
    %v1965 = vunpack.c.h.b16 %v463
    %v1966 = vunpack.c.l.b16 %v464
    %v1967 = vunpack.c.h.b16 %v464
    %v1968 = vunpack.c.l.b16 %v465
    %v1969 = vunpack.c.h.b16 %v465
    %v1970 = vunpack.c.l.b16 %v466
    %v1971 = vunpack.c.h.b16 %v466
    %v1972 = vunpack.c.l.b16 %v467
    %v1973 = vunpack.c.h.b16 %v467
    %v1974 = vunpack.c.l.b16 %v468
    %v1975 = vunpack.c.h.b16 %v468
    %v1976 = vunpack.c.l.b16 %v469
    %v1977 = vunpack.c.h.b16 %v469
    %v1978 = vunpack.c.l.b16 %v470
    %v1979 = vunpack.c.h.b16 %v470
    %v1980 = vunpack.c.l.b16 %v471
    %v1981 = vunpack.c.h.b16 %v471
    %v1982 = vunpack.c.l.b16 %v472
    %v1983 = vunpack.c.h.b16 %v472
    %v1984 = vunpack.c.l.b16 %v473
    %v1985 = vunpack.c.h.b16 %v473
    %v1986 = vunpack.c.l.b16 %v474
    %v1987 = vunpack.c.h.b16 %v474
    %v1988 = vunpack.c.l.b16 %v475
    %v1989 = vunpack.c.h.b16 %v475
    %v1990 = vunpack.c.l.b16 %v476
    %v1991 = vunpack.c.h.b16 %v476
    %v1992 = vunpack.c.l.b16 %v477
    %v1993 = vunpack.c.h.b16 %v477
    %v1994 = vunpack.c.l.b16 %v478
    %v1995 = vunpack.c.h.b16 %v478
    %v1996 = vunpack.c.l.b16 %v479
    %v1997 = vunpack.c.h.b16 %v479
    %v1998 = vunpack.c.l.b16 %v480
    %v1999 = vunpack.c.h.b16 %v480
    %v2000 = vunpack.c.l.b16 %v481
    %v2001 = vunpack.c.h.b16 %v481
    %v2002 = vunpack.c.l.b16 %v482
    %v2003 = vunpack.c.h.b16 %v482
    %v2004 = vunpack.c.l.b16 %v483
    %v2005 = vunpack.c.h.b16 %v483
    %v2006 = vunpack.c.l.b16 %v484
    %v2007 = vunpack.c.h.b16 %v484
    %v2008 = vunpack.c.l.b16 %v485
    %v2009 = vunpack.c.h.b16 %v485
    %v2010 = vunpack.c.l.b16 %v486
    %v2011 = vunpack.c.h.b16 %v486
    %v2012 = vunpack.c.l.b16 %v487
    %v2013 = vunpack.c.h.b16 %v487
    %v2014 = vunpack.c.l.b16 %v488
    %v2015 = vunpack.c.h.b16 %v488
    %v2016 = vunpack.c.l.b16 %v489
    %v2017 = vunpack.c.h.b16 %v489
    %v2018 = vunpack.c.l.b16 %v490
    %v2019 = vunpack.c.h.b16 %v490
    %v2020 = vunpack.c.l.b16 %v491
    %v2021 = vunpack.c.h.b16 %v491
    %v2022 = vunpack.c.l.b16 %v492
    %v2023 = vunpack.c.h.b16 %v492
    %v2024 = vunpack.c.l.b16 %v493
    %v2025 = vunpack.c.h.b16 %v493
    %v2026 = vunpack.c.l.b16 %v494
    %v2027 = vunpack.c.h.b16 %v494
    %v2028 = vunpack.c.l.b16 %v495
    %v2029 = vunpack.c.h.b16 %v495
    %v2030 = vunpack.c.l.b16 %v496
    %v2031 = vunpack.c.h.b16 %v496
    %v2032 = vunpack.c.l.b16 %v497
    %v2033 = vunpack.c.h.b16 %v497
    %v2034 = vunpack.c.l.b16 %v498
    %v2035 = vunpack.c.h.b16 %v498
    %v2036 = vunpack.c.l.b16 %v499
    %v2037 = vunpack.c.h.b16 %v499
    %v2038 = vunpack.c.l.b16 %v500
    %v2039 = vunpack.c.h.b16 %v500
    %v2040 = vunpack.c.l.b16 %v501
    %v2041 = vunpack.c.h.b16 %v501
    %v2042 = vunpack.c.l.b16 %v502
    %v2043 = vunpack.c.h.b16 %v502
    %v2044 = vunpack.c.l.b16 %v503
    %v2045 = vunpack.c.h.b16 %v503
    %v2046 = vunpack.c.l.b16 %v504
    %v2047 = vunpack.c.h.b16 %v504
    %v2048 = vunpack.c.l.b16 %v505
    %v2049 = vunpack.c.h.b16 %v505
    %v2050 = vunpack.c.l.b16 %v506
    %v2051 = vunpack.c.h.b16 %v506
    %v2052 = vunpack.c.l.b16 %v507
    %v2053 = vunpack.c.h.b16 %v507
    %v2054 = vunpack.c.l.b16 %v508
    %v2055 = vunpack.c.h.b16 %v508
    %v2056 = vunpack.c.l.b16 %v509
    %v2057 = vunpack.c.h.b16 %v509
    %v2058 = vunpack.c.l.b16 %v510
    %v2059 = vunpack.c.h.b16 %v510
    %v2060 = vunpack.c.l.b16 %v511
    %v2061 = vunpack.c.h.b16 %v511
    %v2062 = vunpack.c.l.b16 %v512
    %v2063 = vunpack.c.h.b16 %v512
    %v2064 = vunpack.c.l.b16 %v513
    %v2065 = vunpack.c.h.b16 %v513
    %v2066 = vunpack.c.l.b16 %v514
    %v2067 = vunpack.c.h.b16 %v514
    %v2068 = vunpack.c.l.b16 %v515
    %v2069 = vunpack.c.h.b16 %v515
    %v2070 = vunpack.c.l.b16 %v516
    %v2071 = vunpack.c.h.b16 %v516
    %v2072 = vunpack.c.l.b16 %v517
    %v2073 = vunpack.c.h.b16 %v517
    %v2074 = vunpack.c.l.b16 %v518
    %v2075 = vunpack.c.h.b16 %v518
    %v2076 = vunpack.c.l.b16 %v519
    %v2077 = vunpack.c.h.b16 %v519
    %v2078 = vunpack.c.l.b16 %v520
    %v2079 = vunpack.c.h.b16 %v520
    %v2080 = vunpack.c.l.b16 %v521
    %v2081 = vunpack.c.h.b16 %v521
    %v2082 = vunpack.c.l.b16 %v522
    %v2083 = vunpack.c.h.b16 %v522
    %v2084 = vunpack.c.l.b16 %v523
    %v2085 = vunpack.c.h.b16 %v523
    %v2086 = vunpack.c.l.b16 %v524
    %v2087 = vunpack.c.h.b16 %v524
    %v2088 = vunpack.c.l.b16 %v525
    %v2089 = vunpack.c.h.b16 %v525
    %v2090 = vunpack.c.l.b16 %v526
    %v2091 = vunpack.c.h.b16 %v526
    %v2092 = vunpack.c.l.b16 %v527
    %v2093 = vunpack.c.h.b16 %v527
    %v2094 = vunpack.c.l.b16 %v528
    %v2095 = vunpack.c.h.b16 %v528
    %v2096 = vunpack.c.l.b16 %v529
    %v2097 = vunpack.c.h.b16 %v529
    %v2098 = vunpack.c.l.b16 %v530
    %v2099 = vunpack.c.h.b16 %v530
    %v2100 = vunpack.c.l.b16 %v531
    %v2101 = vunpack.c.h.b16 %v531
    %v2102 = vunpack.c.l.b16 %v532
    %v2103 = vunpack.c.h.b16 %v532
    %v2104 = vunpack.c.l.b16 %v533
    %v2105 = vunpack.c.h.b16 %v533
    %v2106 = vunpack.c.l.b16 %v534
    %v2107 = vunpack.c.h.b16 %v534
    %v2108 = vunpack.c.l.b16 %v535
    %v2109 = vunpack.c.h.b16 %v535
    %v2110 = vunpack.c.l.b16 %v536
    %v2111 = vunpack.c.h.b16 %v536
    %v2112 = vunpack.c.l.b16 %v537
    %v2113 = vunpack.c.h.b16 %v537
    %v2114 = vunpack.c.l.b16 %v538
    %v2115 = vunpack.c.h.b16 %v538
    %v2116 = vunpack.c.l.b16 %v539
    %v2117 = vunpack.c.h.b16 %v539
    %v2118 = vunpack.c.l.b16 %v540
    %v2119 = vunpack.c.h.b16 %v540
    %v2120 = vunpack.c.l.b16 %v541
    %v2121 = vunpack.c.h.b16 %v541
    %v2122 = vunpack.c.l.b16 %v542
    %v2123 = vunpack.c.h.b16 %v542
    %v2124 = vunpack.c.l.b16 %v543
    %v2125 = vunpack.c.h.b16 %v543
    %v2126 = vunpack.c.l.b16 %v544
    %v2127 = vunpack.c.h.b16 %v544
    %v2128 = vunpack.c.l.b16 %v545
    %v2129 = vunpack.c.h.b16 %v545
    %v2130 = vunpack.c.l.b16 %v546
    %v2131 = vunpack.c.h.b16 %v546
    %v2132 = vunpack.c.l.b16 %v547
    %v2133 = vunpack.c.h.b16 %v547
    %v2134 = vunpack.c.l.b16 %v548
    %v2135 = vunpack.c.h.b16 %v548
    %v2136 = vunpack.c.l.b16 %v549
    %v2137 = vunpack.c.h.b16 %v549
    %v2138 = vunpack.c.l.b16 %v550
    %v2139 = vunpack.c.h.b16 %v550
    %v2140 = vunpack.c.l.b16 %v551
    %v2141 = vunpack.c.h.b16 %v551
    %v2142 = vunpack.c.l.b16 %v552
    %v2143 = vunpack.c.h.b16 %v552
    %v2144 = vunpack.c.l.b16 %v553
    %v2145 = vunpack.c.h.b16 %v553
    %v2146 = vunpack.c.l.b16 %v554
    %v2147 = vunpack.c.h.b16 %v554
    %v2148 = vunpack.c.l.b16 %v555
    %v2149 = vunpack.c.h.b16 %v555
    %v2150 = vunpack.c.l.b16 %v556
    %v2151 = vunpack.c.h.b16 %v556
    %v2152 = vunpack.c.l.b16 %v557
    %v2153 = vunpack.c.h.b16 %v557
    %v2154 = vunpack.c.l.b16 %v558
    %v2155 = vunpack.c.h.b16 %v558
    %v2156 = vunpack.c.l.b16 %v559
    %v2157 = vunpack.c.h.b16 %v559
    %v2158 = vunpack.c.l.b16 %v560
    %v2159 = vunpack.c.h.b16 %v560
    %v2160 = vunpack.c.l.b16 %v561
    %v2161 = vunpack.c.h.b16 %v561
    %v2162 = vunpack.c.l.b16 %v562
    %v2163 = vunpack.c.h.b16 %v562
    %v2164 = vunpack.c.l.b16 %v563
    %v2165 = vunpack.c.h.b16 %v563
    %v2166 = vunpack.c.l.b16 %v564
    %v2167 = vunpack.c.h.b16 %v564
    %v2168 = vunpack.c.l.b16 %v565
    %v2169 = vunpack.c.h.b16 %v565
    %v2170 = vunpack.c.l.b16 %v566
    %v2171 = vunpack.c.h.b16 %v566
    %v2172 = vunpack.c.l.b16 %v567
    %v2173 = vunpack.c.h.b16 %v567
    %v2174 = vunpack.c.l.b16 %v568
    %v2175 = vunpack.c.h.b16 %v568
    %v2176 = vunpack.c.l.b16 %v569
    %v2177 = vunpack.c.h.b16 %v569
    %v2178 = vunpack.c.l.b16 %v570
    %v2179 = vunpack.c.h.b16 %v570
    %v2180 = vunpack.c.l.b16 %v571
    %v2181 = vunpack.c.h.b16 %v571
    %v2182 = vunpack.c.l.b16 %v572
    %v2183 = vunpack.c.h.b16 %v572
    %v2184 = vunpack.c.l.b16 %v573
    %v2185 = vunpack.c.h.b16 %v573
    %v2186 = vunpack.c.l.b16 %v574
    %v2187 = vunpack.c.h.b16 %v574
    %v2188 = vunpack.c.l.b16 %v575
    %v2189 = vunpack.c.h.b16 %v575
    %v2190 = vunpack.c.l.b16 %v576
    %v2191 = vunpack.c.h.b16 %v576
    %v2192 = vunpack.c.l.b16 %v577
    %v2193 = vunpack.c.h.b16 %v577
    %v2194 = vunpack.c.l.b16 %v578
    %v2195 = vunpack.c.h.b16 %v578
    %v2196 = vunpack.c.l.b16 %v579
    %v2197 = vunpack.c.h.b16 %v579
    %v2198 = vunpack.c.l.b16 %v580
    %v2199 = vunpack.c.h.b16 %v580
    %v2200 = vunpack.c.l.b16 %v581
    %v2201 = vunpack.c.h.b16 %v581
    %v2202 = vunpack.c.l.b16 %v582
    %v2203 = vunpack.c.h.b16 %v582
    %v2204 = vunpack.c.l.b16 %v583
    %v2205 = vunpack.c.h.b16 %v583
    %v2206 = vunpack.c.l.b16 %v584
    %v2207 = vunpack.c.h.b16 %v584
    %v2208 = vunpack.c.l.b16 %v585
    %v2209 = vunpack.c.h.b16 %v585
    %v2210 = vunpack.c.l.b16 %v586
    %v2211 = vunpack.c.h.b16 %v586
    %v2212 = vunpack.c.l.b16 %v587
    %v2213 = vunpack.c.h.b16 %v587
    %v2214 = vunpack.c.l.b16 %v588
    %v2215 = vunpack.c.h.b16 %v588
    %v2216 = vunpack.c.l.b16 %v589
    %v2217 = vunpack.c.h.b16 %v589
    %v2218 = vunpack.c.l.b16 %v590
    %v2219 = vunpack.c.h.b16 %v590
    %v2220 = vunpack.c.l.b16 %v591
    %v2221 = vunpack.c.h.b16 %v591
    %v2222 = vunpack.c.l.b16 %v592
    %v2223 = vunpack.c.h.b16 %v592
    %v2224 = vunpack.c.l.b16 %v593
    %v2225 = vunpack.c.h.b16 %v593
    %v2226 = vunpack.c.l.b16 %v594
    %v2227 = vunpack.c.h.b16 %v594
    %v2228 = vunpack.c.l.b16 %v595
    %v2229 = vunpack.c.h.b16 %v595
    %v2230 = vunpack.c.l.b16 %v596
    %v2231 = vunpack.c.h.b16 %v596
    %v2232 = vunpack.c.l.b16 %v597
    %v2233 = vunpack.c.h.b16 %v597
    %v2234 = vunpack.c.l.b16 %v598
    %v2235 = vunpack.c.h.b16 %v598
    %v2236 = vunpack.c.l.b16 %v599
    %v2237 = vunpack.c.h.b16 %v599
    %v2238 = vpack.c.b16 %v1218, %v1214
    %v2239 = vpack.c.b16 %v1219, %v1215
    %v2240 = vpack.c.b16 %v1220, %v1216
    %v2241 = vpack.c.b16 %v1221, %v1217
    %v2242 = vpack.c.b16 %v1226, %v1222
    %v2243 = vpack.c.b16 %v1227, %v1223
    %v2244 = vpack.c.b16 %v1228, %v1224
    %v2245 = vpack.c.b16 %v1229, %v1225
    %v2246 = vpack.c.b16 %v1234, %v1230
    %v2247 = vpack.c.b16 %v1235, %v1231
    %v2248 = vpack.c.b16 %v1236, %v1232
    %v2249 = vpack.c.b16 %v1237, %v1233
    %v2250 = vpack.c.b16 %v1242, %v1238
    %v2251 = vpack.c.b16 %v1243, %v1239
    %v2252 = vpack.c.b16 %v1244, %v1240
    %v2253 = vpack.c.b16 %v1245, %v1241
    %v2254 = vpack.c.b16 %v1250, %v1246
    %v2255 = vpack.c.b16 %v1251, %v1247
    %v2256 = vpack.c.b16 %v1252, %v1248
    %v2257 = vpack.c.b16 %v1253, %v1249
    %v2258 = vpack.c.b16 %v1258, %v1254
    %v2259 = vpack.c.b16 %v1259, %v1255
    %v2260 = vpack.c.b16 %v1260, %v1256
    %v2261 = vpack.c.b16 %v1261, %v1257
    %v2262 = vpack.c.b16 %v1266, %v1262
    %v2263 = vpack.c.b16 %v1267, %v1263
    %v2264 = vpack.c.b16 %v1268, %v1264
    %v2265 = vpack.c.b16 %v1269, %v1265
    %v2266 = vpack.c.b16 %v1274, %v1270
    %v2267 = vpack.c.b16 %v1275, %v1271
    %v2268 = vpack.c.b16 %v1276, %v1272
    %v2269 = vpack.c.b16 %v1277, %v1273
    %v2270 = vpack.c.b16 %v1282, %v1278
    %v2271 = vpack.c.b16 %v1283, %v1279
    %v2272 = vpack.c.b16 %v1284, %v1280
    %v2273 = vpack.c.b16 %v1285, %v1281
    %v2274 = vpack.c.b16 %v1290, %v1286
    %v2275 = vpack.c.b16 %v1291, %v1287
    %v2276 = vpack.c.b16 %v1292, %v1288
    %v2277 = vpack.c.b16 %v1293, %v1289
    %v2278 = vpack.c.b16 %v1298, %v1294
    %v2279 = vpack.c.b16 %v1299, %v1295
    %v2280 = vpack.c.b16 %v1300, %v1296
    %v2281 = vpack.c.b16 %v1301, %v1297
    %v2282 = vpack.c.b16 %v1306, %v1302
    %v2283 = vpack.c.b16 %v1307, %v1303
    %v2284 = vpack.c.b16 %v1308, %v1304
    %v2285 = vpack.c.b16 %v1309, %v1305
    %v2286 = vpack.c.b16 %v1314, %v1310
    %v2287 = vpack.c.b16 %v1315, %v1311
    %v2288 = vpack.c.b16 %v1316, %v1312
    %v2289 = vpack.c.b16 %v1317, %v1313
    %v2290 = vpack.c.b16 %v1322, %v1318
    %v2291 = vpack.c.b16 %v1323, %v1319
    %v2292 = vpack.c.b16 %v1324, %v1320
    %v2293 = vpack.c.b16 %v1325, %v1321
    %v2294 = vpack.c.b16 %v1330, %v1326
    %v2295 = vpack.c.b16 %v1331, %v1327
    %v2296 = vpack.c.b16 %v1332, %v1328
    %v2297 = vpack.c.b16 %v1333, %v1329
    %v2298 = vpack.c.b16 %v1338, %v1334
    %v2299 = vpack.c.b16 %v1339, %v1335
    %v2300 = vpack.c.b16 %v1340, %v1336
    %v2301 = vpack.c.b16 %v1341, %v1337
    %v2302 = vpack.c.b16 %v1346, %v1342
    %v2303 = vpack.c.b16 %v1347, %v1343
    %v2304 = vpack.c.b16 %v1348, %v1344
    %v2305 = vpack.c.b16 %v1349, %v1345
    %v2306 = vpack.c.b16 %v1354, %v1350
    %v2307 = vpack.c.b16 %v1355, %v1351
    %v2308 = vpack.c.b16 %v1356, %v1352
    %v2309 = vpack.c.b16 %v1357, %v1353
    %v2310 = vpack.c.b16 %v1362, %v1358
    %v2311 = vpack.c.b16 %v1363, %v1359
    %v2312 = vpack.c.b16 %v1364, %v1360
    %v2313 = vpack.c.b16 %v1365, %v1361
    %v2314 = vpack.c.b16 %v1370, %v1366
    %v2315 = vpack.c.b16 %v1371, %v1367
    %v2316 = vpack.c.b16 %v1372, %v1368
    %v2317 = vpack.c.b16 %v1373, %v1369
    %v2318 = vpack.c.b16 %v1378, %v1374
    %v2319 = vpack.c.b16 %v1379, %v1375
    %v2320 = vpack.c.b16 %v1380, %v1376
    %v2321 = vpack.c.b16 %v1381, %v1377
    %v2322 = vpack.c.b16 %v1386, %v1382
    %v2323 = vpack.c.b16 %v1387, %v1383
    %v2324 = vpack.c.b16 %v1388, %v1384
    %v2325 = vpack.c.b16 %v1389, %v1385
    %v2326 = vpack.c.b16 %v1394, %v1390
    %v2327 = vpack.c.b16 %v1395, %v1391
    %v2328 = vpack.c.b16 %v1396, %v1392
    %v2329 = vpack.c.b16 %v1397, %v1393
    %v2330 = vpack.c.b16 %v1402, %v1398
    %v2331 = vpack.c.b16 %v1403, %v1399
    %v2332 = vpack.c.b16 %v1404, %v1400
    %v2333 = vpack.c.b16 %v1405, %v1401
    %v2334 = vpack.c.b16 %v1410, %v1406
    %v2335 = vpack.c.b16 %v1411, %v1407
    %v2336 = vpack.c.b16 %v1412, %v1408
    %v2337 = vpack.c.b16 %v1413, %v1409
    %v2338 = vpack.c.b16 %v1418, %v1414
    %v2339 = vpack.c.b16 %v1419, %v1415
    %v2340 = vpack.c.b16 %v1420, %v1416
    %v2341 = vpack.c.b16 %v1421, %v1417
    %v2342 = vpack.c.b16 %v1426, %v1422
    %v2343 = vpack.c.b16 %v1427, %v1423
    %v2344 = vpack.c.b16 %v1428, %v1424
    %v2345 = vpack.c.b16 %v1429, %v1425
    %v2346 = vpack.c.b16 %v1434, %v1430
    %v2347 = vpack.c.b16 %v1435, %v1431
    %v2348 = vpack.c.b16 %v1436, %v1432
    %v2349 = vpack.c.b16 %v1437, %v1433
    %v2350 = vpack.c.b16 %v1442, %v1438
    %v2351 = vpack.c.b16 %v1443, %v1439
    %v2352 = vpack.c.b16 %v1444, %v1440
    %v2353 = vpack.c.b16 %v1445, %v1441
    %v2354 = vpack.c.b16 %v1450, %v1446
    %v2355 = vpack.c.b16 %v1451, %v1447
    %v2356 = vpack.c.b16 %v1452, %v1448
    %v2357 = vpack.c.b16 %v1453, %v1449
    %v2358 = vpack.c.b16 %v1458, %v1454
    %v2359 = vpack.c.b16 %v1459, %v1455
    %v2360 = vpack.c.b16 %v1460, %v1456
    %v2361 = vpack.c.b16 %v1461, %v1457
    %v2362 = vpack.c.b16 %v1466, %v1462
    %v2363 = vpack.c.b16 %v1467, %v1463
    %v2364 = vpack.c.b16 %v1468, %v1464
    %v2365 = vpack.c.b16 %v1469, %v1465
    %v2366 = vpack.c.b16 %v1474, %v1470
    %v2367 = vpack.c.b16 %v1475, %v1471
    %v2368 = vpack.c.b16 %v1476, %v1472
    %v2369 = vpack.c.b16 %v1477, %v1473
    %v2370 = vpack.c.b16 %v1482, %v1478
    %v2371 = vpack.c.b16 %v1483, %v1479
    %v2372 = vpack.c.b16 %v1484, %v1480
    %v2373 = vpack.c.b16 %v1485, %v1481
    %v2374 = vpack.c.b16 %v1490, %v1486
    %v2375 = vpack.c.b16 %v1491, %v1487
    %v2376 = vpack.c.b16 %v1492, %v1488
    %v2377 = vpack.c.b16 %v1493, %v1489
    %v2378 = vpack.c.b16 %v1498, %v1494
    %v2379 = vpack.c.b16 %v1499, %v1495
    %v2380 = vpack.c.b16 %v1500, %v1496
    %v2381 = vpack.c.b16 %v1501, %v1497
    %v2382 = vpack.c.b16 %v1506, %v1502
    %v2383 = vpack.c.b16 %v1507, %v1503
    %v2384 = vpack.c.b16 %v1508, %v1504
    %v2385 = vpack.c.b16 %v1509, %v1505
    %v2386 = vpack.c.b16 %v1514, %v1510
    %v2387 = vpack.c.b16 %v1515, %v1511
    %v2388 = vpack.c.b16 %v1516, %v1512
    %v2389 = vpack.c.b16 %v1517, %v1513
    %v2390 = vpack.c.b16 %v1522, %v1518
    %v2391 = vpack.c.b16 %v1523, %v1519
    %v2392 = vpack.c.b16 %v1524, %v1520
    %v2393 = vpack.c.b16 %v1525, %v1521
    %v2394 = vpack.c.b16 %v1530, %v1526
    %v2395 = vpack.c.b16 %v1531, %v1527
    %v2396 = vpack.c.b16 %v1532, %v1528
    %v2397 = vpack.c.b16 %v1533, %v1529
    %v2398 = vpack.c.b16 %v1538, %v1534
    %v2399 = vpack.c.b16 %v1539, %v1535
    %v2400 = vpack.c.b16 %v1540, %v1536
    %v2401 = vpack.c.b16 %v1541, %v1537
    %v2402 = vpack.c.b16 %v1546, %v1542
    %v2403 = vpack.c.b16 %v1547, %v1543
    %v2404 = vpack.c.b16 %v1548, %v1544
    %v2405 = vpack.c.b16 %v1549, %v1545
    %v2406 = vpack.c.b16 %v1554, %v1550
    %v2407 = vpack.c.b16 %v1555, %v1551
    %v2408 = vpack.c.b16 %v1556, %v1552
    %v2409 = vpack.c.b16 %v1557, %v1553
    %v2410 = vpack.c.b16 %v1562, %v1558
    %v2411 = vpack.c.b16 %v1563, %v1559
    %v2412 = vpack.c.b16 %v1564, %v1560
    %v2413 = vpack.c.b16 %v1565, %v1561
    %v2414 = vpack.c.b16 %v1570, %v1566
    %v2415 = vpack.c.b16 %v1571, %v1567
    %v2416 = vpack.c.b16 %v1572, %v1568
    %v2417 = vpack.c.b16 %v1573, %v1569
    %v2418 = vpack.c.b16 %v1578, %v1574
    %v2419 = vpack.c.b16 %v1579, %v1575
    %v2420 = vpack.c.b16 %v1580, %v1576
    %v2421 = vpack.c.b16 %v1581, %v1577
    %v2422 = vpack.c.b16 %v1586, %v1582
    %v2423 = vpack.c.b16 %v1587, %v1583
    %v2424 = vpack.c.b16 %v1588, %v1584
    %v2425 = vpack.c.b16 %v1589, %v1585
    %v2426 = vpack.c.b16 %v1594, %v1590
    %v2427 = vpack.c.b16 %v1595, %v1591
    %v2428 = vpack.c.b16 %v1596, %v1592
    %v2429 = vpack.c.b16 %v1597, %v1593
    %v2430 = vpack.c.b16 %v1602, %v1598
    %v2431 = vpack.c.b16 %v1603, %v1599
    %v2432 = vpack.c.b16 %v1604, %v1600
    %v2433 = vpack.c.b16 %v1605, %v1601
    %v2434 = vpack.c.b16 %v1610, %v1606
    %v2435 = vpack.c.b16 %v1611, %v1607
    %v2436 = vpack.c.b16 %v1612, %v1608
    %v2437 = vpack.c.b16 %v1613, %v1609
    %v2438 = vpack.c.b16 %v1618, %v1614
    %v2439 = vpack.c.b16 %v1619, %v1615
    %v2440 = vpack.c.b16 %v1620, %v1616
    %v2441 = vpack.c.b16 %v1621, %v1617
    %v2442 = vpack.c.b16 %v1626, %v1622
    %v2443 = vpack.c.b16 %v1627, %v1623
    %v2444 = vpack.c.b16 %v1628, %v1624
    %v2445 = vpack.c.b16 %v1629, %v1625
    %v2446 = vpack.c.b16 %v1634, %v1630
    %v2447 = vpack.c.b16 %v1635, %v1631
    %v2448 = vpack.c.b16 %v1636, %v1632
    %v2449 = vpack.c.b16 %v1637, %v1633
    %v2450 = vpack.c.b16 %v1642, %v1638
    %v2451 = vpack.c.b16 %v1643, %v1639
    %v2452 = vpack.c.b16 %v1644, %v1640
    %v2453 = vpack.c.b16 %v1645, %v1641
    %v2454 = vpack.c.b16 %v1650, %v1646
    %v2455 = vpack.c.b16 %v1651, %v1647
    %v2456 = vpack.c.b16 %v1652, %v1648
    %v2457 = vpack.c.b16 %v1653, %v1649
    %v2458 = vpack.c.b16 %v1658, %v1654
    %v2459 = vpack.c.b16 %v1659, %v1655
    %v2460 = vpack.c.b16 %v1660, %v1656
    %v2461 = vpack.c.b16 %v1661, %v1657
    %v2462 = vpack.c.b16 %v1666, %v1662
    %v2463 = vpack.c.b16 %v1667, %v1663
    %v2464 = vpack.c.b16 %v1668, %v1664
    %v2465 = vpack.c.b16 %v1669, %v1665
    %v2466 = vpack.c.b16 %v1674, %v1670
    %v2467 = vpack.c.b16 %v1675, %v1671
    %v2468 = vpack.c.b16 %v1676, %v1672
    %v2469 = vpack.c.b16 %v1677, %v1673
    %v2470 = vpack.c.b16 %v1682, %v1678
    %v2471 = vpack.c.b16 %v1683, %v1679
    %v2472 = vpack.c.b16 %v1684, %v1680
    %v2473 = vpack.c.b16 %v1685, %v1681
    %v2474 = vpack.c.b16 %v1690, %v1686
    %v2475 = vpack.c.b16 %v1691, %v1687
    %v2476 = vpack.c.b16 %v1692, %v1688
    %v2477 = vpack.c.b16 %v1693, %v1689
    %v2478 = vpack.c.b16 %v1698, %v1694
    %v2479 = vpack.c.b16 %v1699, %v1695
    %v2480 = vpack.c.b16 %v1700, %v1696
    %v2481 = vpack.c.b16 %v1701, %v1697
    %v2482 = vpack.c.b16 %v1706, %v1702
    %v2483 = vpack.c.b16 %v1707, %v1703
    %v2484 = vpack.c.b16 %v1708, %v1704
    %v2485 = vpack.c.b16 %v1709, %v1705
    %v2486 = vpack.c.b16 %v1714, %v1710
    %v2487 = vpack.c.b16 %v1715, %v1711
    %v2488 = vpack.c.b16 %v1716, %v1712
    %v2489 = vpack.c.b16 %v1717, %v1713
    %v2490 = vpack.c.b16 %v1722, %v1718
    %v2491 = vpack.c.b16 %v1723, %v1719
    %v2492 = vpack.c.b16 %v1724, %v1720
    %v2493 = vpack.c.b16 %v1725, %v1721
    %v2494 = vpack.c.b16 %v1730, %v1726
    %v2495 = vpack.c.b16 %v1731, %v1727
    %v2496 = vpack.c.b16 %v1732, %v1728
    %v2497 = vpack.c.b16 %v1733, %v1729
    %v2498 = vpack.c.b16 %v1738, %v1734
    %v2499 = vpack.c.b16 %v1739, %v1735
    %v2500 = vpack.c.b16 %v1740, %v1736
    %v2501 = vpack.c.b16 %v1741, %v1737
    %v2502 = vpack.c.b16 %v1746, %v1742
    %v2503 = vpack.c.b16 %v1747, %v1743
    %v2504 = vpack.c.b16 %v1748, %v1744
    %v2505 = vpack.c.b16 %v1749, %v1745
    %v2506 = vpack.c.b16 %v1754, %v1750
    %v2507 = vpack.c.b16 %v1755, %v1751
    %v2508 = vpack.c.b16 %v1756, %v1752
    %v2509 = vpack.c.b16 %v1757, %v1753
    %v2510 = vpack.c.b16 %v1762, %v1758
    %v2511 = vpack.c.b16 %v1763, %v1759
    %v2512 = vpack.c.b16 %v1764, %v1760
    %v2513 = vpack.c.b16 %v1765, %v1761
    %v2514 = vpack.c.b16 %v1770, %v1766
    %v2515 = vpack.c.b16 %v1771, %v1767
    %v2516 = vpack.c.b16 %v1772, %v1768
    %v2517 = vpack.c.b16 %v1773, %v1769
    %v2518 = vpack.c.b16 %v1778, %v1774
    %v2519 = vpack.c.b16 %v1779, %v1775
    %v2520 = vpack.c.b16 %v1780, %v1776
    %v2521 = vpack.c.b16 %v1781, %v1777
    %v2522 = vpack.c.b16 %v1786, %v1782
    %v2523 = vpack.c.b16 %v1787, %v1783
    %v2524 = vpack.c.b16 %v1788, %v1784
    %v2525 = vpack.c.b16 %v1789, %v1785
    %v2526 = vpack.c.b16 %v1794, %v1790
    %v2527 = vpack.c.b16 %v1795, %v1791
    %v2528 = vpack.c.b16 %v1796, %v1792
    %v2529 = vpack.c.b16 %v1797, %v1793
    %v2530 = vpack.c.b16 %v1802, %v1798
    %v2531 = vpack.c.b16 %v1803, %v1799
    %v2532 = vpack.c.b16 %v1804, %v1800
    %v2533 = vpack.c.b16 %v1805, %v1801
    %v2534 = vpack.c.b16 %v1810, %v1806
    %v2535 = vpack.c.b16 %v1811, %v1807
    %v2536 = vpack.c.b16 %v1812, %v1808
    %v2537 = vpack.c.b16 %v1813, %v1809
    %v2538 = vpack.c.b16 %v1818, %v1814
    %v2539 = vpack.c.b16 %v1819, %v1815
    %v2540 = vpack.c.b16 %v1820, %v1816
    %v2541 = vpack.c.b16 %v1821, %v1817
    %v2542 = vpack.c.b16 %v1826, %v1822
    %v2543 = vpack.c.b16 %v1827, %v1823
    %v2544 = vpack.c.b16 %v1828, %v1824
    %v2545 = vpack.c.b16 %v1829, %v1825
    %v2546 = vpack.c.b16 %v1834, %v1830
    %v2547 = vpack.c.b16 %v1835, %v1831
    %v2548 = vpack.c.b16 %v1836, %v1832
    %v2549 = vpack.c.b16 %v1837, %v1833
    %v2550 = vpack.c.b16 %v1842, %v1838
    %v2551 = vpack.c.b16 %v1843, %v1839
    %v2552 = vpack.c.b16 %v1844, %v1840
    %v2553 = vpack.c.b16 %v1845, %v1841
    %v2554 = vpack.c.b16 %v1850, %v1846
    %v2555 = vpack.c.b16 %v1851, %v1847
    %v2556 = vpack.c.b16 %v1852, %v1848
    %v2557 = vpack.c.b16 %v1853, %v1849
    %v2558 = vpack.c.b16 %v1858, %v1854
    %v2559 = vpack.c.b16 %v1859, %v1855
    %v2560 = vpack.c.b16 %v1860, %v1856
    %v2561 = vpack.c.b16 %v1861, %v1857
    %v2562 = vpack.c.b16 %v1866, %v1862
    %v2563 = vpack.c.b16 %v1867, %v1863
    %v2564 = vpack.c.b16 %v1868, %v1864
    %v2565 = vpack.c.b16 %v1869, %v1865
    %v2566 = vpack.c.b16 %v1874, %v1870
    %v2567 = vpack.c.b16 %v1875, %v1871
    %v2568 = vpack.c.b16 %v1876, %v1872
    %v2569 = vpack.c.b16 %v1877, %v1873
    %v2570 = vpack.c.b16 %v1882, %v1878
    %v2571 = vpack.c.b16 %v1883, %v1879
    %v2572 = vpack.c.b16 %v1884, %v1880
    %v2573 = vpack.c.b16 %v1885, %v1881
    %v2574 = vpack.c.b16 %v1890, %v1886
    %v2575 = vpack.c.b16 %v1891, %v1887
    %v2576 = vpack.c.b16 %v1892, %v1888
    %v2577 = vpack.c.b16 %v1893, %v1889
    %v2578 = vpack.c.b16 %v1898, %v1894
    %v2579 = vpack.c.b16 %v1899, %v1895
    %v2580 = vpack.c.b16 %v1900, %v1896
    %v2581 = vpack.c.b16 %v1901, %v1897
    %v2582 = vpack.c.b16 %v1906, %v1902
    %v2583 = vpack.c.b16 %v1907, %v1903
    %v2584 = vpack.c.b16 %v1908, %v1904
    %v2585 = vpack.c.b16 %v1909, %v1905
    %v2586 = vpack.c.b16 %v1914, %v1910
    %v2587 = vpack.c.b16 %v1915, %v1911
    %v2588 = vpack.c.b16 %v1916, %v1912
    %v2589 = vpack.c.b16 %v1917, %v1913
    %v2590 = vpack.c.b16 %v1922, %v1918
    %v2591 = vpack.c.b16 %v1923, %v1919
    %v2592 = vpack.c.b16 %v1924, %v1920
    %v2593 = vpack.c.b16 %v1925, %v1921
    %v2594 = vpack.c.b16 %v1930, %v1926
    %v2595 = vpack.c.b16 %v1931, %v1927
    %v2596 = vpack.c.b16 %v1932, %v1928
    %v2597 = vpack.c.b16 %v1933, %v1929
    %v2598 = vpack.c.b16 %v1938, %v1934
    %v2599 = vpack.c.b16 %v1939, %v1935
    %v2600 = vpack.c.b16 %v1940, %v1936
    %v2601 = vpack.c.b16 %v1941, %v1937
    %v2602 = vpack.c.b16 %v1946, %v1942
    %v2603 = vpack.c.b16 %v1947, %v1943
    %v2604 = vpack.c.b16 %v1948, %v1944
    %v2605 = vpack.c.b16 %v1949, %v1945
    %v2606 = vpack.c.b16 %v1954, %v1950
    %v2607 = vpack.c.b16 %v1955, %v1951
    %v2608 = vpack.c.b16 %v1956, %v1952
    %v2609 = vpack.c.b16 %v1957, %v1953
    %v2610 = vpack.c.b16 %v1962, %v1958
    %v2611 = vpack.c.b16 %v1963, %v1959
    %v2612 = vpack.c.b16 %v1964, %v1960
    %v2613 = vpack.c.b16 %v1965, %v1961
    %v2614 = vpack.c.b16 %v1970, %v1966
    %v2615 = vpack.c.b16 %v1971, %v1967
    %v2616 = vpack.c.b16 %v1972, %v1968
    %v2617 = vpack.c.b16 %v1973, %v1969
    %v2618 = vpack.c.b16 %v1978, %v1974
    %v2619 = vpack.c.b16 %v1979, %v1975
    %v2620 = vpack.c.b16 %v1980, %v1976
    %v2621 = vpack.c.b16 %v1981, %v1977
    %v2622 = vpack.c.b16 %v1986, %v1982
    %v2623 = vpack.c.b16 %v1987, %v1983
    %v2624 = vpack.c.b16 %v1988, %v1984
    %v2625 = vpack.c.b16 %v1989, %v1985
    %v2626 = vpack.c.b16 %v1994, %v1990
    %v2627 = vpack.c.b16 %v1995, %v1991
    %v2628 = vpack.c.b16 %v1996, %v1992
    %v2629 = vpack.c.b16 %v1997, %v1993
    %v2630 = vpack.c.b16 %v2002, %v1998
    %v2631 = vpack.c.b16 %v2003, %v1999
    %v2632 = vpack.c.b16 %v2004, %v2000
    %v2633 = vpack.c.b16 %v2005, %v2001
    %v2634 = vpack.c.b16 %v2010, %v2006
    %v2635 = vpack.c.b16 %v2011, %v2007
    %v2636 = vpack.c.b16 %v2012, %v2008
    %v2637 = vpack.c.b16 %v2013, %v2009
    %v2638 = vpack.c.b16 %v2018, %v2014
    %v2639 = vpack.c.b16 %v2019, %v2015
    %v2640 = vpack.c.b16 %v2020, %v2016
    %v2641 = vpack.c.b16 %v2021, %v2017
    %v2642 = vpack.c.b16 %v2026, %v2022
    %v2643 = vpack.c.b16 %v2027, %v2023
    %v2644 = vpack.c.b16 %v2028, %v2024
    %v2645 = vpack.c.b16 %v2029, %v2025
    %v2646 = vpack.c.b16 %v2034, %v2030
    %v2647 = vpack.c.b16 %v2035, %v2031
    %v2648 = vpack.c.b16 %v2036, %v2032
    %v2649 = vpack.c.b16 %v2037, %v2033
    %v2650 = vpack.c.b16 %v2042, %v2038
    %v2651 = vpack.c.b16 %v2043, %v2039
    %v2652 = vpack.c.b16 %v2044, %v2040
    %v2653 = vpack.c.b16 %v2045, %v2041
    %v2654 = vpack.c.b16 %v2050, %v2046
    %v2655 = vpack.c.b16 %v2051, %v2047
    %v2656 = vpack.c.b16 %v2052, %v2048
    %v2657 = vpack.c.b16 %v2053, %v2049
    %v2658 = vpack.c.b16 %v2058, %v2054
    %v2659 = vpack.c.b16 %v2059, %v2055
    %v2660 = vpack.c.b16 %v2060, %v2056
    %v2661 = vpack.c.b16 %v2061, %v2057
    %v2662 = vpack.c.b16 %v2066, %v2062
    %v2663 = vpack.c.b16 %v2067, %v2063
    %v2664 = vpack.c.b16 %v2068, %v2064
    %v2665 = vpack.c.b16 %v2069, %v2065
    %v2666 = vpack.c.b16 %v2074, %v2070
    %v2667 = vpack.c.b16 %v2075, %v2071
    %v2668 = vpack.c.b16 %v2076, %v2072
    %v2669 = vpack.c.b16 %v2077, %v2073
    %v2670 = vpack.c.b16 %v2082, %v2078
    %v2671 = vpack.c.b16 %v2083, %v2079
    %v2672 = vpack.c.b16 %v2084, %v2080
    %v2673 = vpack.c.b16 %v2085, %v2081
    %v2674 = vpack.c.b16 %v2090, %v2086
    %v2675 = vpack.c.b16 %v2091, %v2087
    %v2676 = vpack.c.b16 %v2092, %v2088
    %v2677 = vpack.c.b16 %v2093, %v2089
    %v2678 = vpack.c.b16 %v2098, %v2094
    %v2679 = vpack.c.b16 %v2099, %v2095
    %v2680 = vpack.c.b16 %v2100, %v2096
    %v2681 = vpack.c.b16 %v2101, %v2097
    %v2682 = vpack.c.b16 %v2106, %v2102
    %v2683 = vpack.c.b16 %v2107, %v2103
    %v2684 = vpack.c.b16 %v2108, %v2104
    %v2685 = vpack.c.b16 %v2109, %v2105
    %v2686 = vpack.c.b16 %v2114, %v2110
    %v2687 = vpack.c.b16 %v2115, %v2111
    %v2688 = vpack.c.b16 %v2116, %v2112
    %v2689 = vpack.c.b16 %v2117, %v2113
    %v2690 = vpack.c.b16 %v2122, %v2118
    %v2691 = vpack.c.b16 %v2123, %v2119
    %v2692 = vpack.c.b16 %v2124, %v2120
    %v2693 = vpack.c.b16 %v2125, %v2121
    %v2694 = vpack.c.b16 %v2130, %v2126
    %v2695 = vpack.c.b16 %v2131, %v2127
    %v2696 = vpack.c.b16 %v2132, %v2128
    %v2697 = vpack.c.b16 %v2133, %v2129
    %v2698 = vpack.c.b16 %v2138, %v2134
    %v2699 = vpack.c.b16 %v2139, %v2135
    %v2700 = vpack.c.b16 %v2140, %v2136
    %v2701 = vpack.c.b16 %v2141, %v2137
    %v2702 = vpack.c.b16 %v2146, %v2142
    %v2703 = vpack.c.b16 %v2147, %v2143
    %v2704 = vpack.c.b16 %v2148, %v2144
    %v2705 = vpack.c.b16 %v2149, %v2145
    %v2706 = vpack.c.b16 %v2154, %v2150
    %v2707 = vpack.c.b16 %v2155, %v2151
    %v2708 = vpack.c.b16 %v2156, %v2152
    %v2709 = vpack.c.b16 %v2157, %v2153
    %v2710 = vpack.c.b16 %v2162, %v2158
    %v2711 = vpack.c.b16 %v2163, %v2159
    %v2712 = vpack.c.b16 %v2164, %v2160
    %v2713 = vpack.c.b16 %v2165, %v2161
    %v2714 = vpack.c.b16 %v2170, %v2166
    %v2715 = vpack.c.b16 %v2171, %v2167
    %v2716 = vpack.c.b16 %v2172, %v2168
    %v2717 = vpack.c.b16 %v2173, %v2169
    %v2718 = vpack.c.b16 %v2178, %v2174
    %v2719 = vpack.c.b16 %v2179, %v2175
    %v2720 = vpack.c.b16 %v2180, %v2176
    %v2721 = vpack.c.b16 %v2181, %v2177
    %v2722 = vpack.c.b16 %v2186, %v2182
    %v2723 = vpack.c.b16 %v2187, %v2183
    %v2724 = vpack.c.b16 %v2188, %v2184
    %v2725 = vpack.c.b16 %v2189, %v2185
    %v2726 = vpack.c.b16 %v2194, %v2190
    %v2727 = vpack.c.b16 %v2195, %v2191
    %v2728 = vpack.c.b16 %v2196, %v2192
    %v2729 = vpack.c.b16 %v2197, %v2193
    %v2730 = vpack.c.b16 %v2202, %v2198
    %v2731 = vpack.c.b16 %v2203, %v2199
    %v2732 = vpack.c.b16 %v2204, %v2200
    %v2733 = vpack.c.b16 %v2205, %v2201
    %v2734 = vpack.c.b16 %v2210, %v2206
    %v2735 = vpack.c.b16 %v2211, %v2207
    %v2736 = vpack.c.b16 %v2212, %v2208
    %v2737 = vpack.c.b16 %v2213, %v2209
    %v2738 = vpack.c.b16 %v2218, %v2214
    %v2739 = vpack.c.b16 %v2219, %v2215
    %v2740 = vpack.c.b16 %v2220, %v2216
    %v2741 = vpack.c.b16 %v2221, %v2217
    %v2742 = vpack.c.b16 %v2226, %v2222
    %v2743 = vpack.c.b16 %v2227, %v2223
    %v2744 = vpack.c.b16 %v2228, %v2224
    %v2745 = vpack.c.b16 %v2229, %v2225
    %v2746 = vpack.c.b16 %v2234, %v2230
    %v2747 = vpack.c.b16 %v2235, %v2231
    %v2748 = vpack.c.b16 %v2236, %v2232
    %v2749 = vpack.c.b16 %v2237, %v2233
    %3262 = vmatprep.subr.bf16.mxu0 %v2239
    %3263 = vmatpush1.bf16.msra.mxu0 %v2238
    %3264 = vmatprep.subr.bf16.mxu0 %v2243
    %3265 = vmatpush1.bf16.msra.mxu0 %v2242
    %3266 = vmatprep.subr.bf16.mxu0 %v2247
    %3267 = vmatpush1.bf16.msra.mxu0 %v2246
    %3268 = vmatprep.subr.bf16.mxu0 %v2251
    %3269 = vmatpush1.bf16.msra.mxu0 %v2250
    %3270 = vmatprep.subr.bf16.mxu0 %v2255
    %3271 = vmatpush1.bf16.msra.mxu0 %v2254
    %3272 = vmatprep.subr.bf16.mxu0 %v2259
    %3273 = vmatpush1.bf16.msra.mxu0 %v2258
    %3274 = vmatprep.subr.bf16.mxu0 %v2263
    %3275 = vmatpush1.bf16.msra.mxu0 %v2262
    %3276 = vmatprep.subr.bf16.mxu0 %v2267
    %3277 = vmatpush1.bf16.msra.mxu0 %v2266
    %3278 = vmatprep.subr.bf16.mxu0 %v2271
    %3279 = vmatpush1.bf16.msra.mxu0 %v2270
    %3280 = vmatprep.subr.bf16.mxu0 %v2275
    %3281 = vmatpush1.bf16.msra.mxu0 %v2274
    %3282 = vmatprep.subr.bf16.mxu0 %v2279
    %3283 = vmatpush1.bf16.msra.mxu0 %v2278
    %3284 = vmatprep.subr.bf16.mxu0 %v2283
    %3285 = vmatpush1.bf16.msra.mxu0 %v2282
    %3286 = vmatprep.subr.bf16.mxu0 %v2287
    %3287 = vmatpush1.bf16.msra.mxu0 %v2286
    %3288 = vmatprep.subr.bf16.mxu0 %v2291
    %3289 = vmatpush1.bf16.msra.mxu0 %v2290
    %3290 = vmatprep.subr.bf16.mxu0 %v2295
    %3291 = vmatpush1.bf16.msra.mxu0 %v2294
    %3292 = vmatprep.subr.bf16.mxu0 %v2299
    %3293 = vmatpush1.bf16.msra.mxu0 %v2298
    %3294 = vmatprep.mubr.bf16.mxu0 %v671
    %3295 = vmatmul.mubr.bf16.gmra.mrb[0].mxu0 %v670
    %v3296 = vpop.f32.mrb[0].mxu0
    %v3297 = vadd.f32 %v605, %v3296
    %v3298 = vpop.f32.mrb[0].mxu0
    %v3299 = vadd.f32 %v609, %v3298
    %v3300 = vpop.f32.mrb[0].mxu0
    %v3301 = vadd.f32 %v605, %v3300
    %v3302 = vpop.f32.mrb[0].mxu0
    %v3303 = vadd.f32 %v609, %v3302
    %3304 = vdwg.mxu0
    %3305 = vmatprep.subr.bf16.mxu0 %v2303
    %3306 = vmatpush1.bf16.msra.mxu0 %v2302
    %3307 = vmatprep.subr.bf16.mxu0 %v2307
    %3308 = vmatpush1.bf16.msra.mxu0 %v2306
    %3309 = vmatprep.subr.bf16.mxu0 %v2311
    %3310 = vmatpush1.bf16.msra.mxu0 %v2310
    %3311 = vmatprep.subr.bf16.mxu0 %v2315
    %3312 = vmatpush1.bf16.msra.mxu0 %v2314
    %3313 = vmatprep.subr.bf16.mxu0 %v2319
    %3314 = vmatpush1.bf16.msra.mxu0 %v2318
    %3315 = vmatprep.subr.bf16.mxu0 %v2323
    %3316 = vmatpush1.bf16.msra.mxu0 %v2322
    %3317 = vmatprep.subr.bf16.mxu0 %v2327
    %3318 = vmatpush1.bf16.msra.mxu0 %v2326
    %3319 = vmatprep.subr.bf16.mxu0 %v2331
    %3320 = vmatpush1.bf16.msra.mxu0 %v2330
    %3321 = vmatprep.subr.bf16.mxu0 %v2335
    %3322 = vmatpush1.bf16.msra.mxu0 %v2334
    %3323 = vmatprep.subr.bf16.mxu0 %v2339
    %3324 = vmatpush1.bf16.msra.mxu0 %v2338
    %3325 = vmatprep.subr.bf16.mxu0 %v2343
    %3326 = vmatpush1.bf16.msra.mxu0 %v2342
    %3327 = vmatprep.subr.bf16.mxu0 %v2347
    %3328 = vmatpush1.bf16.msra.mxu0 %v2346
    %3329 = vmatprep.subr.bf16.mxu0 %v2351
    %3330 = vmatpush1.bf16.msra.mxu0 %v2350
    %3331 = vmatprep.subr.bf16.mxu0 %v2355
    %3332 = vmatpush1.bf16.msra.mxu0 %v2354
    %3333 = vmatprep.subr.bf16.mxu0 %v2359
    %3334 = vmatpush1.bf16.msra.mxu0 %v2358
    %3335 = vmatprep.subr.bf16.mxu0 %v2363
    %3336 = vmatpush1.bf16.msra.mxu0 %v2362
    %3337 = vmatprep.mubr.bf16.mxu0 %v673
    %3338 = vmatmul.mubr.bf16.gmra.mrb[0].mxu0 %v672
    %v3339 = vpop.f32.mrb[0].mxu0
    %v3340 = vadd.f32 %v3297, %v3339
    %v3341 = vpop.f32.mrb[0].mxu0
    %v3342 = vadd.f32 %v3299, %v3341
    %v3343 = vpop.f32.mrb[0].mxu0
    %v3344 = vadd.f32 %v3301, %v3343
    %v3345 = vpop.f32.mrb[0].mxu0
    %v3346 = vadd.f32 %v3303, %v3345
    %3347 = vdwg.mxu0
    %3348 = vmatprep.subr.bf16.mxu0 %v2367
    %3349 = vmatpush1.bf16.msra.mxu0 %v2366
    %3350 = vmatprep.subr.bf16.mxu0 %v2371
    %3351 = vmatpush1.bf16.msra.mxu0 %v2370
    %3352 = vmatprep.subr.bf16.mxu0 %v2375
    %3353 = vmatpush1.bf16.msra.mxu0 %v2374
    %3354 = vmatprep.subr.bf16.mxu0 %v2379
    %3355 = vmatpush1.bf16.msra.mxu0 %v2378
    %3356 = vmatprep.subr.bf16.mxu0 %v2383
    %3357 = vmatpush1.bf16.msra.mxu0 %v2382
    %3358 = vmatprep.subr.bf16.mxu0 %v2387
    %3359 = vmatpush1.bf16.msra.mxu0 %v2386
    %3360 = vmatprep.subr.bf16.mxu0 %v2391
    %3361 = vmatpush1.bf16.msra.mxu0 %v2390
    %3362 = vmatprep.subr.bf16.mxu0 %v2395
    %3363 = vmatpush1.bf16.msra.mxu0 %v2394
    %3364 = vmatprep.subr.bf16.mxu0 %v2399
    %3365 = vmatpush1.bf16.msra.mxu0 %v2398
    %3366 = vmatprep.subr.bf16.mxu0 %v2403
    %3367 = vmatpush1.bf16.msra.mxu0 %v2402
    %3368 = vmatprep.subr.bf16.mxu0 %v2407
    %3369 = vmatpush1.bf16.msra.mxu0 %v2406
    %3370 = vmatprep.subr.bf16.mxu0 %v2411
    %3371 = vmatpush1.bf16.msra.mxu0 %v2410
    %3372 = vmatprep.subr.bf16.mxu0 %v2415
    %3373 = vmatpush1.bf16.msra.mxu0 %v2414
    %3374 = vmatprep.subr.bf16.mxu0 %v2419
    %3375 = vmatpush1.bf16.msra.mxu0 %v2418
    %3376 = vmatprep.subr.bf16.mxu0 %v2423
    %3377 = vmatpush1.bf16.msra.mxu0 %v2422
    %3378 = vmatprep.subr.bf16.mxu0 %v2427
    %3379 = vmatpush1.bf16.msra.mxu0 %v2426
    %3380 = vmatprep.mubr.bf16.mxu0 %v675
    %3381 = vmatmul.mubr.bf16.gmra.mrb[0].mxu0 %v674
    %v3382 = vpop.f32.mrb[0].mxu0
    %v3383 = vadd.f32 %v3340, %v3382
    %v3384 = vpop.f32.mrb[0].mxu0
    %v3385 = vadd.f32 %v3342, %v3384
    %v3386 = vpop.f32.mrb[0].mxu0
    %v3387 = vadd.f32 %v3344, %v3386
    %v3388 = vpop.f32.mrb[0].mxu0
    %v3389 = vadd.f32 %v3346, %v3388
    %3390 = vdwg.mxu0
    %3391 = vmatprep.subr.bf16.mxu0 %v2431
    %3392 = vmatpush1.bf16.msra.mxu0 %v2430
    %3393 = vmatprep.subr.bf16.mxu0 %v2435
    %3394 = vmatpush1.bf16.msra.mxu0 %v2434
    %3395 = vmatprep.subr.bf16.mxu0 %v2439
    %3396 = vmatpush1.bf16.msra.mxu0 %v2438
    %3397 = vmatprep.subr.bf16.mxu0 %v2443
    %3398 = vmatpush1.bf16.msra.mxu0 %v2442
    %3399 = vmatprep.subr.bf16.mxu0 %v2447
    %3400 = vmatpush1.bf16.msra.mxu0 %v2446
    %3401 = vmatprep.subr.bf16.mxu0 %v2451
    %3402 = vmatpush1.bf16.msra.mxu0 %v2450
    %3403 = vmatprep.subr.bf16.mxu0 %v2455
    %3404 = vmatpush1.bf16.msra.mxu0 %v2454
    %3405 = vmatprep.subr.bf16.mxu0 %v2459
    %3406 = vmatpush1.bf16.msra.mxu0 %v2458
    %3407 = vmatprep.subr.bf16.mxu0 %v2463
    %3408 = vmatpush1.bf16.msra.mxu0 %v2462
    %3409 = vmatprep.subr.bf16.mxu0 %v2467
    %3410 = vmatpush1.bf16.msra.mxu0 %v2466
    %3411 = vmatprep.subr.bf16.mxu0 %v2471
    %3412 = vmatpush1.bf16.msra.mxu0 %v2470
    %3413 = vmatprep.subr.bf16.mxu0 %v2475
    %3414 = vmatpush1.bf16.msra.mxu0 %v2474
    %3415 = vmatprep.subr.bf16.mxu0 %v2479
    %3416 = vmatpush1.bf16.msra.mxu0 %v2478
    %3417 = vmatprep.subr.bf16.mxu0 %v2483
    %3418 = vmatpush1.bf16.msra.mxu0 %v2482
    %3419 = vmatprep.subr.bf16.mxu0 %v2487
    %3420 = vmatpush1.bf16.msra.mxu0 %v2486
    %3421 = vmatprep.subr.bf16.mxu0 %v2491
    %3422 = vmatpush1.bf16.msra.mxu0 %v2490
    %3423 = vmatprep.mubr.bf16.mxu0 %v677
    %3424 = vmatmul.mubr.bf16.gmra.mrb[0].mxu0 %v676
    %v3425 = vpop.f32.mrb[0].mxu0
    %v3426 = vadd.f32 %v3383, %v3425
    %v3427 = vpop.f32.mrb[0].mxu0
    %v3428 = vadd.f32 %v3385, %v3427
    %v3429 = vpop.f32.mrb[0].mxu0
    %v3430 = vadd.f32 %v3387, %v3429
    %v3431 = vpop.f32.mrb[0].mxu0
    %v3432 = vadd.f32 %v3389, %v3431
    %3433 = vdwg.mxu0
    %3434 = vmatprep.subr.bf16.mxu0 %v2495
    %3435 = vmatpush1.bf16.msra.mxu0 %v2494
    %3436 = vmatprep.subr.bf16.mxu0 %v2499
    %3437 = vmatpush1.bf16.msra.mxu0 %v2498
    %3438 = vmatprep.subr.bf16.mxu0 %v2503
    %3439 = vmatpush1.bf16.msra.mxu0 %v2502
    %3440 = vmatprep.subr.bf16.mxu0 %v2507
    %3441 = vmatpush1.bf16.msra.mxu0 %v2506
    %3442 = vmatprep.subr.bf16.mxu0 %v2511
    %3443 = vmatpush1.bf16.msra.mxu0 %v2510
    %3444 = vmatprep.subr.bf16.mxu0 %v2515
    %3445 = vmatpush1.bf16.msra.mxu0 %v2514
    %3446 = vmatprep.subr.bf16.mxu0 %v2519
    %3447 = vmatpush1.bf16.msra.mxu0 %v2518
    %3448 = vmatprep.subr.bf16.mxu0 %v2523
    %3449 = vmatpush1.bf16.msra.mxu0 %v2522
    %3450 = vmatprep.subr.bf16.mxu0 %v2527
    %3451 = vmatpush1.bf16.msra.mxu0 %v2526
    %3452 = vmatprep.subr.bf16.mxu0 %v2531
    %3453 = vmatpush1.bf16.msra.mxu0 %v2530
    %3454 = vmatprep.subr.bf16.mxu0 %v2535
    %3455 = vmatpush1.bf16.msra.mxu0 %v2534
    %3456 = vmatprep.subr.bf16.mxu0 %v2539
    %3457 = vmatpush1.bf16.msra.mxu0 %v2538
    %3458 = vmatprep.subr.bf16.mxu0 %v2543
    %3459 = vmatpush1.bf16.msra.mxu0 %v2542
    %3460 = vmatprep.subr.bf16.mxu0 %v2547
    %3461 = vmatpush1.bf16.msra.mxu0 %v2546
    %3462 = vmatprep.subr.bf16.mxu0 %v2551
    %3463 = vmatpush1.bf16.msra.mxu0 %v2550
    %3464 = vmatprep.subr.bf16.mxu0 %v2555
    %3465 = vmatpush1.bf16.msra.mxu0 %v2554
    %3466 = vmatprep.mubr.bf16.mxu0 %v679
    %3467 = vmatmul.mubr.bf16.gmra.mrb[0].mxu0 %v678
    %v3468 = vpop.f32.mrb[0].mxu0
    %v3469 = vadd.f32 %v3426, %v3468
    %v3470 = vpop.f32.mrb[0].mxu0
    %v3471 = vadd.f32 %v3428, %v3470
    %v3472 = vpop.f32.mrb[0].mxu0
    %v3473 = vadd.f32 %v3430, %v3472
    %v3474 = vpop.f32.mrb[0].mxu0
    %v3475 = vadd.f32 %v3432, %v3474
    %3476 = vdwg.mxu0
    %3477 = vmatprep.subr.bf16.mxu0 %v2559
    %3478 = vmatpush1.bf16.msra.mxu0 %v2558
    %3479 = vmatprep.subr.bf16.mxu0 %v2563
    %3480 = vmatpush1.bf16.msra.mxu0 %v2562
    %3481 = vmatprep.subr.bf16.mxu0 %v2567
    %3482 = vmatpush1.bf16.msra.mxu0 %v2566
    %3483 = vmatprep.subr.bf16.mxu0 %v2571
    %3484 = vmatpush1.bf16.msra.mxu0 %v2570
    %3485 = vmatprep.subr.bf16.mxu0 %v2575
    %3486 = vmatpush1.bf16.msra.mxu0 %v2574
    %3487 = vmatprep.subr.bf16.mxu0 %v2579
    %3488 = vmatpush1.bf16.msra.mxu0 %v2578
    %3489 = vmatprep.subr.bf16.mxu0 %v2583
    %3490 = vmatpush1.bf16.msra.mxu0 %v2582
    %3491 = vmatprep.subr.bf16.mxu0 %v2587
    %3492 = vmatpush1.bf16.msra.mxu0 %v2586
    %3493 = vmatprep.subr.bf16.mxu0 %v2591
    %3494 = vmatpush1.bf16.msra.mxu0 %v2590
    %3495 = vmatprep.subr.bf16.mxu0 %v2595
    %3496 = vmatpush1.bf16.msra.mxu0 %v2594
    %3497 = vmatprep.subr.bf16.mxu0 %v2599
    %3498 = vmatpush1.bf16.msra.mxu0 %v2598
    %3499 = vmatprep.subr.bf16.mxu0 %v2603
    %3500 = vmatpush1.bf16.msra.mxu0 %v2602
    %3501 = vmatprep.subr.bf16.mxu0 %v2607
    %3502 = vmatpush1.bf16.msra.mxu0 %v2606
    %3503 = vmatprep.subr.bf16.mxu0 %v2611
    %3504 = vmatpush1.bf16.msra.mxu0 %v2610
    %3505 = vmatprep.subr.bf16.mxu0 %v2615
    %3506 = vmatpush1.bf16.msra.mxu0 %v2614
    %3507 = vmatprep.subr.bf16.mxu0 %v2619
    %3508 = vmatpush1.bf16.msra.mxu0 %v2618
    %3509 = vmatprep.mubr.bf16.mxu0 %v681
    %3510 = vmatmul.mubr.bf16.gmra.mrb[0].mxu0 %v680
    %v3511 = vpop.f32.mrb[0].mxu0
    %v3512 = vadd.f32 %v3469, %v3511
    %v3513 = vpop.f32.mrb[0].mxu0
    %v3514 = vadd.f32 %v3471, %v3513
    %v3515 = vpop.f32.mrb[0].mxu0
    %v3516 = vadd.f32 %v3473, %v3515
    %v3517 = vpop.f32.mrb[0].mxu0
    %v3518 = vadd.f32 %v3475, %v3517
    %3519 = vdwg.mxu0
    %3520 = vmatprep.subr.bf16.mxu0 %v2623
    %3521 = vmatpush1.bf16.msra.mxu0 %v2622
    %3522 = vmatprep.subr.bf16.mxu0 %v2627
    %3523 = vmatpush1.bf16.msra.mxu0 %v2626
    %3524 = vmatprep.subr.bf16.mxu0 %v2631
    %3525 = vmatpush1.bf16.msra.mxu0 %v2630
    %3526 = vmatprep.subr.bf16.mxu0 %v2635
    %3527 = vmatpush1.bf16.msra.mxu0 %v2634
    %3528 = vmatprep.subr.bf16.mxu0 %v2639
    %3529 = vmatpush1.bf16.msra.mxu0 %v2638
    %3530 = vmatprep.subr.bf16.mxu0 %v2643
    %3531 = vmatpush1.bf16.msra.mxu0 %v2642
    %3532 = vmatprep.subr.bf16.mxu0 %v2647
    %3533 = vmatpush1.bf16.msra.mxu0 %v2646
    %3534 = vmatprep.subr.bf16.mxu0 %v2651
    %3535 = vmatpush1.bf16.msra.mxu0 %v2650
    %3536 = vmatprep.subr.bf16.mxu0 %v2655
    %3537 = vmatpush1.bf16.msra.mxu0 %v2654
    %3538 = vmatprep.subr.bf16.mxu0 %v2659
    %3539 = vmatpush1.bf16.msra.mxu0 %v2658
    %3540 = vmatprep.subr.bf16.mxu0 %v2663
    %3541 = vmatpush1.bf16.msra.mxu0 %v2662
    %3542 = vmatprep.subr.bf16.mxu0 %v2667
    %3543 = vmatpush1.bf16.msra.mxu0 %v2666
    %3544 = vmatprep.subr.bf16.mxu0 %v2671
    %3545 = vmatpush1.bf16.msra.mxu0 %v2670
    %3546 = vmatprep.subr.bf16.mxu0 %v2675
    %3547 = vmatpush1.bf16.msra.mxu0 %v2674
    %3548 = vmatprep.subr.bf16.mxu0 %v2679
    %3549 = vmatpush1.bf16.msra.mxu0 %v2678
    %3550 = vmatprep.subr.bf16.mxu0 %v2683
    %3551 = vmatpush1.bf16.msra.mxu0 %v2682
    %3552 = vmatprep.mubr.bf16.mxu0 %v683
    %3553 = vmatmul.mubr.bf16.gmra.mrb[0].mxu0 %v682
    %v3554 = vpop.f32.mrb[0].mxu0
    %v3555 = vadd.f32 %v3512, %v3554
    %v3556 = vpop.f32.mrb[0].mxu0
    %v3557 = vadd.f32 %v3514, %v3556
    %v3558 = vpop.f32.mrb[0].mxu0
    %v3559 = vadd.f32 %v3516, %v3558
    %v3560 = vpop.f32.mrb[0].mxu0
    %v3561 = vadd.f32 %v3518, %v3560
    %3562 = vdwg.mxu0
    %3563 = vmatprep.subr.bf16.mxu0 %v2687
    %3564 = vmatpush1.bf16.msra.mxu0 %v2686
    %3565 = vmatprep.subr.bf16.mxu0 %v2691
    %3566 = vmatpush1.bf16.msra.mxu0 %v2690
    %3567 = vmatprep.subr.bf16.mxu0 %v2695
    %3568 = vmatpush1.bf16.msra.mxu0 %v2694
    %3569 = vmatprep.subr.bf16.mxu0 %v2699
    %3570 = vmatpush1.bf16.msra.mxu0 %v2698
    %3571 = vmatprep.subr.bf16.mxu0 %v2703
    %3572 = vmatpush1.bf16.msra.mxu0 %v2702
    %3573 = vmatprep.subr.bf16.mxu0 %v2707
    %3574 = vmatpush1.bf16.msra.mxu0 %v2706
    %3575 = vmatprep.subr.bf16.mxu0 %v2711
    %3576 = vmatpush1.bf16.msra.mxu0 %v2710
    %3577 = vmatprep.subr.bf16.mxu0 %v2715
    %3578 = vmatpush1.bf16.msra.mxu0 %v2714
    %3579 = vmatprep.subr.bf16.mxu0 %v2719
    %3580 = vmatpush1.bf16.msra.mxu0 %v2718
    %3581 = vmatprep.subr.bf16.mxu0 %v2723
    %3582 = vmatpush1.bf16.msra.mxu0 %v2722
    %3583 = vmatprep.subr.bf16.mxu0 %v2727
    %3584 = vmatpush1.bf16.msra.mxu0 %v2726
    %3585 = vmatprep.subr.bf16.mxu0 %v2731
    %3586 = vmatpush1.bf16.msra.mxu0 %v2730
    %3587 = vmatprep.subr.bf16.mxu0 %v2735
    %3588 = vmatpush1.bf16.msra.mxu0 %v2734
    %3589 = vmatprep.subr.bf16.mxu0 %v2739
    %3590 = vmatpush1.bf16.msra.mxu0 %v2738
    %3591 = vmatprep.subr.bf16.mxu0 %v2743
    %3592 = vmatpush1.bf16.msra.mxu0 %v2742
    %3593 = vmatprep.subr.bf16.mxu0 %v2747
    %3594 = vmatpush1.bf16.msra.mxu0 %v2746
    %3595 = vmatprep.mubr.bf16.mxu0 %v685
    %3596 = vmatmul.mubr.bf16.gmra.mrb[0].mxu0 %v684
    %v3597 = vpop.f32.mrb[0].mxu0
    %v3598 = vadd.f32 %v3555, %v3597
    %v3599 = vpop.f32.mrb[0].mxu0
    %v3600 = vadd.f32 %v3557, %v3599
    %v3601 = vpop.f32.mrb[0].mxu0
    %v3602 = vadd.f32 %v3559, %v3601
    %v3603 = vpop.f32.mrb[0].mxu0
    %v3604 = vadd.f32 %v3561, %v3603
    %3605 = vdwg.mxu0
    %3606 = vmatprep.subr.bf16.mxu0 %v2241
    %3607 = vmatpush1.bf16.msra.mxu0 %v2240
    %3608 = vmatprep.subr.bf16.mxu0 %v2245
    %3609 = vmatpush1.bf16.msra.mxu0 %v2244
    %3610 = vmatprep.subr.bf16.mxu0 %v2249
    %3611 = vmatpush1.bf16.msra.mxu0 %v2248
    %3612 = vmatprep.subr.bf16.mxu0 %v2253
    %3613 = vmatpush1.bf16.msra.mxu0 %v2252
    %3614 = vmatprep.subr.bf16.mxu0 %v2257
    %3615 = vmatpush1.bf16.msra.mxu0 %v2256
    %3616 = vmatprep.subr.bf16.mxu0 %v2261
    %3617 = vmatpush1.bf16.msra.mxu0 %v2260
    %3618 = vmatprep.subr.bf16.mxu0 %v2265
    %3619 = vmatpush1.bf16.msra.mxu0 %v2264
    %3620 = vmatprep.subr.bf16.mxu0 %v2269
    %3621 = vmatpush1.bf16.msra.mxu0 %v2268
    %3622 = vmatprep.subr.bf16.mxu0 %v2273
    %3623 = vmatpush1.bf16.msra.mxu0 %v2272
    %3624 = vmatprep.subr.bf16.mxu0 %v2277
    %3625 = vmatpush1.bf16.msra.mxu0 %v2276
    %3626 = vmatprep.subr.bf16.mxu0 %v2281
    %3627 = vmatpush1.bf16.msra.mxu0 %v2280
    %3628 = vmatprep.subr.bf16.mxu0 %v2285
    %3629 = vmatpush1.bf16.msra.mxu0 %v2284
    %3630 = vmatprep.subr.bf16.mxu0 %v2289
    %3631 = vmatpush1.bf16.msra.mxu0 %v2288
    %3632 = vmatprep.subr.bf16.mxu0 %v2293
    %3633 = vmatpush1.bf16.msra.mxu0 %v2292
    %3634 = vmatprep.subr.bf16.mxu0 %v2297
    %3635 = vmatpush1.bf16.msra.mxu0 %v2296
    %3636 = vmatprep.subr.bf16.mxu0 %v2301
    %3637 = vmatpush1.bf16.msra.mxu0 %v2300
    %3638 = vmatprep.mubr.bf16.mxu0 %v671
    %3639 = vmatmul.mubr.bf16.gmra.mrb[0].mxu0 %v670
    %v3640 = vpop.f32.mrb[0].mxu0
    %v3641 = vadd.f32 %v613, %v3640
    %v3642 = vpop.f32.mrb[0].mxu0
    %v3643 = vadd.f32 %v617, %v3642
    %v3644 = vpop.f32.mrb[0].mxu0
    %v3645 = vadd.f32 %v613, %v3644
    %v3646 = vpop.f32.mrb[0].mxu0
    %v3647 = vadd.f32 %v617, %v3646
    %3648 = vdwg.mxu0
    %3649 = vmatprep.subr.bf16.mxu0 %v2305
    %3650 = vmatpush1.bf16.msra.mxu0 %v2304
    %3651 = vmatprep.subr.bf16.mxu0 %v2309
    %3652 = vmatpush1.bf16.msra.mxu0 %v2308
    %3653 = vmatprep.subr.bf16.mxu0 %v2313
    %3654 = vmatpush1.bf16.msra.mxu0 %v2312
    %3655 = vmatprep.subr.bf16.mxu0 %v2317
    %3656 = vmatpush1.bf16.msra.mxu0 %v2316
    %3657 = vmatprep.subr.bf16.mxu0 %v2321
    %3658 = vmatpush1.bf16.msra.mxu0 %v2320
    %3659 = vmatprep.subr.bf16.mxu0 %v2325
    %3660 = vmatpush1.bf16.msra.mxu0 %v2324
    %3661 = vmatprep.subr.bf16.mxu0 %v2329
    %3662 = vmatpush1.bf16.msra.mxu0 %v2328
    %3663 = vmatprep.subr.bf16.mxu0 %v2333
    %3664 = vmatpush1.bf16.msra.mxu0 %v2332
    %3665 = vmatprep.subr.bf16.mxu0 %v2337
    %3666 = vmatpush1.bf16.msra.mxu0 %v2336
    %3667 = vmatprep.subr.bf16.mxu0 %v2341
    %3668 = vmatpush1.bf16.msra.mxu0 %v2340
    %3669 = vmatprep.subr.bf16.mxu0 %v2345
    %3670 = vmatpush1.bf16.msra.mxu0 %v2344
    %3671 = vmatprep.subr.bf16.mxu0 %v2349
    %3672 = vmatpush1.bf16.msra.mxu0 %v2348
    %3673 = vmatprep.subr.bf16.mxu0 %v2353
    %3674 = vmatpush1.bf16.msra.mxu0 %v2352
    %3675 = vmatprep.subr.bf16.mxu0 %v2357
    %3676 = vmatpush1.bf16.msra.mxu0 %v2356
    %3677 = vmatprep.subr.bf16.mxu0 %v2361
    %3678 = vmatpush1.bf16.msra.mxu0 %v2360
    %3679 = vmatprep.subr.bf16.mxu0 %v2365
    %3680 = vmatpush1.bf16.msra.mxu0 %v2364
    %3681 = vmatprep.mubr.bf16.mxu0 %v673
    %3682 = vmatmul.mubr.bf16.gmra.mrb[0].mxu0 %v672
    %v3683 = vpop.f32.mrb[0].mxu0
    %v3684 = vadd.f32 %v3641, %v3683
    %v3685 = vpop.f32.mrb[0].mxu0
    %v3686 = vadd.f32 %v3643, %v3685
    %v3687 = vpop.f32.mrb[0].mxu0
    %v3688 = vadd.f32 %v3645, %v3687
    %v3689 = vpop.f32.mrb[0].mxu0
    %v3690 = vadd.f32 %v3647, %v3689
    %3691 = vdwg.mxu0
    %3692 = vmatprep.subr.bf16.mxu0 %v2369
    %3693 = vmatpush1.bf16.msra.mxu0 %v2368
    %3694 = vmatprep.subr.bf16.mxu0 %v2373
    %3695 = vmatpush1.bf16.msra.mxu0 %v2372
    %3696 = vmatprep.subr.bf16.mxu0 %v2377
    %3697 = vmatpush1.bf16.msra.mxu0 %v2376
    %3698 = vmatprep.subr.bf16.mxu0 %v2381
    %3699 = vmatpush1.bf16.msra.mxu0 %v2380
    %3700 = vmatprep.subr.bf16.mxu0 %v2385
    %3701 = vmatpush1.bf16.msra.mxu0 %v2384
    %3702 = vmatprep.subr.bf16.mxu0 %v2389
    %3703 = vmatpush1.bf16.msra.mxu0 %v2388
    %3704 = vmatprep.subr.bf16.mxu0 %v2393
    %3705 = vmatpush1.bf16.msra.mxu0 %v2392
    %3706 = vmatprep.subr.bf16.mxu0 %v2397
    %3707 = vmatpush1.bf16.msra.mxu0 %v2396
    %3708 = vmatprep.subr.bf16.mxu0 %v2401
    %3709 = vmatpush1.bf16.msra.mxu0 %v2400
    %3710 = vmatprep.subr.bf16.mxu0 %v2405
    %3711 = vmatpush1.bf16.msra.mxu0 %v2404
    %3712 = vmatprep.subr.bf16.mxu0 %v2409
    %3713 = vmatpush1.bf16.msra.mxu0 %v2408
    %3714 = vmatprep.subr.bf16.mxu0 %v2413
    %3715 = vmatpush1.bf16.msra.mxu0 %v2412
    %3716 = vmatprep.subr.bf16.mxu0 %v2417
    %3717 = vmatpush1.bf16.msra.mxu0 %v2416
    %3718 = vmatprep.subr.bf16.mxu0 %v2421
    %3719 = vmatpush1.bf16.msra.mxu0 %v2420
    %3720 = vmatprep.subr.bf16.mxu0 %v2425
    %3721 = vmatpush1.bf16.msra.mxu0 %v2424
    %3722 = vmatprep.subr.bf16.mxu0 %v2429
    %3723 = vmatpush1.bf16.msra.mxu0 %v2428
    %3724 = vmatprep.mubr.bf16.mxu0 %v675
    %3725 = vmatmul.mubr.bf16.gmra.mrb[0].mxu0 %v674
    %v3726 = vpop.f32.mrb[0].mxu0
    %v3727 = vadd.f32 %v3684, %v3726
    %v3728 = vpop.f32.mrb[0].mxu0
    %v3729 = vadd.f32 %v3686, %v3728
    %v3730 = vpop.f32.mrb[0].mxu0
    %v3731 = vadd.f32 %v3688, %v3730
    %v3732 = vpop.f32.mrb[0].mxu0
    %v3733 = vadd.f32 %v3690, %v3732
    %3734 = vdwg.mxu0
    %3735 = vmatprep.subr.bf16.mxu0 %v2433
    %3736 = vmatpush1.bf16.msra.mxu0 %v2432
    %3737 = vmatprep.subr.bf16.mxu0 %v2437
    %3738 = vmatpush1.bf16.msra.mxu0 %v2436
    %3739 = vmatprep.subr.bf16.mxu0 %v2441
    %3740 = vmatpush1.bf16.msra.mxu0 %v2440
    %3741 = vmatprep.subr.bf16.mxu0 %v2445
    %3742 = vmatpush1.bf16.msra.mxu0 %v2444
    %3743 = vmatprep.subr.bf16.mxu0 %v2449
    %3744 = vmatpush1.bf16.msra.mxu0 %v2448
    %3745 = vmatprep.subr.bf16.mxu0 %v2453
    %3746 = vmatpush1.bf16.msra.mxu0 %v2452
    %3747 = vmatprep.subr.bf16.mxu0 %v2457
    %3748 = vmatpush1.bf16.msra.mxu0 %v2456
    %3749 = vmatprep.subr.bf16.mxu0 %v2461
    %3750 = vmatpush1.bf16.msra.mxu0 %v2460
    %3751 = vmatprep.subr.bf16.mxu0 %v2465
    %3752 = vmatpush1.bf16.msra.mxu0 %v2464
    %3753 = vmatprep.subr.bf16.mxu0 %v2469
    %3754 = vmatpush1.bf16.msra.mxu0 %v2468
    %3755 = vmatprep.subr.bf16.mxu0 %v2473
    %3756 = vmatpush1.bf16.msra.mxu0 %v2472
    %3757 = vmatprep.subr.bf16.mxu0 %v2477
    %3758 = vmatpush1.bf16.msra.mxu0 %v2476
    %3759 = vmatprep.subr.bf16.mxu0 %v2481
    %3760 = vmatpush1.bf16.msra.mxu0 %v2480
    %3761 = vmatprep.subr.bf16.mxu0 %v2485
    %3762 = vmatpush1.bf16.msra.mxu0 %v2484
    %3763 = vmatprep.subr.bf16.mxu0 %v2489
    %3764 = vmatpush1.bf16.msra.mxu0 %v2488
    %3765 = vmatprep.subr.bf16.mxu0 %v2493
    %3766 = vmatpush1.bf16.msra.mxu0 %v2492
    %3767 = vmatprep.mubr.bf16.mxu0 %v677
    %3768 = vmatmul.mubr.bf16.gmra.mrb[0].mxu0 %v676
    %v3769 = vpop.f32.mrb[0].mxu0
    %v3770 = vadd.f32 %v3727, %v3769
    %v3771 = vpop.f32.mrb[0].mxu0
    %v3772 = vadd.f32 %v3729, %v3771
    %v3773 = vpop.f32.mrb[0].mxu0
    %v3774 = vadd.f32 %v3731, %v3773
    %v3775 = vpop.f32.mrb[0].mxu0
    %v3776 = vadd.f32 %v3733, %v3775
    %3777 = vdwg.mxu0
    %3778 = vmatprep.subr.bf16.mxu0 %v2497
    %3779 = vmatpush1.bf16.msra.mxu0 %v2496
    %3780 = vmatprep.subr.bf16.mxu0 %v2501
    %3781 = vmatpush1.bf16.msra.mxu0 %v2500
    %3782 = vmatprep.subr.bf16.mxu0 %v2505
    %3783 = vmatpush1.bf16.msra.mxu0 %v2504
    %3784 = vmatprep.subr.bf16.mxu0 %v2509
    %3785 = vmatpush1.bf16.msra.mxu0 %v2508
    %3786 = vmatprep.subr.bf16.mxu0 %v2513
    %3787 = vmatpush1.bf16.msra.mxu0 %v2512
    %3788 = vmatprep.subr.bf16.mxu0 %v2517
    %3789 = vmatpush1.bf16.msra.mxu0 %v2516
    %3790 = vmatprep.subr.bf16.mxu0 %v2521
    %3791 = vmatpush1.bf16.msra.mxu0 %v2520
    %3792 = vmatprep.subr.bf16.mxu0 %v2525
    %3793 = vmatpush1.bf16.msra.mxu0 %v2524
    %3794 = vmatprep.subr.bf16.mxu0 %v2529
    %3795 = vmatpush1.bf16.msra.mxu0 %v2528
    %3796 = vmatprep.subr.bf16.mxu0 %v2533
    %3797 = vmatpush1.bf16.msra.mxu0 %v2532
    %3798 = vmatprep.subr.bf16.mxu0 %v2537
    %3799 = vmatpush1.bf16.msra.mxu0 %v2536
    %3800 = vmatprep.subr.bf16.mxu0 %v2541
    %3801 = vmatpush1.bf16.msra.mxu0 %v2540
    %3802 = vmatprep.subr.bf16.mxu0 %v2545
    %3803 = vmatpush1.bf16.msra.mxu0 %v2544
    %3804 = vmatprep.subr.bf16.mxu0 %v2549
    %3805 = vmatpush1.bf16.msra.mxu0 %v2548
    %3806 = vmatprep.subr.bf16.mxu0 %v2553
    %3807 = vmatpush1.bf16.msra.mxu0 %v2552
    %3808 = vmatprep.subr.bf16.mxu0 %v2557
    %3809 = vmatpush1.bf16.msra.mxu0 %v2556
    %3810 = vmatprep.mubr.bf16.mxu0 %v679
    %3811 = vmatmul.mubr.bf16.gmra.mrb[0].mxu0 %v678
    %v3812 = vpop.f32.mrb[0].mxu0
    %v3813 = vadd.f32 %v3770, %v3812
    %v3814 = vpop.f32.mrb[0].mxu0
    %v3815 = vadd.f32 %v3772, %v3814
    %v3816 = vpop.f32.mrb[0].mxu0
    %v3817 = vadd.f32 %v3774, %v3816
    %v3818 = vpop.f32.mrb[0].mxu0
    %v3819 = vadd.f32 %v3776, %v3818
    %3820 = vdwg.mxu0
    %3821 = vmatprep.subr.bf16.mxu0 %v2561
    %3822 = vmatpush1.bf16.msra.mxu0 %v2560
    %3823 = vmatprep.subr.bf16.mxu0 %v2565
    %3824 = vmatpush1.bf16.msra.mxu0 %v2564
    %3825 = vmatprep.subr.bf16.mxu0 %v2569
    %3826 = vmatpush1.bf16.msra.mxu0 %v2568
    %3827 = vmatprep.subr.bf16.mxu0 %v2573
    %3828 = vmatpush1.bf16.msra.mxu0 %v2572
    %3829 = vmatprep.subr.bf16.mxu0 %v2577
    %3830 = vmatpush1.bf16.msra.mxu0 %v2576
    %3831 = vmatprep.subr.bf16.mxu0 %v2581
    %3832 = vmatpush1.bf16.msra.mxu0 %v2580
    %3833 = vmatprep.subr.bf16.mxu0 %v2585
    %3834 = vmatpush1.bf16.msra.mxu0 %v2584
    %3835 = vmatprep.subr.bf16.mxu0 %v2589
    %3836 = vmatpush1.bf16.msra.mxu0 %v2588
    %3837 = vmatprep.subr.bf16.mxu0 %v2593
    %3838 = vmatpush1.bf16.msra.mxu0 %v2592
    %3839 = vmatprep.subr.bf16.mxu0 %v2597
    %3840 = vmatpush1.bf16.msra.mxu0 %v2596
    %3841 = vmatprep.subr.bf16.mxu0 %v2601
    %3842 = vmatpush1.bf16.msra.mxu0 %v2600
    %3843 = vmatprep.subr.bf16.mxu0 %v2605
    %3844 = vmatpush1.bf16.msra.mxu0 %v2604
    %3845 = vmatprep.subr.bf16.mxu0 %v2609
    %3846 = vmatpush1.bf16.msra.mxu0 %v2608
    %3847 = vmatprep.subr.bf16.mxu0 %v2613
    %3848 = vmatpush1.bf16.msra.mxu0 %v2612
    %3849 = vmatprep.subr.bf16.mxu0 %v2617
    %3850 = vmatpush1.bf16.msra.mxu0 %v2616
    %3851 = vmatprep.subr.bf16.mxu0 %v2621
    %3852 = vmatpush1.bf16.msra.mxu0 %v2620
    %3853 = vmatprep.mubr.bf16.mxu0 %v681
    %3854 = vmatmul.mubr.bf16.gmra.mrb[0].mxu0 %v680
    %v3855 = vpop.f32.mrb[0].mxu0
    %v3856 = vadd.f32 %v3813, %v3855
    %v3857 = vpop.f32.mrb[0].mxu0
    %v3858 = vadd.f32 %v3815, %v3857
    %v3859 = vpop.f32.mrb[0].mxu0
    %v3860 = vadd.f32 %v3817, %v3859
    %v3861 = vpop.f32.mrb[0].mxu0
    %v3862 = vadd.f32 %v3819, %v3861
    %3863 = vdwg.mxu0
    %3864 = vmatprep.subr.bf16.mxu0 %v2625
    %3865 = vmatpush1.bf16.msra.mxu0 %v2624
    %3866 = vmatprep.subr.bf16.mxu0 %v2629
    %3867 = vmatpush1.bf16.msra.mxu0 %v2628
    %3868 = vmatprep.subr.bf16.mxu0 %v2633
    %3869 = vmatpush1.bf16.msra.mxu0 %v2632
    %3870 = vmatprep.subr.bf16.mxu0 %v2637
    %3871 = vmatpush1.bf16.msra.mxu0 %v2636
    %3872 = vmatprep.subr.bf16.mxu0 %v2641
    %3873 = vmatpush1.bf16.msra.mxu0 %v2640
    %3874 = vmatprep.subr.bf16.mxu0 %v2645
    %3875 = vmatpush1.bf16.msra.mxu0 %v2644
    %3876 = vmatprep.subr.bf16.mxu0 %v2649
    %3877 = vmatpush1.bf16.msra.mxu0 %v2648
    %3878 = vmatprep.subr.bf16.mxu0 %v2653
    %3879 = vmatpush1.bf16.msra.mxu0 %v2652
    %3880 = vmatprep.subr.bf16.mxu0 %v2657
    %3881 = vmatpush1.bf16.msra.mxu0 %v2656
    %3882 = vmatprep.subr.bf16.mxu0 %v2661
    %3883 = vmatpush1.bf16.msra.mxu0 %v2660
    %3884 = vmatprep.subr.bf16.mxu0 %v2665
    %3885 = vmatpush1.bf16.msra.mxu0 %v2664
    %3886 = vmatprep.subr.bf16.mxu0 %v2669
    %3887 = vmatpush1.bf16.msra.mxu0 %v2668
    %3888 = vmatprep.subr.bf16.mxu0 %v2673
    %3889 = vmatpush1.bf16.msra.mxu0 %v2672
    %3890 = vmatprep.subr.bf16.mxu0 %v2677
    %3891 = vmatpush1.bf16.msra.mxu0 %v2676
    %3892 = vmatprep.subr.bf16.mxu0 %v2681
    %3893 = vmatpush1.bf16.msra.mxu0 %v2680
    %3894 = vmatprep.subr.bf16.mxu0 %v2685
    %3895 = vmatpush1.bf16.msra.mxu0 %v2684
    %3896 = vmatprep.mubr.bf16.mxu0 %v683
    %3897 = vmatmul.mubr.bf16.gmra.mrb[0].mxu0 %v682
    %v3898 = vpop.f32.mrb[0].mxu0
    %v3899 = vadd.f32 %v3856, %v3898
    %v3900 = vpop.f32.mrb[0].mxu0
    %v3901 = vadd.f32 %v3858, %v3900
    %v3902 = vpop.f32.mrb[0].mxu0
    %v3903 = vadd.f32 %v3860, %v3902
    %v3904 = vpop.f32.mrb[0].mxu0
    %v3905 = vadd.f32 %v3862, %v3904
    %3906 = vdwg.mxu0
    %3907 = vmatprep.subr.bf16.mxu0 %v2689
    %3908 = vmatpush1.bf16.msra.mxu0 %v2688
    %3909 = vmatprep.subr.bf16.mxu0 %v2693
    %3910 = vmatpush1.bf16.msra.mxu0 %v2692
    %3911 = vmatprep.subr.bf16.mxu0 %v2697
    %3912 = vmatpush1.bf16.msra.mxu0 %v2696
    %3913 = vmatprep.subr.bf16.mxu0 %v2701
    %3914 = vmatpush1.bf16.msra.mxu0 %v2700
    %3915 = vmatprep.subr.bf16.mxu0 %v2705
    %3916 = vmatpush1.bf16.msra.mxu0 %v2704
    %3917 = vmatprep.subr.bf16.mxu0 %v2709
    %3918 = vmatpush1.bf16.msra.mxu0 %v2708
    %3919 = vmatprep.subr.bf16.mxu0 %v2713
    %3920 = vmatpush1.bf16.msra.mxu0 %v2712
    %3921 = vmatprep.subr.bf16.mxu0 %v2717
    %3922 = vmatpush1.bf16.msra.mxu0 %v2716
    %3923 = vmatprep.subr.bf16.mxu0 %v2721
    %3924 = vmatpush1.bf16.msra.mxu0 %v2720
    %3925 = vmatprep.subr.bf16.mxu0 %v2725
    %3926 = vmatpush1.bf16.msra.mxu0 %v2724
    %3927 = vmatprep.subr.bf16.mxu0 %v2729
    %3928 = vmatpush1.bf16.msra.mxu0 %v2728
    %3929 = vmatprep.subr.bf16.mxu0 %v2733
    %3930 = vmatpush1.bf16.msra.mxu0 %v2732
    %3931 = vmatprep.subr.bf16.mxu0 %v2737
    %3932 = vmatpush1.bf16.msra.mxu0 %v2736
    %3933 = vmatprep.subr.bf16.mxu0 %v2741
    %3934 = vmatpush1.bf16.msra.mxu0 %v2740
    %3935 = vmatprep.subr.bf16.mxu0 %v2745
    %3936 = vmatpush1.bf16.msra.mxu0 %v2744
    %3937 = vmatprep.subr.bf16.mxu0 %v2749
    %3938 = vmatpush1.bf16.msra.mxu0 %v2748
    %3939 = vmatprep.mubr.bf16.mxu0 %v685
    %3940 = vmatmul.mubr.bf16.gmra.mrb[0].mxu0 %v684
    %v3941 = vpop.f32.mrb[0].mxu0
    %v3942 = vadd.f32 %v3899, %v3941
    %v3943 = vpop.f32.mrb[0].mxu0
    %v3944 = vadd.f32 %v3901, %v3943
    %v3945 = vpop.f32.mrb[0].mxu0
    %v3946 = vadd.f32 %v3903, %v3945
    %v3947 = vpop.f32.mrb[0].mxu0
    %v3948 = vadd.f32 %v3905, %v3947
    %3949 = vdwg.mxu0
    %v3950 = vmax.f32 %v3598, 0.0
    %v3951 = vmax.f32 %v3600, 0.0
    %v3952 = vmax.f32 %v3942, 0.0
    %v3953 = vmax.f32 %v3944, 0.0
    %v3954 = vmax.f32 %v3602, 0.0
    %v3955 = vmax.f32 %v3604, 0.0
    %v3956 = vmax.f32 %v3946, 0.0
    %v3957 = vmax.f32 %v3948, 0.0
    %v3958 = vpack.c.bf16 %v3954, %v3950
    %v3959 = vpack.c.bf16 %v3955, %v3951
    %v3960 = vpack.c.bf16 %v3956, %v3952
    %v3961 = vpack.c.bf16 %v3957, %v3953
    %v3962 = vld [vmem:[#allocation6] sm:$0xf]
    %v3963 = vld [vmem:[#allocation6 + $0x4] sm:$0xf]
    %v3964 = vld [vmem:[#allocation6 + $0x8] sm:$0xf]
    %v3965 = vld [vmem:[#allocation6 + $0xc] sm:$0xf]
    %v3966 = vld [vmem:[#allocation6 + $0x10] sm:$0xf]
    %v3967 = vld [vmem:[#allocation6 + $0x14] sm:$0xf]
    %v3968 = vld [vmem:[#allocation6 + $0x18] sm:$0xf]
    %v3969 = vld [vmem:[#allocation6 + $0x1c] sm:$0xf]
    %v3970 = vld [vmem:[#allocation6 + $0x20] sm:$0xf]
    %v3971 = vld [vmem:[#allocation6 + $0x24] sm:$0xf]
    %v3972 = vld [vmem:[#allocation6 + $0x28] sm:$0xf]
    %v3973 = vld [vmem:[#allocation6 + $0x2c] sm:$0xf]
    %v3974 = vld [vmem:[#allocation6 + $0x30] sm:$0xf]
    %v3975 = vld [vmem:[#allocation6 + $0x34] sm:$0xf]
    %v3976 = vld [vmem:[#allocation6 + $0x38] sm:$0xf]
    %v3977 = vld [vmem:[#allocation6 + $0x3c] sm:$0xf]
    %v3978 = vld [vmem:[#allocation6 + $0x40] sm:$0xf]
    %v3979 = vld [vmem:[#allocation6 + $0x44] sm:$0xf]
    %v3980 = vld [vmem:[#allocation6 + $0x48] sm:$0xf]
    %v3981 = vld [vmem:[#allocation6 + $0x4c] sm:$0xf]
    %v3982 = vld [vmem:[#allocation6 + $0x50] sm:$0xf]
    %v3983 = vld [vmem:[#allocation6 + $0x54] sm:$0xf]
    %v3984 = vld [vmem:[#allocation6 + $0x58] sm:$0xf]
    %v3985 = vld [vmem:[#allocation6 + $0x5c] sm:$0xf]
    %v3986 = vld [vmem:[#allocation6 + $0x60] sm:$0xf]
    %v3987 = vld [vmem:[#allocation6 + $0x64] sm:$0xf]
    %v3988 = vld [vmem:[#allocation6 + $0x68] sm:$0xf]
    %v3989 = vld [vmem:[#allocation6 + $0x6c] sm:$0xf]
    %v3990 = vld [vmem:[#allocation6 + $0x70] sm:$0xf]
    %v3991 = vld [vmem:[#allocation6 + $0x74] sm:$0xf]
    %v3992 = vld [vmem:[#allocation6 + $0x78] sm:$0xf]
    %v3993 = vld [vmem:[#allocation6 + $0x7c] sm:$0xf]
    %v3994 = vld [vmem:[#allocation6 + $0x80] sm:$0xf]
    %v3995 = vld [vmem:[#allocation6 + $0x84] sm:$0xf]
    %v3996 = vld [vmem:[#allocation6 + $0x88] sm:$0xf]
    %v3997 = vld [vmem:[#allocation6 + $0x8c] sm:$0xf]
    %v3998 = vld [vmem:[#allocation6 + $0x90] sm:$0xf]
    %v3999 = vld [vmem:[#allocation6 + $0x94] sm:$0xf]
    %v4000 = vld [vmem:[#allocation6 + $0x98] sm:$0xf]
    %v4001 = vld [vmem:[#allocation6 + $0x9c] sm:$0xf]
    %v4002 = vld [vmem:[#allocation6 + $0xa0] sm:$0xf]
    %v4003 = vld [vmem:[#allocation6 + $0xa4] sm:$0xf]
    %v4004 = vld [vmem:[#allocation6 + $0xa8] sm:$0xf]
    %v4005 = vld [vmem:[#allocation6 + $0xac] sm:$0xf]
    %v4006 = vld [vmem:[#allocation6 + $0xb0] sm:$0xf]
    %v4007 = vld [vmem:[#allocation6 + $0xb4] sm:$0xf]
    %v4008 = vld [vmem:[#allocation6 + $0xb8] sm:$0xf]
    %v4009 = vld [vmem:[#allocation6 + $0xbc] sm:$0xf]
    %v4010 = vld [vmem:[#allocation6 + $0xc0] sm:$0xf]
    %v4011 = vld [vmem:[#allocation6 + $0xc4] sm:$0xf]
    %v4012 = vld [vmem:[#allocation6 + $0xc8] sm:$0xf]
    %v4013 = vld [vmem:[#allocation6 + $0xcc] sm:$0xf]
    %v4014 = vld [vmem:[#allocation6 + $0xd0] sm:$0xf]
    %v4015 = vld [vmem:[#allocation6 + $0xd4] sm:$0xf]
    %v4016 = vld [vmem:[#allocation6 + $0xd8] sm:$0xf]
    %v4017 = vld [vmem:[#allocation6 + $0xdc] sm:$0xf]
    %v4018 = vld [vmem:[#allocation6 + $0xe0] sm:$0xf]
    %v4019 = vld [vmem:[#allocation6 + $0xe4] sm:$0xf]
    %v4020 = vld [vmem:[#allocation6 + $0xe8] sm:$0xf]
    %v4021 = vld [vmem:[#allocation6 + $0xec] sm:$0xf]
    %v4022 = vld [vmem:[#allocation6 + $0xf0] sm:$0xf]
    %v4023 = vld [vmem:[#allocation6 + $0xf4] sm:$0xf]
    %v4024 = vld [vmem:[#allocation6 + $0xf8] sm:$0xf]
    %v4025 = vld [vmem:[#allocation6 + $0xfc] sm:$0xf]
    %v4026 = vld [vmem:[#allocation7] sm:$0x1]
    %v4028 = vlaneseq
    %v4029 = vshrl.u32 %v4028, 7
    %v4030 = vsub.s32 0, %v4029
    %v4031 = vrot.slane %v4026, %v4030
    %v4097 = vunpack.c.l.b16 %v3962
    %v4098 = vunpack.c.l.b16 %v3963
    %v4099 = vunpack.c.l.b16 %v3964
    %v4100 = vunpack.c.l.b16 %v3965
    %v4101 = vunpack.c.l.b16 %v3966
    %v4102 = vunpack.c.l.b16 %v3967
    %v4103 = vunpack.c.l.b16 %v3968
    %v4104 = vunpack.c.l.b16 %v3969
    %v4105 = vunpack.c.l.b16 %v3970
    %v4106 = vunpack.c.l.b16 %v3971
    %v4107 = vunpack.c.l.b16 %v3972
    %v4108 = vunpack.c.l.b16 %v3973
    %v4109 = vunpack.c.l.b16 %v3974
    %v4110 = vunpack.c.l.b16 %v3975
    %v4111 = vunpack.c.l.b16 %v3976
    %v4112 = vunpack.c.l.b16 %v3977
    %v4113 = vunpack.c.l.b16 %v3978
    %v4114 = vunpack.c.l.b16 %v3979
    %v4115 = vunpack.c.l.b16 %v3980
    %v4116 = vunpack.c.l.b16 %v3981
    %v4117 = vunpack.c.l.b16 %v3982
    %v4118 = vunpack.c.l.b16 %v3983
    %v4119 = vunpack.c.l.b16 %v3984
    %v4120 = vunpack.c.l.b16 %v3985
    %v4121 = vunpack.c.l.b16 %v3986
    %v4122 = vunpack.c.l.b16 %v3987
    %v4123 = vunpack.c.l.b16 %v3988
    %v4124 = vunpack.c.l.b16 %v3989
    %v4125 = vunpack.c.l.b16 %v3990
    %v4126 = vunpack.c.l.b16 %v3991
    %v4127 = vunpack.c.l.b16 %v3992
    %v4128 = vunpack.c.l.b16 %v3993
    %v4129 = vunpack.c.l.b16 %v3994
    %v4130 = vunpack.c.l.b16 %v3995
    %v4131 = vunpack.c.l.b16 %v3996
    %v4132 = vunpack.c.l.b16 %v3997
    %v4133 = vunpack.c.l.b16 %v3998
    %v4134 = vunpack.c.l.b16 %v3999
    %v4135 = vunpack.c.l.b16 %v4000
    %v4136 = vunpack.c.l.b16 %v4001
    %v4137 = vunpack.c.l.b16 %v4002
    %v4138 = vunpack.c.l.b16 %v4003
    %v4139 = vunpack.c.l.b16 %v4004
    %v4140 = vunpack.c.l.b16 %v4005
    %v4141 = vunpack.c.l.b16 %v4006
    %v4142 = vunpack.c.l.b16 %v4007
    %v4143 = vunpack.c.l.b16 %v4008
    %v4144 = vunpack.c.l.b16 %v4009
    %v4145 = vunpack.c.l.b16 %v4010
    %v4146 = vunpack.c.l.b16 %v4011
    %v4147 = vunpack.c.l.b16 %v4012
    %v4148 = vunpack.c.l.b16 %v4013
    %v4149 = vunpack.c.l.b16 %v4014
    %v4150 = vunpack.c.l.b16 %v4015
    %v4151 = vunpack.c.l.b16 %v4016
    %v4152 = vunpack.c.l.b16 %v4017
    %v4153 = vunpack.c.l.b16 %v4018
    %v4154 = vunpack.c.l.b16 %v4019
    %v4155 = vunpack.c.l.b16 %v4020
    %v4156 = vunpack.c.l.b16 %v4021
    %v4157 = vunpack.c.l.b16 %v4022
    %v4158 = vunpack.c.l.b16 %v4023
    %v4159 = vunpack.c.l.b16 %v4024
    %v4160 = vunpack.c.l.b16 %v4025
    %v4161 = vpack.c.b16 %v4098, %v4097
    %v4162 = vpack.c.b16 %v4100, %v4099
    %v4163 = vpack.c.b16 %v4102, %v4101
    %v4164 = vpack.c.b16 %v4104, %v4103
    %v4165 = vpack.c.b16 %v4106, %v4105
    %v4166 = vpack.c.b16 %v4108, %v4107
    %v4167 = vpack.c.b16 %v4110, %v4109
    %v4168 = vpack.c.b16 %v4112, %v4111
    %v4169 = vpack.c.b16 %v4114, %v4113
    %v4170 = vpack.c.b16 %v4116, %v4115
    %v4171 = vpack.c.b16 %v4118, %v4117
    %v4172 = vpack.c.b16 %v4120, %v4119
    %v4173 = vpack.c.b16 %v4122, %v4121
    %v4174 = vpack.c.b16 %v4124, %v4123
    %v4175 = vpack.c.b16 %v4126, %v4125
    %v4176 = vpack.c.b16 %v4128, %v4127
    %v4177 = vpack.c.b16 %v4130, %v4129
    %v4178 = vpack.c.b16 %v4132, %v4131
    %v4179 = vpack.c.b16 %v4134, %v4133
    %v4180 = vpack.c.b16 %v4136, %v4135
    %v4181 = vpack.c.b16 %v4138, %v4137
    %v4182 = vpack.c.b16 %v4140, %v4139
    %v4183 = vpack.c.b16 %v4142, %v4141
    %v4184 = vpack.c.b16 %v4144, %v4143
    %v4185 = vpack.c.b16 %v4146, %v4145
    %v4186 = vpack.c.b16 %v4148, %v4147
    %v4187 = vpack.c.b16 %v4150, %v4149
    %v4188 = vpack.c.b16 %v4152, %v4151
    %v4189 = vpack.c.b16 %v4154, %v4153
    %v4190 = vpack.c.b16 %v4156, %v4155
    %v4191 = vpack.c.b16 %v4158, %v4157
    %v4192 = vpack.c.b16 %v4160, %v4159
    %4225 = vmatprep.subr.bf16.mxu0 0
    %4226 = vmatpush1.bf16.msra.mxu0 %v4161
    %4227 = vmatprep.subr.bf16.mxu0 0
    %4228 = vmatpush1.bf16.msra.mxu0 %v4162
    %4229 = vmatprep.subr.bf16.mxu0 0
    %4230 = vmatpush1.bf16.msra.mxu0 %v4163
    %4231 = vmatprep.subr.bf16.mxu0 0
    %4232 = vmatpush1.bf16.msra.mxu0 %v4164
    %4233 = vmatprep.subr.bf16.mxu0 0
    %4234 = vmatpush1.bf16.msra.mxu0 %v4165
    %4235 = vmatprep.subr.bf16.mxu0 0
    %4236 = vmatpush1.bf16.msra.mxu0 %v4166
    %4237 = vmatprep.subr.bf16.mxu0 0
    %4238 = vmatpush1.bf16.msra.mxu0 %v4167
    %4239 = vmatprep.subr.bf16.mxu0 0
    %4240 = vmatpush1.bf16.msra.mxu0 %v4168
    %4241 = vmatprep.subr.bf16.mxu0 0
    %4242 = vmatpush1.bf16.msra.mxu0 %v4169
    %4243 = vmatprep.subr.bf16.mxu0 0
    %4244 = vmatpush1.bf16.msra.mxu0 %v4170
    %4245 = vmatprep.subr.bf16.mxu0 0
    %4246 = vmatpush1.bf16.msra.mxu0 %v4171
    %4247 = vmatprep.subr.bf16.mxu0 0
    %4248 = vmatpush1.bf16.msra.mxu0 %v4172
    %4249 = vmatprep.subr.bf16.mxu0 0
    %4250 = vmatpush1.bf16.msra.mxu0 %v4173
    %4251 = vmatprep.subr.bf16.mxu0 0
    %4252 = vmatpush1.bf16.msra.mxu0 %v4174
    %4253 = vmatprep.subr.bf16.mxu0 0
    %4254 = vmatpush1.bf16.msra.mxu0 %v4175
    %4255 = vmatprep.subr.bf16.mxu0 0
    %4256 = vmatpush1.bf16.msra.mxu0 %v4176
    %4257 = vmatprep.mubr.bf16.mxu0 %v3959
    %4258 = vmatmul.mubr.bf16.gmra.mrb[0].mxu0 %v3958
    %v4259 = vpop.f32.mrb[0].mxu0
    %v4260 = vadd.f32 %v4031, %v4259
    %v4261 = vpop.f32.mrb[0].mxu0
    %v4262 = vpop.f32.mrb[0].mxu0
    %v4263 = vadd.f32 %v4031, %v4262
    %v4264 = vpop.f32.mrb[0].mxu0
    %4265 = vdwg.mxu0
    %4266 = vmatprep.subr.bf16.mxu0 0
    %4267 = vmatpush1.bf16.msra.mxu0 %v4177
    %4268 = vmatprep.subr.bf16.mxu0 0
    %4269 = vmatpush1.bf16.msra.mxu0 %v4178
    %4270 = vmatprep.subr.bf16.mxu0 0
    %4271 = vmatpush1.bf16.msra.mxu0 %v4179
    %4272 = vmatprep.subr.bf16.mxu0 0
    %4273 = vmatpush1.bf16.msra.mxu0 %v4180
    %4274 = vmatprep.subr.bf16.mxu0 0
    %4275 = vmatpush1.bf16.msra.mxu0 %v4181
    %4276 = vmatprep.subr.bf16.mxu0 0
    %4277 = vmatpush1.bf16.msra.mxu0 %v4182
    %4278 = vmatprep.subr.bf16.mxu0 0
    %4279 = vmatpush1.bf16.msra.mxu0 %v4183
    %4280 = vmatprep.subr.bf16.mxu0 0
    %4281 = vmatpush1.bf16.msra.mxu0 %v4184
    %4282 = vmatprep.subr.bf16.mxu0 0
    %4283 = vmatpush1.bf16.msra.mxu0 %v4185
    %4284 = vmatprep.subr.bf16.mxu0 0
    %4285 = vmatpush1.bf16.msra.mxu0 %v4186
    %4286 = vmatprep.subr.bf16.mxu0 0
    %4287 = vmatpush1.bf16.msra.mxu0 %v4187
    %4288 = vmatprep.subr.bf16.mxu0 0
    %4289 = vmatpush1.bf16.msra.mxu0 %v4188
    %4290 = vmatprep.subr.bf16.mxu0 0
    %4291 = vmatpush1.bf16.msra.mxu0 %v4189
    %4292 = vmatprep.subr.bf16.mxu0 0
    %4293 = vmatpush1.bf16.msra.mxu0 %v4190
    %4294 = vmatprep.subr.bf16.mxu0 0
    %4295 = vmatpush1.bf16.msra.mxu0 %v4191
    %4296 = vmatprep.subr.bf16.mxu0 0
    %4297 = vmatpush1.bf16.msra.mxu0 %v4192
    %4298 = vmatprep.mubr.bf16.mxu0 %v3961
    %4299 = vmatmul.mubr.bf16.gmra.mrb[0].mxu0 %v3960
    %v4300 = vpop.f32.mrb[0].mxu0
    %v4301 = vadd.f32 %v4260, %v4300
    %v4302 = vpop.f32.mrb[0].mxu0
    %v4303 = vpop.f32.mrb[0].mxu0
    %v4304 = vadd.f32 %v4263, %v4303
    %v4305 = vpop.f32.mrb[0].mxu0
    %4306 = vdwg.mxu0
    %4307 = vst [vmem:[%s5] sm:$0xff] %v4301
    %4308 = vst [vmem:[%s5 + $0x8] sm:$0xff] %v4304
    // Predicated region
    $region38: #{deepfake_forward.1} parent=1 // pred_check
      _
    $region39: #{deepfake_forward.1} parent=1 // pred_check_branch
      %4310 = sbr.rel (0) target = $region41
    $region40: #{deepfake_forward.1} parent=1 // pred_region
      _
    $region41: #{deepfake_forward.1} parent=1 // pred_fallthru
      _
    // Predicated region
    $region42: #{deepfake_forward.1} parent=1 // pred_check
      _
    $region43: #{deepfake_forward.1} parent=1 // pred_check_branch
      %4312 = sbr.rel (0) target = $region45
    $region44: #{deepfake_forward.1} parent=1 // pred_region
      _
    $region45: #{deepfake_forward.1} parent=1 // pred_fallthru
      _
    %4313 = vsyncpa [#allocation3], 1
    %4314 = vsyncpa [#allocation5], 1
    %4315 = vsyncpa [#allocation8], 1

</llo_original>
